<compile_context>
chip_gen: v7x
topology: tpu7x:2x2x1
jax: 0.10.0
libtpu: 0.0.40
codegen_flags: <defaults>
</compile_context>

<pallas_src>
import jax
import jax.numpy as jnp
from jax.experimental import pallas as pl
from jax.experimental.pallas import tpu as pltpu

_PAD = 128  # front lane pad of the haloed strip (alignment + guard band)


def _conv_shuffle_prelu_kernel(x_ref, top_ref, bot_ref, w_ref, b_ref, s_ref,
                               alpha_ref, o_ref, xq_ref, patch_ref, acc_ref):
    # x_ref:     (Cin_p, TS, W)     input strip (channel-padded)
    # top_ref:   (Cin_p, W)         row above the strip (zeros at the image top)
    # bot_ref:   (Cin_p, W)         row below the strip (zeros at the image bottom)
    # w_ref:     (Cout, 9*Cin_p)    conv weights, rows ordered (j, i, c), K = (ky,kx,ci)
    # b_ref:     (Cout, 1)          bias, rows ordered (j, i, c)
    # s_ref:     (r, G, G*r)        0/1 lane-spread matrices (f32)
    # alpha_ref: (1,) in SMEM       PReLU slope
    # o_ref:     (Cin, TS*r, W*r)   pixel-shuffled output block (final layout)
    # xq_ref:    (Cin_p, _PAD + (TS+2)*W + 128)   haloed flattened strip (scratch)
    # patch_ref: (9*Cin_p, TS*W)    im2col patches (scratch)
    # acc_ref:   (Cout, TS*W) f32   conv + PReLU result (scratch)
    Cin_p, TS, W = x_ref.shape
    Cout, TSW = acc_ref.shape
    Cin, TSr, Wr = o_ref.shape
    r = TSr // TS
    rCin = r * Cin
    G = s_ref.shape[1]
    nG = W // G

    # ---- guard bands: the corner taps read one lane past each end of the strip.
    #      Their contribution is masked to zero below, but zero the lanes anyway so
    #      the kernel never consumes uninitialized scratch.
    xq_ref[:, 0:_PAD] = jnp.zeros((Cin_p, _PAD), xq_ref.dtype)
    tail = _PAD + (TS + 2) * W
    xq_ref[:, tail:tail + 128] = jnp.zeros((Cin_p, 128), xq_ref.dtype)

    # ---- haloed flattened strip: xq[ci, _PAD + t*W + w] = x[ci, row0 + t - 1, w]
    xq_ref[:, _PAD:_PAD + W] = top_ref[...].astype(xq_ref.dtype)
    for t in range(TS):
        off = _PAD + (t + 1) * W
        xq_ref[:, off:off + W] = x_ref[:, t, :].astype(xq_ref.dtype)
    off = _PAD + (TS + 1) * W
    xq_ref[:, off:off + W] = bot_ref[...].astype(xq_ref.dtype)

    # ---- left/right zero-padding masks along W (grid-invariant, cheap VPU work)
    lane = jax.lax.broadcasted_iota(jnp.int32, (1, TSW), 1)
    wpos = lane % W
    keep_left = wpos != 0             # kx == 0 taps invalid at w == 0
    keep_right = wpos != (W - 1)      # kx == 2 taps invalid at w == W-1

    # ---- im2col: 9 static lane-offset slices of the flattened strip
    for ky in range(3):
        for kx in range(3):
            k = ky * 3 + kx
            start = _PAD + ky * W + (kx - 1)
            sl = xq_ref[:, start:start + TSW]          # (Cin_p, TS*W)
            if kx == 0:
                sl = jnp.where(keep_left, sl, 0)
            elif kx == 2:
                sl = jnp.where(keep_right, sl, 0)
            patch_ref[k * Cin_p:(k + 1) * Cin_p, :] = sl   # tile-aligned (Cin_p % 8 == 0)

    # ---- conv: single MXU matmul over K = 9*Cin_p, f32 accumulation, bias + PReLU
    acc = jnp.dot(w_ref[...], patch_ref[...], preferred_element_type=jnp.float32)
    acc = acc + b_ref[...].astype(jnp.float32)
    alpha = alpha_ref[0]
    acc_ref[...] = jnp.where(acc >= 0, acc, alpha * acc)

    # ---- fused PixelShuffle:
    #      acc[(j,i,c), t*W + w]  ->  o[c, t*r + i, (w*r + j)]
    #      row phase (i): plain row placement; lane phase (j): 0/1 spread matmul.
    for t in range(TS):
        for g in range(nG):
            c0 = t * W + g * G
            for i in range(r):
                out_i = None
                for j in range(r):
                    rrow = j * rCin + i * Cin
                    a = acc_ref[rrow:rrow + Cin, c0:c0 + G]          # (Cin, G) f32
                    d = jnp.dot(a, s_ref[j], preferred_element_type=jnp.float32)
                    out_i = d if out_i is None else out_i + d        # (Cin, G*r)
                o_ref[:, t * r + i, g * G * r:(g + 1) * G * r] = out_i.astype(o_ref.dtype)


def _pick_tile_rows(H, W, r):
    """Row strip TS: divides H, is a multiple of 8 (or == H), keeps the unroll and
    VMEM bounded (TS<=16, TS*W<=4096 lanes) and prefers >= 2 strips (v7x megacore)."""
    cands = [d for d in range(1, H + 1) if H % d == 0 and (d % 8 == 0 or d == H)]

    def ok(d):
        return d <= 16 and d * W <= 4096

    pref = [d for d in cands if ok(d) and H // d >= 2]
    if pref:
        return max(pref)
    pref = [d for d in cands if ok(d)]
    if pref:
        return max(pref)
    return min(cands)


def upsample_block(x_nchw, weight, bias, alpha, up_scale, *,
                   tile_rows=None, compute_dtype=jnp.float32):
    """Forward pass of UpsampleBLock (conv3x3 pad=1 -> PixelShuffle(r) -> PReLU).

    x_nchw: (N, Cin, H, W); weight: (Cin*r*r, Cin, 3, 3); bias: (Cin*r*r,)
    alpha:  scalar PReLU slope (single-parameter nn.PReLU()).
    Returns (N, Cin, H*r, W*r) in NCHW, matching the PyTorch module.
    compute_dtype=jnp.bfloat16 uses bf16 MXU operands (f32 accumulation) -- the
    recommended setting on v6e/v7x when the small precision loss is acceptable.
    """
    N, Cin, H, W = x_nchw.shape
    r = int(up_scale)
    Cout = Cin * r * r
    assert weight.shape == (Cout, Cin, 3, 3)

    alpha_arr = jnp.asarray(alpha, jnp.float32).reshape(-1)
    # PReLU-before-shuffle is only valid for the single-parameter nn.PReLU().
    assert alpha_arr.shape == (1,), "only single-parameter nn.PReLU() is supported"

    # Channel padding to the sublane granule -> every im2col tap store is tile-aligned.
    granule = 8 if jnp.dtype(compute_dtype).itemsize == 4 else 16
    Cin_p = ((Cin + granule - 1) // granule) * granule
    x_p = x_nchw if Cin_p == Cin else jnp.pad(
        x_nchw, ((0, 0), (0, Cin_p - Cin), (0, 0), (0, 0)))

    TS = _pick_tile_rows(H, W, r) if tile_rows is None else int(tile_rows)
    assert H % TS == 0, "tile_rows must divide H"
    assert TS % 8 == 0 or TS == H, "tile_rows must be a multiple of 8 (or == H)"
    S = H // TS
    TSW = TS * W

    # 1-row top / bottom halos per strip, prepared once on the (small) input; the
    # boundary strips get zero rows here so the kernel has no conditionals.
    zrow = jnp.zeros((N, Cin_p, 1, W), x_p.dtype)
    top = jnp.concatenate([zrow, x_p[:, :, TS - 1::TS, :][:, :, :S - 1, :]], axis=2)
    bot = jnp.concatenate([x_p[:, :, TS::TS, :], zrow], axis=2)
    top = jnp.transpose(top, (0, 2, 1, 3))   # (N, S, Cin_p, W)
    bot = jnp.transpose(bot, (0, 2, 1, 3))   # (N, S, Cin_p, W)

    # Weights: (Cout, Cin, 3, 3), out channel o = c*r*r + i*r + j  ->  rows ordered
    # (j, i, c), K ordered (ky, kx, ci) with ci zero-padded to Cin_p.
    w6 = weight.reshape(Cin, r, r, Cin, 3, 3)          # (c, i, j, ci, ky, kx)
    w6 = jnp.transpose(w6, (2, 1, 0, 4, 5, 3))         # (j, i, c, ky, kx, ci)
    w6 = jnp.pad(w6, ((0, 0),) * 5 + ((0, Cin_p - Cin),))
    w2 = w6.reshape(Cout, 9 * Cin_p).astype(compute_dtype)
    b2 = jnp.transpose(bias.reshape(Cin, r, r), (2, 1, 0)).reshape(Cout, 1)
    b2 = b2.astype(jnp.float32)

    # 0/1 lane-spread matrices for the in-kernel column interleave of the shuffle:
    # smat[j, u, u*r + j] = 1.  Kept in f32 so the spread matmul is exact.
    G = 128 if W % 128 == 0 else W
    eye = jnp.eye(G, dtype=jnp.float32)
    smat = jnp.zeros((r, G, G * r), jnp.float32)
    for j in range(r):
        smat = smat.at[j, :, j::r].set(eye)

    xq_lanes = _PAD + (TS + 2) * W + 128
    cb = jnp.dtype(compute_dtype).itemsize
    ib = jnp.dtype(x_nchw.dtype).itemsize
    est = (2 * Cin_p * TS * W * ib + 4 * Cin_p * W * ib
           + 2 * Cout * 9 * Cin_p * cb + 2 * Cin * TS * r * W * r * ib
           + Cin_p * xq_lanes * cb + 9 * Cin_p * TSW * cb + Cout * TSW * 4
           + r * G * G * r * 4)
    # keep <= 48 MiB so the same setting is safe on v7x's smaller VMEM
    vmem_limit = int(min(48 * 2 ** 20, max(32 * 2 ** 20, 2 * est)))

    out = pl.pallas_call(
        _conv_shuffle_prelu_kernel,
        out_shape=jax.ShapeDtypeStruct((N, Cin, H * r, W * r), x_nchw.dtype),
        grid_spec=pltpu.PrefetchScalarGridSpec(
            num_scalar_prefetch=0,
            grid=(N, S),
            in_specs=[
                pl.BlockSpec((None, Cin_p, TS, W), lambda n, s: (n, 0, s, 0)),
                pl.BlockSpec((None, None, Cin_p, W), lambda n, s: (n, s, 0, 0)),
                pl.BlockSpec((None, None, Cin_p, W), lambda n, s: (n, s, 0, 0)),
                pl.BlockSpec((Cout, 9 * Cin_p), lambda n, s: (0, 0)),
                pl.BlockSpec((Cout, 1), lambda n, s: (0, 0)),
                pl.BlockSpec((r, G, G * r), lambda n, s: (0, 0, 0)),
                pl.BlockSpec(memory_space=pltpu.SMEM),
            ],
            out_specs=pl.BlockSpec((None, Cin, TS * r, W * r),
                                   lambda n, s: (n, 0, s, 0)),
            scratch_shapes=[
                pltpu.VMEM((Cin_p, xq_lanes), compute_dtype),     # haloed strip
                pltpu.VMEM((9 * Cin_p, TSW), compute_dtype),      # im2col patches
                pltpu.VMEM((Cout, TSW), jnp.float32),             # conv+PReLU result
            ],
        ),
        compiler_params=pltpu.CompilerParams(
            dimension_semantics=("parallel", "parallel"),
            vmem_limit_bytes=vmem_limit,
        ),
    )(x_p, top, bot, w2, b2, smat, alpha_arr)
    return out


def _reference(x_nchw, weight, bias, alpha, up_scale):
    """Pure-JAX reference (conv -> pixel_shuffle -> prelu)."""
    conv = jax.lax.conv_general_dilated(
        x_nchw, weight, window_strides=(1, 1), padding=((1, 1), (1, 1)),
        dimension_numbers=("NCHW", "OIHW", "NCHW"))
    conv = conv + bias[None, :, None, None]
    N, C, H, W = conv.shape
    r = up_scale
    Cin = C // (r * r)
    ps = conv.reshape(N, Cin, r, r, H, W)
    ps = jnp.transpose(ps, (0, 1, 4, 2, 5, 3)).reshape(N, Cin, H * r, W * r)
    return jnp.where(ps >= 0, ps, alpha * ps)


if __name__ == "__main__":
    # Small deterministic example: batch=2, in_channels=4, spatial=16, up_scale=2
    N, Cin, H, W = 2, 4, 16, 16
    up_scale = 2
    Cout = Cin * up_scale ** 2

    key = jax.random.PRNGKey(0)
    kx_, kw_, kb_ = jax.random.split(key, 3)
    x = jax.random.normal(kx_, (N, Cin, H, W), dtype=jnp.float32)
    weight = jax.random.normal(kw_, (Cout, Cin, 3, 3), dtype=jnp.float32) * 0.1
    bias = jax.random.normal(kb_, (Cout,), dtype=jnp.float32) * 0.1
    alpha = 0.25  # PyTorch nn.PReLU() default init

    ref = _reference(x, weight, bias, alpha, up_scale)

    # Default tiling: 2 strips of 8 rows -> exercises the halo rows and gives the
    # grid >= 2 independent steps per batch element (megacore-friendly).
    out = jax.block_until_ready(upsample_block(x, weight, bias, alpha, up_scale))
    assert out.shape == (N, Cin, H * up_scale, W * up_scale)
    assert jnp.allclose(out, ref, rtol=1e-3, atol=1e-3)

    # Single whole-image strip (S = 1 path, zero halos prepared by the wrapper).
    out2 = jax.block_until_ready(
        upsample_block(x, weight, bias, alpha, up_scale, tile_rows=16))
    assert jnp.allclose(out2, ref, rtol=1e-3, atol=1e-3)

    print("KERNEL_OK")
</pallas_src>

<mosaic_0001>
module attributes {stable_mosaic.version = 11 : i64} {
  func.func @_conv_shuffle_prelu_kernel(%arg0: i32, %arg1: i32, %arg2: memref<1x8x8x16xf32, #tpu.memory_space<vmem>>, %arg3: memref<1x1x8x16xf32, #tpu.memory_space<vmem>>, %arg4: memref<1x1x8x16xf32, #tpu.memory_space<vmem>>, %arg5: memref<16x72xf32, #tpu.memory_space<vmem>>, %arg6: memref<16x1xf32, #tpu.memory_space<vmem>>, %arg7: memref<2x16x32xf32, #tpu.memory_space<vmem>>, %arg8: memref<1xf32, #tpu.memory_space<smem>>, %arg9: memref<1x4x16x32xf32, #tpu.memory_space<vmem>>, %arg10: memref<8x416xf32, #tpu.memory_space<vmem>>, %arg11: memref<72x128xf32, #tpu.memory_space<vmem>>, %arg12: memref<16x128xf32, #tpu.memory_space<vmem>>) attributes {dimension_semantics = [#tpu.dimension_semantics<parallel>, #tpu.dimension_semantics<parallel>], iteration_bounds = array<i64: 2, 2>, scalar_prefetch = 0 : i64, scratch_operands = 3 : i64, tpu.core_type = #tpu.core_type<tc>, window_params = [{transform_indices = @transform_0, window_bounds = array<i64: 1, 8, 8, 16>}, {transform_indices = @transform_1, window_bounds = array<i64: 1, 1, 8, 16>}, {transform_indices = @transform_2, window_bounds = array<i64: 1, 1, 8, 16>}, {pipeline_mode = #tpu.pipeline_mode<synchronous>, transform_indices = @transform_3, window_bounds = array<i64: 16, 72>}, {pipeline_mode = #tpu.pipeline_mode<synchronous>, transform_indices = @transform_4, window_bounds = array<i64: 16, 1>}, {pipeline_mode = #tpu.pipeline_mode<synchronous>, transform_indices = @transform_5, window_bounds = array<i64: 2, 16, 32>}, {transform_indices = @transform_6, window_bounds = array<i64: 1>}, {transform_indices = @transform_7, window_bounds = array<i64: 1, 4, 16, 32>}]} {
    %cst = arith.constant 0.000000e+00 : f32
    %0 = vector.broadcast %cst : f32 to vector<8x128xf32>
    %c0 = arith.constant 0 : index
    %c0_0 = arith.constant 0 : index
    %1 = vector.load %arg10[%c0, %c0_0] : memref<8x416xf32, #tpu.memory_space<vmem>>, vector<8x128xf32>
    tpu.vector_store %arg10[%c0, %c0_0], %0 {strides = array<i32>} : memref<8x416xf32, #tpu.memory_space<vmem>>, vector<8x128xf32>,
    %cst_1 = arith.constant 0.000000e+00 : f32
    %2 = vector.broadcast %cst_1 : f32 to vector<8x128xf32>
    %c0_2 = arith.constant 0 : index
    %c288 = arith.constant 288 : index
    %3 = vector.load %arg10[%c0_2, %c288] : memref<8x416xf32, #tpu.memory_space<vmem>>, vector<8x128xf32>
    tpu.vector_store %arg10[%c0_2, %c288], %2 {strides = array<i32>} : memref<8x416xf32, #tpu.memory_space<vmem>>, vector<8x128xf32>,
    %c0_3 = arith.constant 0 : index
    %c0_4 = arith.constant 0 : index
    %c0_5 = arith.constant 0 : index
    %c0_6 = arith.constant 0 : index
    %4 = vector.load %arg3[%c0_3, %c0_4, %c0_5, %c0_6] : memref<1x1x8x16xf32, #tpu.memory_space<vmem>>, vector<1x1x8x16xf32>
    %5 = vector.shape_cast %4 : vector<1x1x8x16xf32> to vector<8x16xf32>
    %c0_7 = arith.constant 0 : index
    %c128 = arith.constant 128 : index
    %6 = vector.load %arg10[%c0_7, %c128] : memref<8x416xf32, #tpu.memory_space<vmem>>, vector<8x16xf32>
    tpu.vector_store %arg10[%c0_7, %c128], %5 {strides = array<i32>} : memref<8x416xf32, #tpu.memory_space<vmem>>, vector<8x16xf32>,
    %c0_8 = arith.constant 0 : index
    %c0_9 = arith.constant 0 : index
    %c0_10 = arith.constant 0 : index
    %c0_11 = arith.constant 0 : index
    %7 = vector.load %arg2[%c0_8, %c0_9, %c0_10, %c0_11] : memref<1x8x8x16xf32, #tpu.memory_space<vmem>>, vector<1x8x1x16xf32>
    %8 = vector.shape_cast %7 : vector<1x8x1x16xf32> to vector<8x16xf32>
    %c0_12 = arith.constant 0 : index
    %c144 = arith.constant 144 : index
    %9 = vector.load %arg10[%c0_12, %c144] : memref<8x416xf32, #tpu.memory_space<vmem>>, vector<8x16xf32>
    tpu.vector_store %arg10[%c0_12, %c144], %8 {strides = array<i32>} : memref<8x416xf32, #tpu.memory_space<vmem>>, vector<8x16xf32>,
    %c0_13 = arith.constant 0 : index
    %c0_14 = arith.constant 0 : index
    %c1 = arith.constant 1 : index
    %c0_15 = arith.constant 0 : index
    %10 = vector.load %arg2[%c0_13, %c0_14, %c1, %c0_15] : memref<1x8x8x16xf32, #tpu.memory_space<vmem>>, vector<1x8x1x16xf32>
    %11 = vector.shape_cast %10 : vector<1x8x1x16xf32> to vector<8x16xf32>
    %c0_16 = arith.constant 0 : index
    %c160 = arith.constant 160 : index
    %12 = vector.load %arg10[%c0_16, %c160] : memref<8x416xf32, #tpu.memory_space<vmem>>, vector<8x16xf32>
    tpu.vector_store %arg10[%c0_16, %c160], %11 {strides = array<i32>} : memref<8x416xf32, #tpu.memory_space<vmem>>, vector<8x16xf32>,
    %c0_17 = arith.constant 0 : index
    %c0_18 = arith.constant 0 : index
    %c2 = arith.constant 2 : index
    %c0_19 = arith.constant 0 : index
    %13 = vector.load %arg2[%c0_17, %c0_18, %c2, %c0_19] : memref<1x8x8x16xf32, #tpu.memory_space<vmem>>, vector<1x8x1x16xf32>
    %14 = vector.shape_cast %13 : vector<1x8x1x16xf32> to vector<8x16xf32>
    %c0_20 = arith.constant 0 : index
    %c176 = arith.constant 176 : index
    %15 = vector.load %arg10[%c0_20, %c176] : memref<8x416xf32, #tpu.memory_space<vmem>>, vector<8x16xf32>
    tpu.vector_store %arg10[%c0_20, %c176], %14 {strides = array<i32>} : memref<8x416xf32, #tpu.memory_space<vmem>>, vector<8x16xf32>,
    %c0_21 = arith.constant 0 : index
    %c0_22 = arith.constant 0 : index
    %c3 = arith.constant 3 : index
    %c0_23 = arith.constant 0 : index
    %16 = vector.load %arg2[%c0_21, %c0_22, %c3, %c0_23] : memref<1x8x8x16xf32, #tpu.memory_space<vmem>>, vector<1x8x1x16xf32>
    %17 = vector.shape_cast %16 : vector<1x8x1x16xf32> to vector<8x16xf32>
    %c0_24 = arith.constant 0 : index
    %c192 = arith.constant 192 : index
    %18 = vector.load %arg10[%c0_24, %c192] : memref<8x416xf32, #tpu.memory_space<vmem>>, vector<8x16xf32>
    tpu.vector_store %arg10[%c0_24, %c192], %17 {strides = array<i32>} : memref<8x416xf32, #tpu.memory_space<vmem>>, vector<8x16xf32>,
    %c0_25 = arith.constant 0 : index
    %c0_26 = arith.constant 0 : index
    %c4 = arith.constant 4 : index
    %c0_27 = arith.constant 0 : index
    %19 = vector.load %arg2[%c0_25, %c0_26, %c4, %c0_27] : memref<1x8x8x16xf32, #tpu.memory_space<vmem>>, vector<1x8x1x16xf32>
    %20 = vector.shape_cast %19 : vector<1x8x1x16xf32> to vector<8x16xf32>
    %c0_28 = arith.constant 0 : index
    %c208 = arith.constant 208 : index
    %21 = vector.load %arg10[%c0_28, %c208] : memref<8x416xf32, #tpu.memory_space<vmem>>, vector<8x16xf32>
    tpu.vector_store %arg10[%c0_28, %c208], %20 {strides = array<i32>} : memref<8x416xf32, #tpu.memory_space<vmem>>, vector<8x16xf32>,
    %c0_29 = arith.constant 0 : index
    %c0_30 = arith.constant 0 : index
    %c5 = arith.constant 5 : index
    %c0_31 = arith.constant 0 : index
    %22 = vector.load %arg2[%c0_29, %c0_30, %c5, %c0_31] : memref<1x8x8x16xf32, #tpu.memory_space<vmem>>, vector<1x8x1x16xf32>
    %23 = vector.shape_cast %22 : vector<1x8x1x16xf32> to vector<8x16xf32>
    %c0_32 = arith.constant 0 : index
    %c224 = arith.constant 224 : index
    %24 = vector.load %arg10[%c0_32, %c224] : memref<8x416xf32, #tpu.memory_space<vmem>>, vector<8x16xf32>
    tpu.vector_store %arg10[%c0_32, %c224], %23 {strides = array<i32>} : memref<8x416xf32, #tpu.memory_space<vmem>>, vector<8x16xf32>,
    %c0_33 = arith.constant 0 : index
    %c0_34 = arith.constant 0 : index
    %c6 = arith.constant 6 : index
    %c0_35 = arith.constant 0 : index
    %25 = vector.load %arg2[%c0_33, %c0_34, %c6, %c0_35] : memref<1x8x8x16xf32, #tpu.memory_space<vmem>>, vector<1x8x1x16xf32>
    %26 = vector.shape_cast %25 : vector<1x8x1x16xf32> to vector<8x16xf32>
    %c0_36 = arith.constant 0 : index
    %c240 = arith.constant 240 : index
    %27 = vector.load %arg10[%c0_36, %c240] : memref<8x416xf32, #tpu.memory_space<vmem>>, vector<8x16xf32>
    tpu.vector_store %arg10[%c0_36, %c240], %26 {strides = array<i32>} : memref<8x416xf32, #tpu.memory_space<vmem>>, vector<8x16xf32>,
    %c0_37 = arith.constant 0 : index
    %c0_38 = arith.constant 0 : index
    %c7 = arith.constant 7 : index
    %c0_39 = arith.constant 0 : index
    %28 = vector.load %arg2[%c0_37, %c0_38, %c7, %c0_39] : memref<1x8x8x16xf32, #tpu.memory_space<vmem>>, vector<1x8x1x16xf32>
    %29 = vector.shape_cast %28 : vector<1x8x1x16xf32> to vector<8x16xf32>
    %c0_40 = arith.constant 0 : index
    %c256 = arith.constant 256 : index
    %30 = vector.load %arg10[%c0_40, %c256] : memref<8x416xf32, #tpu.memory_space<vmem>>, vector<8x16xf32>
    tpu.vector_store %arg10[%c0_40, %c256], %29 {strides = array<i32>} : memref<8x416xf32, #tpu.memory_space<vmem>>, vector<8x16xf32>,
    %c0_41 = arith.constant 0 : index
    %c0_42 = arith.constant 0 : index
    %c0_43 = arith.constant 0 : index
    %c0_44 = arith.constant 0 : index
    %31 = vector.load %arg4[%c0_41, %c0_42, %c0_43, %c0_44] : memref<1x1x8x16xf32, #tpu.memory_space<vmem>>, vector<1x1x8x16xf32>
    %32 = vector.shape_cast %31 : vector<1x1x8x16xf32> to vector<8x16xf32>
    %c0_45 = arith.constant 0 : index
    %c272 = arith.constant 272 : index
    %33 = vector.load %arg10[%c0_45, %c272] : memref<8x416xf32, #tpu.memory_space<vmem>>, vector<8x16xf32>
    tpu.vector_store %arg10[%c0_45, %c272], %32 {strides = array<i32>} : memref<8x416xf32, #tpu.memory_space<vmem>>, vector<8x16xf32>,
    %34 = tpu.iota {dimensions = array<i32: 1>} : vector<1x128xi32>
    %c16_i32 = arith.constant 16 : i32
    %c0_i32 = arith.constant 0 : i32
    %35 = arith.cmpi eq, %c16_i32, %c0_i32 : i32
    %c1_i32 = arith.constant 1 : i32
    %36 = arith.select %35, %c1_i32, %c16_i32 : i32
    %37 = vector.broadcast %36 : i32 to vector<1x128xi32>
    %38 = arith.remsi %34, %37 : vector<1x128xi32>
    %c0_i32_46 = arith.constant 0 : i32
    %39 = vector.broadcast %c0_i32_46 : i32 to vector<1x128xi32>
    %40 = arith.cmpi ne, %38, %39 : vector<1x128xi32>
    %c0_i32_47 = arith.constant 0 : i32
    %41 = vector.broadcast %c0_i32_47 : i32 to vector<1x128xi32>
    %42 = arith.cmpi slt, %38, %41 : vector<1x128xi32>
    %c0_i32_48 = arith.constant 0 : i32
    %43 = arith.cmpi slt, %36, %c0_i32_48 : i32
    %44 = vector.broadcast %43 : i1 to vector<1x128xi1>
    %45 = vector.broadcast %44 : vector<1x128xi1> to vector<1x128xi1>
    %46 = arith.xori %42, %45 : vector<1x128xi1>
    %47 = arith.andi %46, %40 : vector<1x128xi1>
    %48 = vector.broadcast %36 : i32 to vector<1x128xi32>
    %49 = arith.addi %38, %48 : vector<1x128xi32>
    %50 = arith.select %47, %49, %38 : vector<1x128xi1>, vector<1x128xi32>
    %c0_i32_49 = arith.constant 0 : i32
    %51 = vector.broadcast %c0_i32_49 : i32 to vector<1x128xi32>
    %52 = arith.cmpi ne, %50, %51 : vector<1x128xi32>
    %c15_i32 = arith.constant 15 : i32
    %53 = vector.broadcast %c15_i32 : i32 to vector<1x128xi32>
    %54 = arith.cmpi ne, %50, %53 : vector<1x128xi32>
    %c0_50 = arith.constant 0 : index
    %c127 = arith.constant 127 : index
    %55 = vector.load %arg10[%c0_50, %c127] : memref<8x416xf32, #tpu.memory_space<vmem>>, vector<8x128xf32>
    %c0_i32_51 = arith.constant 0 : i32
    %56 = arith.sitofp %c0_i32_51 : i32 to f32
    %57 = vector.shape_cast %52 : vector<1x128xi1> to vector<1x128xi1>
    %58 = vector.broadcast %57 : vector<1x128xi1> to vector<8x128xi1>
    %59 = vector.broadcast %56 : f32 to vector<8x128xf32>
    %60 = arith.select %58, %55, %59 : vector<8x128xi1>, vector<8x128xf32>
    %c0_52 = arith.constant 0 : index
    %c0_53 = arith.constant 0 : index
    %61 = vector.load %arg11[%c0_52, %c0_53] : memref<72x128xf32, #tpu.memory_space<vmem>>, vector<8x128xf32>
    tpu.vector_store %arg11[%c0_52, %c0_53], %60 {strides = array<i32>} : memref<72x128xf32, #tpu.memory_space<vmem>>, vector<8x128xf32>,
    %c0_54 = arith.constant 0 : index
    %c128_55 = arith.constant 128 : index
    %62 = vector.load %arg10[%c0_54, %c128_55] : memref<8x416xf32, #tpu.memory_space<vmem>>, vector<8x128xf32>
    %c8 = arith.constant 8 : index
    %c0_56 = arith.constant 0 : index
    %63 = vector.load %arg11[%c8, %c0_56] : memref<72x128xf32, #tpu.memory_space<vmem>>, vector<8x128xf32>
    tpu.vector_store %arg11[%c8, %c0_56], %62 {strides = array<i32>} : memref<72x128xf32, #tpu.memory_space<vmem>>, vector<8x128xf32>,
    %c0_57 = arith.constant 0 : index
    %c129 = arith.constant 129 : index
    %64 = vector.load %arg10[%c0_57, %c129] : memref<8x416xf32, #tpu.memory_space<vmem>>, vector<8x128xf32>
    %c0_i32_58 = arith.constant 0 : i32
    %65 = arith.sitofp %c0_i32_58 : i32 to f32
    %66 = vector.shape_cast %54 : vector<1x128xi1> to vector<1x128xi1>
    %67 = vector.broadcast %66 : vector<1x128xi1> to vector<8x128xi1>
    %68 = vector.broadcast %65 : f32 to vector<8x128xf32>
    %69 = arith.select %67, %64, %68 : vector<8x128xi1>, vector<8x128xf32>
    %c16 = arith.constant 16 : index
    %c0_59 = arith.constant 0 : index
    %70 = vector.load %arg11[%c16, %c0_59] : memref<72x128xf32, #tpu.memory_space<vmem>>, vector<8x128xf32>
    tpu.vector_store %arg11[%c16, %c0_59], %69 {strides = array<i32>} : memref<72x128xf32, #tpu.memory_space<vmem>>, vector<8x128xf32>,
    %c0_60 = arith.constant 0 : index
    %c143 = arith.constant 143 : index
    %71 = vector.load %arg10[%c0_60, %c143] : memref<8x416xf32, #tpu.memory_space<vmem>>, vector<8x128xf32>
    %c0_i32_61 = arith.constant 0 : i32
    %72 = arith.sitofp %c0_i32_61 : i32 to f32
    %73 = vector.shape_cast %52 : vector<1x128xi1> to vector<1x128xi1>
    %74 = vector.broadcast %73 : vector<1x128xi1> to vector<8x128xi1>
    %75 = vector.broadcast %72 : f32 to vector<8x128xf32>
    %76 = arith.select %74, %71, %75 : vector<8x128xi1>, vector<8x128xf32>
    %c24 = arith.constant 24 : index
    %c0_62 = arith.constant 0 : index
    %77 = vector.load %arg11[%c24, %c0_62] : memref<72x128xf32, #tpu.memory_space<vmem>>, vector<8x128xf32>
    tpu.vector_store %arg11[%c24, %c0_62], %76 {strides = array<i32>} : memref<72x128xf32, #tpu.memory_space<vmem>>, vector<8x128xf32>,
    %c0_63 = arith.constant 0 : index
    %c144_64 = arith.constant 144 : index
    %78 = vector.load %arg10[%c0_63, %c144_64] : memref<8x416xf32, #tpu.memory_space<vmem>>, vector<8x128xf32>
    %c32 = arith.constant 32 : index
    %c0_65 = arith.constant 0 : index
    %79 = vector.load %arg11[%c32, %c0_65] : memref<72x128xf32, #tpu.memory_space<vmem>>, vector<8x128xf32>
    tpu.vector_store %arg11[%c32, %c0_65], %78 {strides = array<i32>} : memref<72x128xf32, #tpu.memory_space<vmem>>, vector<8x128xf32>,
    %c0_66 = arith.constant 0 : index
    %c145 = arith.constant 145 : index
    %80 = vector.load %arg10[%c0_66, %c145] : memref<8x416xf32, #tpu.memory_space<vmem>>, vector<8x128xf32>
    %c0_i32_67 = arith.constant 0 : i32
    %81 = arith.sitofp %c0_i32_67 : i32 to f32
    %82 = vector.shape_cast %54 : vector<1x128xi1> to vector<1x128xi1>
    %83 = vector.broadcast %82 : vector<1x128xi1> to vector<8x128xi1>
    %84 = vector.broadcast %81 : f32 to vector<8x128xf32>
    %85 = arith.select %83, %80, %84 : vector<8x128xi1>, vector<8x128xf32>
    %c40 = arith.constant 40 : index
    %c0_68 = arith.constant 0 : index
    %86 = vector.load %arg11[%c40, %c0_68] : memref<72x128xf32, #tpu.memory_space<vmem>>, vector<8x128xf32>
    tpu.vector_store %arg11[%c40, %c0_68], %85 {strides = array<i32>} : memref<72x128xf32, #tpu.memory_space<vmem>>, vector<8x128xf32>,
    %c0_69 = arith.constant 0 : index
    %c159 = arith.constant 159 : index
    %87 = vector.load %arg10[%c0_69, %c159] : memref<8x416xf32, #tpu.memory_space<vmem>>, vector<8x128xf32>
    %c0_i32_70 = arith.constant 0 : i32
    %88 = arith.sitofp %c0_i32_70 : i32 to f32
    %89 = vector.shape_cast %52 : vector<1x128xi1> to vector<1x128xi1>
    %90 = vector.broadcast %89 : vector<1x128xi1> to vector<8x128xi1>
    %91 = vector.broadcast %88 : f32 to vector<8x128xf32>
    %92 = arith.select %90, %87, %91 : vector<8x128xi1>, vector<8x128xf32>
    %c48 = arith.constant 48 : index
    %c0_71 = arith.constant 0 : index
    %93 = vector.load %arg11[%c48, %c0_71] : memref<72x128xf32, #tpu.memory_space<vmem>>, vector<8x128xf32>
    tpu.vector_store %arg11[%c48, %c0_71], %92 {strides = array<i32>} : memref<72x128xf32, #tpu.memory_space<vmem>>, vector<8x128xf32>,
    %c0_72 = arith.constant 0 : index
    %c160_73 = arith.constant 160 : index
    %94 = vector.load %arg10[%c0_72, %c160_73] : memref<8x416xf32, #tpu.memory_space<vmem>>, vector<8x128xf32>
    %c56 = arith.constant 56 : index
    %c0_74 = arith.constant 0 : index
    %95 = vector.load %arg11[%c56, %c0_74] : memref<72x128xf32, #tpu.memory_space<vmem>>, vector<8x128xf32>
    tpu.vector_store %arg11[%c56, %c0_74], %94 {strides = array<i32>} : memref<72x128xf32, #tpu.memory_space<vmem>>, vector<8x128xf32>,
    %c0_75 = arith.constant 0 : index
    %c161 = arith.constant 161 : index
    %96 = vector.load %arg10[%c0_75, %c161] : memref<8x416xf32, #tpu.memory_space<vmem>>, vector<8x128xf32>
    %c0_i32_76 = arith.constant 0 : i32
    %97 = arith.sitofp %c0_i32_76 : i32 to f32
    %98 = vector.shape_cast %54 : vector<1x128xi1> to vector<1x128xi1>
    %99 = vector.broadcast %98 : vector<1x128xi1> to vector<8x128xi1>
    %100 = vector.broadcast %97 : f32 to vector<8x128xf32>
    %101 = arith.select %99, %96, %100 : vector<8x128xi1>, vector<8x128xf32>
    %c64 = arith.constant 64 : index
    %c0_77 = arith.constant 0 : index
    %102 = vector.load %arg11[%c64, %c0_77] : memref<72x128xf32, #tpu.memory_space<vmem>>, vector<8x128xf32>
    tpu.vector_store %arg11[%c64, %c0_77], %101 {strides = array<i32>} : memref<72x128xf32, #tpu.memory_space<vmem>>, vector<8x128xf32>,
    %c0_78 = arith.constant 0 : index
    %c0_79 = arith.constant 0 : index
    %103 = vector.load %arg5[%c0_78, %c0_79] : memref<16x72xf32, #tpu.memory_space<vmem>>, vector<16x72xf32>
    %c0_80 = arith.constant 0 : index
    %c0_81 = arith.constant 0 : index
    %104 = vector.load %arg11[%c0_80, %c0_81] : memref<72x128xf32, #tpu.memory_space<vmem>>, vector<72x128xf32>
    %cst_82 = arith.constant dense<0.000000e+00> : vector<16x128xf32>
    %105 = tpu.matmul %103, %104, %cst_82 {dimension_numbers = #tpu.dot_dimension_numbers<[1], [0], [0], [1], [0, 0, 1, 1], [], []>} : vector<16x72xf32>, vector<72x128xf32>, vector<16x128xf32> -> vector<16x128xf32>
    %c0_83 = arith.constant 0 : index
    %c0_84 = arith.constant 0 : index
    %106 = vector.load %arg6[%c0_83, %c0_84] : memref<16x1xf32, #tpu.memory_space<vmem>>, vector<16x1xf32>
    %107 = vector.broadcast %106 : vector<16x1xf32> to vector<16x128xf32>
    %108 = arith.addf %105, %107 : vector<16x128xf32>
    %c0_85 = arith.constant 0 : index
    %109 = memref.load %arg8[%c0_85] : memref<1xf32, #tpu.memory_space<smem>>
    %cst_86 = arith.constant 0.000000e+00 : f32
    %110 = vector.broadcast %cst_86 : f32 to vector<16x128xf32>
    %111 = arith.cmpf oge, %108, %110 : vector<16x128xf32>
    %112 = vector.broadcast %109 : f32 to vector<16x128xf32>
    %113 = arith.mulf %112, %108 : vector<16x128xf32>
    %114 = arith.select %111, %108, %113 : vector<16x128xi1>, vector<16x128xf32>
    %c0_87 = arith.constant 0 : index
    %c0_88 = arith.constant 0 : index
    %115 = vector.load %arg12[%c0_87, %c0_88] : memref<16x128xf32, #tpu.memory_space<vmem>>, vector<16x128xf32>
    tpu.vector_store %arg12[%c0_87, %c0_88], %114 {strides = array<i32>} : memref<16x128xf32, #tpu.memory_space<vmem>>, vector<16x128xf32>,
    %c0_89 = arith.constant 0 : index
    %c0_90 = arith.constant 0 : index
    %116 = vector.load %arg12[%c0_89, %c0_90] : memref<16x128xf32, #tpu.memory_space<vmem>>, vector<4x16xf32>
    %c0_91 = arith.constant 0 : index
    %c0_92 = arith.constant 0 : index
    %c0_93 = arith.constant 0 : index
    %117 = vector.load %arg7[%c0_91, %c0_92, %c0_93] : memref<2x16x32xf32, #tpu.memory_space<vmem>>, vector<1x16x32xf32>
    %118 = vector.shape_cast %117 : vector<1x16x32xf32> to vector<16x32xf32>
    %cst_94 = arith.constant dense<0.000000e+00> : vector<4x32xf32>
    %119 = tpu.matmul %116, %118, %cst_94 {dimension_numbers = #tpu.dot_dimension_numbers<[1], [0], [0], [1], [0, 0, 1, 1], [], []>} : vector<4x16xf32>, vector<16x32xf32>, vector<4x32xf32> -> vector<4x32xf32>
    %c8_95 = arith.constant 8 : index
    %c0_96 = arith.constant 0 : index
    %120 = vector.load %arg12[%c8_95, %c0_96] : memref<16x128xf32, #tpu.memory_space<vmem>>, vector<4x16xf32>
    %c1_97 = arith.constant 1 : index
    %c0_98 = arith.constant 0 : index
    %c0_99 = arith.constant 0 : index
    %121 = vector.load %arg7[%c1_97, %c0_98, %c0_99] : memref<2x16x32xf32, #tpu.memory_space<vmem>>, vector<1x16x32xf32>
    %122 = vector.shape_cast %121 : vector<1x16x32xf32> to vector<16x32xf32>
    %cst_100 = arith.constant dense<0.000000e+00> : vector<4x32xf32>
    %123 = tpu.matmul %120, %122, %cst_100 {dimension_numbers = #tpu.dot_dimension_numbers<[1], [0], [0], [1], [0, 0, 1, 1], [], []>} : vector<4x16xf32>, vector<16x32xf32>, vector<4x32xf32> -> vector<4x32xf32>
    %124 = arith.addf %119, %123 : vector<4x32xf32>
    %c0_101 = arith.constant 0 : index
    %c0_102 = arith.constant 0 : index
    %c0_103 = arith.constant 0 : index
    %c0_104 = arith.constant 0 : index
    %125 = vector.load %arg9[%c0_101, %c0_102, %c0_103, %c0_104] : memref<1x4x16x32xf32, #tpu.memory_space<vmem>>, vector<1x4x1x32xf32>
    %126 = vector.shape_cast %125 : vector<1x4x1x32xf32> to vector<4x32xf32>
    %127 = vector.shape_cast %124 : vector<4x32xf32> to vector<1x4x1x32xf32>
    tpu.vector_store %arg9[%c0_101, %c0_102, %c0_103, %c0_104], %127 {strides = array<i32>} : memref<1x4x16x32xf32, #tpu.memory_space<vmem>>, vector<1x4x1x32xf32>,
    %c4_105 = arith.constant 4 : index
    %c0_106 = arith.constant 0 : index
    %128 = vector.load %arg12[%c4_105, %c0_106] : memref<16x128xf32, #tpu.memory_space<vmem>>, vector<4x16xf32>
    %c0_107 = arith.constant 0 : index
    %c0_108 = arith.constant 0 : index
    %c0_109 = arith.constant 0 : index
    %129 = vector.load %arg7[%c0_107, %c0_108, %c0_109] : memref<2x16x32xf32, #tpu.memory_space<vmem>>, vector<1x16x32xf32>
    %130 = vector.shape_cast %129 : vector<1x16x32xf32> to vector<16x32xf32>
    %cst_110 = arith.constant dense<0.000000e+00> : vector<4x32xf32>
    %131 = tpu.matmul %128, %130, %cst_110 {dimension_numbers = #tpu.dot_dimension_numbers<[1], [0], [0], [1], [0, 0, 1, 1], [], []>} : vector<4x16xf32>, vector<16x32xf32>, vector<4x32xf32> -> vector<4x32xf32>
    %c12 = arith.constant 12 : index
    %c0_111 = arith.constant 0 : index
    %132 = vector.load %arg12[%c12, %c0_111] : memref<16x128xf32, #tpu.memory_space<vmem>>, vector<4x16xf32>
    %c1_112 = arith.constant 1 : index
    %c0_113 = arith.constant 0 : index
    %c0_114 = arith.constant 0 : index
    %133 = vector.load %arg7[%c1_112, %c0_113, %c0_114] : memref<2x16x32xf32, #tpu.memory_space<vmem>>, vector<1x16x32xf32>
    %134 = vector.shape_cast %133 : vector<1x16x32xf32> to vector<16x32xf32>
    %cst_115 = arith.constant dense<0.000000e+00> : vector<4x32xf32>
    %135 = tpu.matmul %132, %134, %cst_115 {dimension_numbers = #tpu.dot_dimension_numbers<[1], [0], [0], [1], [0, 0, 1, 1], [], []>} : vector<4x16xf32>, vector<16x32xf32>, vector<4x32xf32> -> vector<4x32xf32>
    %136 = arith.addf %131, %135 : vector<4x32xf32>
    %c0_116 = arith.constant 0 : index
    %c0_117 = arith.constant 0 : index
    %c1_118 = arith.constant 1 : index
    %c0_119 = arith.constant 0 : index
    %137 = vector.load %arg9[%c0_116, %c0_117, %c1_118, %c0_119] : memref<1x4x16x32xf32, #tpu.memory_space<vmem>>, vector<1x4x1x32xf32>
    %138 = vector.shape_cast %137 : vector<1x4x1x32xf32> to vector<4x32xf32>
    %139 = vector.shape_cast %136 : vector<4x32xf32> to vector<1x4x1x32xf32>
    tpu.vector_store %arg9[%c0_116, %c0_117, %c1_118, %c0_119], %139 {strides = array<i32>} : memref<1x4x16x32xf32, #tpu.memory_space<vmem>>, vector<1x4x1x32xf32>,
    %c0_120 = arith.constant 0 : index
    %c16_121 = arith.constant 16 : index
    %140 = vector.load %arg12[%c0_120, %c16_121] : memref<16x128xf32, #tpu.memory_space<vmem>>, vector<4x16xf32>
    %c0_122 = arith.constant 0 : index
    %c0_123 = arith.constant 0 : index
    %c0_124 = arith.constant 0 : index
    %141 = vector.load %arg7[%c0_122, %c0_123, %c0_124] : memref<2x16x32xf32, #tpu.memory_space<vmem>>, vector<1x16x32xf32>
    %142 = vector.shape_cast %141 : vector<1x16x32xf32> to vector<16x32xf32>
    %cst_125 = arith.constant dense<0.000000e+00> : vector<4x32xf32>
    %143 = tpu.matmul %140, %142, %cst_125 {dimension_numbers = #tpu.dot_dimension_numbers<[1], [0], [0], [1], [0, 0, 1, 1], [], []>} : vector<4x16xf32>, vector<16x32xf32>, vector<4x32xf32> -> vector<4x32xf32>
    %c8_126 = arith.constant 8 : index
    %c16_127 = arith.constant 16 : index
    %144 = vector.load %arg12[%c8_126, %c16_127] : memref<16x128xf32, #tpu.memory_space<vmem>>, vector<4x16xf32>
    %c1_128 = arith.constant 1 : index
    %c0_129 = arith.constant 0 : index
    %c0_130 = arith.constant 0 : index
    %145 = vector.load %arg7[%c1_128, %c0_129, %c0_130] : memref<2x16x32xf32, #tpu.memory_space<vmem>>, vector<1x16x32xf32>
    %146 = vector.shape_cast %145 : vector<1x16x32xf32> to vector<16x32xf32>
    %cst_131 = arith.constant dense<0.000000e+00> : vector<4x32xf32>
    %147 = tpu.matmul %144, %146, %cst_131 {dimension_numbers = #tpu.dot_dimension_numbers<[1], [0], [0], [1], [0, 0, 1, 1], [], []>} : vector<4x16xf32>, vector<16x32xf32>, vector<4x32xf32> -> vector<4x32xf32>
    %148 = arith.addf %143, %147 : vector<4x32xf32>
    %c0_132 = arith.constant 0 : index
    %c0_133 = arith.constant 0 : index
    %c2_134 = arith.constant 2 : index
    %c0_135 = arith.constant 0 : index
    %149 = vector.load %arg9[%c0_132, %c0_133, %c2_134, %c0_135] : memref<1x4x16x32xf32, #tpu.memory_space<vmem>>, vector<1x4x1x32xf32>
    %150 = vector.shape_cast %149 : vector<1x4x1x32xf32> to vector<4x32xf32>
    %151 = vector.shape_cast %148 : vector<4x32xf32> to vector<1x4x1x32xf32>
    tpu.vector_store %arg9[%c0_132, %c0_133, %c2_134, %c0_135], %151 {strides = array<i32>} : memref<1x4x16x32xf32, #tpu.memory_space<vmem>>, vector<1x4x1x32xf32>,
    %c4_136 = arith.constant 4 : index
    %c16_137 = arith.constant 16 : index
    %152 = vector.load %arg12[%c4_136, %c16_137] : memref<16x128xf32, #tpu.memory_space<vmem>>, vector<4x16xf32>
    %c0_138 = arith.constant 0 : index
    %c0_139 = arith.constant 0 : index
    %c0_140 = arith.constant 0 : index
    %153 = vector.load %arg7[%c0_138, %c0_139, %c0_140] : memref<2x16x32xf32, #tpu.memory_space<vmem>>, vector<1x16x32xf32>
    %154 = vector.shape_cast %153 : vector<1x16x32xf32> to vector<16x32xf32>
    %cst_141 = arith.constant dense<0.000000e+00> : vector<4x32xf32>
    %155 = tpu.matmul %152, %154, %cst_141 {dimension_numbers = #tpu.dot_dimension_numbers<[1], [0], [0], [1], [0, 0, 1, 1], [], []>} : vector<4x16xf32>, vector<16x32xf32>, vector<4x32xf32> -> vector<4x32xf32>
    %c12_142 = arith.constant 12 : index
    %c16_143 = arith.constant 16 : index
    %156 = vector.load %arg12[%c12_142, %c16_143] : memref<16x128xf32, #tpu.memory_space<vmem>>, vector<4x16xf32>
    %c1_144 = arith.constant 1 : index
    %c0_145 = arith.constant 0 : index
    %c0_146 = arith.constant 0 : index
    %157 = vector.load %arg7[%c1_144, %c0_145, %c0_146] : memref<2x16x32xf32, #tpu.memory_space<vmem>>, vector<1x16x32xf32>
    %158 = vector.shape_cast %157 : vector<1x16x32xf32> to vector<16x32xf32>
    %cst_147 = arith.constant dense<0.000000e+00> : vector<4x32xf32>
    %159 = tpu.matmul %156, %158, %cst_147 {dimension_numbers = #tpu.dot_dimension_numbers<[1], [0], [0], [1], [0, 0, 1, 1], [], []>} : vector<4x16xf32>, vector<16x32xf32>, vector<4x32xf32> -> vector<4x32xf32>
    %160 = arith.addf %155, %159 : vector<4x32xf32>
    %c0_148 = arith.constant 0 : index
    %c0_149 = arith.constant 0 : index
    %c3_150 = arith.constant 3 : index
    %c0_151 = arith.constant 0 : index
    %161 = vector.load %arg9[%c0_148, %c0_149, %c3_150, %c0_151] : memref<1x4x16x32xf32, #tpu.memory_space<vmem>>, vector<1x4x1x32xf32>
    %162 = vector.shape_cast %161 : vector<1x4x1x32xf32> to vector<4x32xf32>
    %163 = vector.shape_cast %160 : vector<4x32xf32> to vector<1x4x1x32xf32>
    tpu.vector_store %arg9[%c0_148, %c0_149, %c3_150, %c0_151], %163 {strides = array<i32>} : memref<1x4x16x32xf32, #tpu.memory_space<vmem>>, vector<1x4x1x32xf32>,
    %c0_152 = arith.constant 0 : index
    %c32_153 = arith.constant 32 : index
    %164 = vector.load %arg12[%c0_152, %c32_153] : memref<16x128xf32, #tpu.memory_space<vmem>>, vector<4x16xf32>
    %c0_154 = arith.constant 0 : index
    %c0_155 = arith.constant 0 : index
    %c0_156 = arith.constant 0 : index
    %165 = vector.load %arg7[%c0_154, %c0_155, %c0_156] : memref<2x16x32xf32, #tpu.memory_space<vmem>>, vector<1x16x32xf32>
    %166 = vector.shape_cast %165 : vector<1x16x32xf32> to vector<16x32xf32>
    %cst_157 = arith.constant dense<0.000000e+00> : vector<4x32xf32>
    %167 = tpu.matmul %164, %166, %cst_157 {dimension_numbers = #tpu.dot_dimension_numbers<[1], [0], [0], [1], [0, 0, 1, 1], [], []>} : vector<4x16xf32>, vector<16x32xf32>, vector<4x32xf32> -> vector<4x32xf32>
    %c8_158 = arith.constant 8 : index
    %c32_159 = arith.constant 32 : index
    %168 = vector.load %arg12[%c8_158, %c32_159] : memref<16x128xf32, #tpu.memory_space<vmem>>, vector<4x16xf32>
    %c1_160 = arith.constant 1 : index
    %c0_161 = arith.constant 0 : index
    %c0_162 = arith.constant 0 : index
    %169 = vector.load %arg7[%c1_160, %c0_161, %c0_162] : memref<2x16x32xf32, #tpu.memory_space<vmem>>, vector<1x16x32xf32>
    %170 = vector.shape_cast %169 : vector<1x16x32xf32> to vector<16x32xf32>
    %cst_163 = arith.constant dense<0.000000e+00> : vector<4x32xf32>
    %171 = tpu.matmul %168, %170, %cst_163 {dimension_numbers = #tpu.dot_dimension_numbers<[1], [0], [0], [1], [0, 0, 1, 1], [], []>} : vector<4x16xf32>, vector<16x32xf32>, vector<4x32xf32> -> vector<4x32xf32>
    %172 = arith.addf %167, %171 : vector<4x32xf32>
    %c0_164 = arith.constant 0 : index
    %c0_165 = arith.constant 0 : index
    %c4_166 = arith.constant 4 : index
    %c0_167 = arith.constant 0 : index
    %173 = vector.load %arg9[%c0_164, %c0_165, %c4_166, %c0_167] : memref<1x4x16x32xf32, #tpu.memory_space<vmem>>, vector<1x4x1x32xf32>
    %174 = vector.shape_cast %173 : vector<1x4x1x32xf32> to vector<4x32xf32>
    %175 = vector.shape_cast %172 : vector<4x32xf32> to vector<1x4x1x32xf32>
    tpu.vector_store %arg9[%c0_164, %c0_165, %c4_166, %c0_167], %175 {strides = array<i32>} : memref<1x4x16x32xf32, #tpu.memory_space<vmem>>, vector<1x4x1x32xf32>,
    %c4_168 = arith.constant 4 : index
    %c32_169 = arith.constant 32 : index
    %176 = vector.load %arg12[%c4_168, %c32_169] : memref<16x128xf32, #tpu.memory_space<vmem>>, vector<4x16xf32>
    %c0_170 = arith.constant 0 : index
    %c0_171 = arith.constant 0 : index
    %c0_172 = arith.constant 0 : index
    %177 = vector.load %arg7[%c0_170, %c0_171, %c0_172] : memref<2x16x32xf32, #tpu.memory_space<vmem>>, vector<1x16x32xf32>
    %178 = vector.shape_cast %177 : vector<1x16x32xf32> to vector<16x32xf32>
    %cst_173 = arith.constant dense<0.000000e+00> : vector<4x32xf32>
    %179 = tpu.matmul %176, %178, %cst_173 {dimension_numbers = #tpu.dot_dimension_numbers<[1], [0], [0], [1], [0, 0, 1, 1], [], []>} : vector<4x16xf32>, vector<16x32xf32>, vector<4x32xf32> -> vector<4x32xf32>
    %c12_174 = arith.constant 12 : index
    %c32_175 = arith.constant 32 : index
    %180 = vector.load %arg12[%c12_174, %c32_175] : memref<16x128xf32, #tpu.memory_space<vmem>>, vector<4x16xf32>
    %c1_176 = arith.constant 1 : index
    %c0_177 = arith.constant 0 : index
    %c0_178 = arith.constant 0 : index
    %181 = vector.load %arg7[%c1_176, %c0_177, %c0_178] : memref<2x16x32xf32, #tpu.memory_space<vmem>>, vector<1x16x32xf32>
    %182 = vector.shape_cast %181 : vector<1x16x32xf32> to vector<16x32xf32>
    %cst_179 = arith.constant dense<0.000000e+00> : vector<4x32xf32>
    %183 = tpu.matmul %180, %182, %cst_179 {dimension_numbers = #tpu.dot_dimension_numbers<[1], [0], [0], [1], [0, 0, 1, 1], [], []>} : vector<4x16xf32>, vector<16x32xf32>, vector<4x32xf32> -> vector<4x32xf32>
    %184 = arith.addf %179, %183 : vector<4x32xf32>
    %c0_180 = arith.constant 0 : index
    %c0_181 = arith.constant 0 : index
    %c5_182 = arith.constant 5 : index
    %c0_183 = arith.constant 0 : index
    %185 = vector.load %arg9[%c0_180, %c0_181, %c5_182, %c0_183] : memref<1x4x16x32xf32, #tpu.memory_space<vmem>>, vector<1x4x1x32xf32>
    %186 = vector.shape_cast %185 : vector<1x4x1x32xf32> to vector<4x32xf32>
    %187 = vector.shape_cast %184 : vector<4x32xf32> to vector<1x4x1x32xf32>
    tpu.vector_store %arg9[%c0_180, %c0_181, %c5_182, %c0_183], %187 {strides = array<i32>} : memref<1x4x16x32xf32, #tpu.memory_space<vmem>>, vector<1x4x1x32xf32>,
    %c0_184 = arith.constant 0 : index
    %c48_185 = arith.constant 48 : index
    %188 = vector.load %arg12[%c0_184, %c48_185] : memref<16x128xf32, #tpu.memory_space<vmem>>, vector<4x16xf32>
    %c0_186 = arith.constant 0 : index
    %c0_187 = arith.constant 0 : index
    %c0_188 = arith.constant 0 : index
    %189 = vector.load %arg7[%c0_186, %c0_187, %c0_188] : memref<2x16x32xf32, #tpu.memory_space<vmem>>, vector<1x16x32xf32>
    %190 = vector.shape_cast %189 : vector<1x16x32xf32> to vector<16x32xf32>
    %cst_189 = arith.constant dense<0.000000e+00> : vector<4x32xf32>
    %191 = tpu.matmul %188, %190, %cst_189 {dimension_numbers = #tpu.dot_dimension_numbers<[1], [0], [0], [1], [0, 0, 1, 1], [], []>} : vector<4x16xf32>, vector<16x32xf32>, vector<4x32xf32> -> vector<4x32xf32>
    %c8_190 = arith.constant 8 : index
    %c48_191 = arith.constant 48 : index
    %192 = vector.load %arg12[%c8_190, %c48_191] : memref<16x128xf32, #tpu.memory_space<vmem>>, vector<4x16xf32>
    %c1_192 = arith.constant 1 : index
    %c0_193 = arith.constant 0 : index
    %c0_194 = arith.constant 0 : index
    %193 = vector.load %arg7[%c1_192, %c0_193, %c0_194] : memref<2x16x32xf32, #tpu.memory_space<vmem>>, vector<1x16x32xf32>
    %194 = vector.shape_cast %193 : vector<1x16x32xf32> to vector<16x32xf32>
    %cst_195 = arith.constant dense<0.000000e+00> : vector<4x32xf32>
    %195 = tpu.matmul %192, %194, %cst_195 {dimension_numbers = #tpu.dot_dimension_numbers<[1], [0], [0], [1], [0, 0, 1, 1], [], []>} : vector<4x16xf32>, vector<16x32xf32>, vector<4x32xf32> -> vector<4x32xf32>
    %196 = arith.addf %191, %195 : vector<4x32xf32>
    %c0_196 = arith.constant 0 : index
    %c0_197 = arith.constant 0 : index
    %c6_198 = arith.constant 6 : index
    %c0_199 = arith.constant 0 : index
    %197 = vector.load %arg9[%c0_196, %c0_197, %c6_198, %c0_199] : memref<1x4x16x32xf32, #tpu.memory_space<vmem>>, vector<1x4x1x32xf32>
    %198 = vector.shape_cast %197 : vector<1x4x1x32xf32> to vector<4x32xf32>
    %199 = vector.shape_cast %196 : vector<4x32xf32> to vector<1x4x1x32xf32>
    tpu.vector_store %arg9[%c0_196, %c0_197, %c6_198, %c0_199], %199 {strides = array<i32>} : memref<1x4x16x32xf32, #tpu.memory_space<vmem>>, vector<1x4x1x32xf32>,
    %c4_200 = arith.constant 4 : index
    %c48_201 = arith.constant 48 : index
    %200 = vector.load %arg12[%c4_200, %c48_201] : memref<16x128xf32, #tpu.memory_space<vmem>>, vector<4x16xf32>
    %c0_202 = arith.constant 0 : index
    %c0_203 = arith.constant 0 : index
    %c0_204 = arith.constant 0 : index
    %201 = vector.load %arg7[%c0_202, %c0_203, %c0_204] : memref<2x16x32xf32, #tpu.memory_space<vmem>>, vector<1x16x32xf32>
    %202 = vector.shape_cast %201 : vector<1x16x32xf32> to vector<16x32xf32>
    %cst_205 = arith.constant dense<0.000000e+00> : vector<4x32xf32>
    %203 = tpu.matmul %200, %202, %cst_205 {dimension_numbers = #tpu.dot_dimension_numbers<[1], [0], [0], [1], [0, 0, 1, 1], [], []>} : vector<4x16xf32>, vector<16x32xf32>, vector<4x32xf32> -> vector<4x32xf32>
    %c12_206 = arith.constant 12 : index
    %c48_207 = arith.constant 48 : index
    %204 = vector.load %arg12[%c12_206, %c48_207] : memref<16x128xf32, #tpu.memory_space<vmem>>, vector<4x16xf32>
    %c1_208 = arith.constant 1 : index
    %c0_209 = arith.constant 0 : index
    %c0_210 = arith.constant 0 : index
    %205 = vector.load %arg7[%c1_208, %c0_209, %c0_210] : memref<2x16x32xf32, #tpu.memory_space<vmem>>, vector<1x16x32xf32>
    %206 = vector.shape_cast %205 : vector<1x16x32xf32> to vector<16x32xf32>
    %cst_211 = arith.constant dense<0.000000e+00> : vector<4x32xf32>
    %207 = tpu.matmul %204, %206, %cst_211 {dimension_numbers = #tpu.dot_dimension_numbers<[1], [0], [0], [1], [0, 0, 1, 1], [], []>} : vector<4x16xf32>, vector<16x32xf32>, vector<4x32xf32> -> vector<4x32xf32>
    %208 = arith.addf %203, %207 : vector<4x32xf32>
    %c0_212 = arith.constant 0 : index
    %c0_213 = arith.constant 0 : index
    %c7_214 = arith.constant 7 : index
    %c0_215 = arith.constant 0 : index
    %209 = vector.load %arg9[%c0_212, %c0_213, %c7_214, %c0_215] : memref<1x4x16x32xf32, #tpu.memory_space<vmem>>, vector<1x4x1x32xf32>
    %210 = vector.shape_cast %209 : vector<1x4x1x32xf32> to vector<4x32xf32>
    %211 = vector.shape_cast %208 : vector<4x32xf32> to vector<1x4x1x32xf32>
    tpu.vector_store %arg9[%c0_212, %c0_213, %c7_214, %c0_215], %211 {strides = array<i32>} : memref<1x4x16x32xf32, #tpu.memory_space<vmem>>, vector<1x4x1x32xf32>,
    %c0_216 = arith.constant 0 : index
    %c64_217 = arith.constant 64 : index
    %212 = vector.load %arg12[%c0_216, %c64_217] : memref<16x128xf32, #tpu.memory_space<vmem>>, vector<4x16xf32>
    %c0_218 = arith.constant 0 : index
    %c0_219 = arith.constant 0 : index
    %c0_220 = arith.constant 0 : index
    %213 = vector.load %arg7[%c0_218, %c0_219, %c0_220] : memref<2x16x32xf32, #tpu.memory_space<vmem>>, vector<1x16x32xf32>
    %214 = vector.shape_cast %213 : vector<1x16x32xf32> to vector<16x32xf32>
    %cst_221 = arith.constant dense<0.000000e+00> : vector<4x32xf32>
    %215 = tpu.matmul %212, %214, %cst_221 {dimension_numbers = #tpu.dot_dimension_numbers<[1], [0], [0], [1], [0, 0, 1, 1], [], []>} : vector<4x16xf32>, vector<16x32xf32>, vector<4x32xf32> -> vector<4x32xf32>
    %c8_222 = arith.constant 8 : index
    %c64_223 = arith.constant 64 : index
    %216 = vector.load %arg12[%c8_222, %c64_223] : memref<16x128xf32, #tpu.memory_space<vmem>>, vector<4x16xf32>
    %c1_224 = arith.constant 1 : index
    %c0_225 = arith.constant 0 : index
    %c0_226 = arith.constant 0 : index
    %217 = vector.load %arg7[%c1_224, %c0_225, %c0_226] : memref<2x16x32xf32, #tpu.memory_space<vmem>>, vector<1x16x32xf32>
    %218 = vector.shape_cast %217 : vector<1x16x32xf32> to vector<16x32xf32>
    %cst_227 = arith.constant dense<0.000000e+00> : vector<4x32xf32>
    %219 = tpu.matmul %216, %218, %cst_227 {dimension_numbers = #tpu.dot_dimension_numbers<[1], [0], [0], [1], [0, 0, 1, 1], [], []>} : vector<4x16xf32>, vector<16x32xf32>, vector<4x32xf32> -> vector<4x32xf32>
    %220 = arith.addf %215, %219 : vector<4x32xf32>
    %c0_228 = arith.constant 0 : index
    %c0_229 = arith.constant 0 : index
    %c8_230 = arith.constant 8 : index
    %c0_231 = arith.constant 0 : index
    %221 = vector.load %arg9[%c0_228, %c0_229, %c8_230, %c0_231] : memref<1x4x16x32xf32, #tpu.memory_space<vmem>>, vector<1x4x1x32xf32>
    %222 = vector.shape_cast %221 : vector<1x4x1x32xf32> to vector<4x32xf32>
    %223 = vector.shape_cast %220 : vector<4x32xf32> to vector<1x4x1x32xf32>
    tpu.vector_store %arg9[%c0_228, %c0_229, %c8_230, %c0_231], %223 {strides = array<i32>} : memref<1x4x16x32xf32, #tpu.memory_space<vmem>>, vector<1x4x1x32xf32>,
    %c4_232 = arith.constant 4 : index
    %c64_233 = arith.constant 64 : index
    %224 = vector.load %arg12[%c4_232, %c64_233] : memref<16x128xf32, #tpu.memory_space<vmem>>, vector<4x16xf32>
    %c0_234 = arith.constant 0 : index
    %c0_235 = arith.constant 0 : index
    %c0_236 = arith.constant 0 : index
    %225 = vector.load %arg7[%c0_234, %c0_235, %c0_236] : memref<2x16x32xf32, #tpu.memory_space<vmem>>, vector<1x16x32xf32>
    %226 = vector.shape_cast %225 : vector<1x16x32xf32> to vector<16x32xf32>
    %cst_237 = arith.constant dense<0.000000e+00> : vector<4x32xf32>
    %227 = tpu.matmul %224, %226, %cst_237 {dimension_numbers = #tpu.dot_dimension_numbers<[1], [0], [0], [1], [0, 0, 1, 1], [], []>} : vector<4x16xf32>, vector<16x32xf32>, vector<4x32xf32> -> vector<4x32xf32>
    %c12_238 = arith.constant 12 : index
    %c64_239 = arith.constant 64 : index
    %228 = vector.load %arg12[%c12_238, %c64_239] : memref<16x128xf32, #tpu.memory_space<vmem>>, vector<4x16xf32>
    %c1_240 = arith.constant 1 : index
    %c0_241 = arith.constant 0 : index
    %c0_242 = arith.constant 0 : index
    %229 = vector.load %arg7[%c1_240, %c0_241, %c0_242] : memref<2x16x32xf32, #tpu.memory_space<vmem>>, vector<1x16x32xf32>
    %230 = vector.shape_cast %229 : vector<1x16x32xf32> to vector<16x32xf32>
    %cst_243 = arith.constant dense<0.000000e+00> : vector<4x32xf32>
    %231 = tpu.matmul %228, %230, %cst_243 {dimension_numbers = #tpu.dot_dimension_numbers<[1], [0], [0], [1], [0, 0, 1, 1], [], []>} : vector<4x16xf32>, vector<16x32xf32>, vector<4x32xf32> -> vector<4x32xf32>
    %232 = arith.addf %227, %231 : vector<4x32xf32>
    %c0_244 = arith.constant 0 : index
    %c0_245 = arith.constant 0 : index
    %c9 = arith.constant 9 : index
    %c0_246 = arith.constant 0 : index
    %233 = vector.load %arg9[%c0_244, %c0_245, %c9, %c0_246] : memref<1x4x16x32xf32, #tpu.memory_space<vmem>>, vector<1x4x1x32xf32>
    %234 = vector.shape_cast %233 : vector<1x4x1x32xf32> to vector<4x32xf32>
    %235 = vector.shape_cast %232 : vector<4x32xf32> to vector<1x4x1x32xf32>
    tpu.vector_store %arg9[%c0_244, %c0_245, %c9, %c0_246], %235 {strides = array<i32>} : memref<1x4x16x32xf32, #tpu.memory_space<vmem>>, vector<1x4x1x32xf32>,
    %c0_247 = arith.constant 0 : index
    %c80 = arith.constant 80 : index
    %236 = vector.load %arg12[%c0_247, %c80] : memref<16x128xf32, #tpu.memory_space<vmem>>, vector<4x16xf32>
    %c0_248 = arith.constant 0 : index
    %c0_249 = arith.constant 0 : index
    %c0_250 = arith.constant 0 : index
    %237 = vector.load %arg7[%c0_248, %c0_249, %c0_250] : memref<2x16x32xf32, #tpu.memory_space<vmem>>, vector<1x16x32xf32>
    %238 = vector.shape_cast %237 : vector<1x16x32xf32> to vector<16x32xf32>
    %cst_251 = arith.constant dense<0.000000e+00> : vector<4x32xf32>
    %239 = tpu.matmul %236, %238, %cst_251 {dimension_numbers = #tpu.dot_dimension_numbers<[1], [0], [0], [1], [0, 0, 1, 1], [], []>} : vector<4x16xf32>, vector<16x32xf32>, vector<4x32xf32> -> vector<4x32xf32>
    %c8_252 = arith.constant 8 : index
    %c80_253 = arith.constant 80 : index
    %240 = vector.load %arg12[%c8_252, %c80_253] : memref<16x128xf32, #tpu.memory_space<vmem>>, vector<4x16xf32>
    %c1_254 = arith.constant 1 : index
    %c0_255 = arith.constant 0 : index
    %c0_256 = arith.constant 0 : index
    %241 = vector.load %arg7[%c1_254, %c0_255, %c0_256] : memref<2x16x32xf32, #tpu.memory_space<vmem>>, vector<1x16x32xf32>
    %242 = vector.shape_cast %241 : vector<1x16x32xf32> to vector<16x32xf32>
    %cst_257 = arith.constant dense<0.000000e+00> : vector<4x32xf32>
    %243 = tpu.matmul %240, %242, %cst_257 {dimension_numbers = #tpu.dot_dimension_numbers<[1], [0], [0], [1], [0, 0, 1, 1], [], []>} : vector<4x16xf32>, vector<16x32xf32>, vector<4x32xf32> -> vector<4x32xf32>
    %244 = arith.addf %239, %243 : vector<4x32xf32>
    %c0_258 = arith.constant 0 : index
    %c0_259 = arith.constant 0 : index
    %c10 = arith.constant 10 : index
    %c0_260 = arith.constant 0 : index
    %245 = vector.load %arg9[%c0_258, %c0_259, %c10, %c0_260] : memref<1x4x16x32xf32, #tpu.memory_space<vmem>>, vector<1x4x1x32xf32>
    %246 = vector.shape_cast %245 : vector<1x4x1x32xf32> to vector<4x32xf32>
    %247 = vector.shape_cast %244 : vector<4x32xf32> to vector<1x4x1x32xf32>
    tpu.vector_store %arg9[%c0_258, %c0_259, %c10, %c0_260], %247 {strides = array<i32>} : memref<1x4x16x32xf32, #tpu.memory_space<vmem>>, vector<1x4x1x32xf32>,
    %c4_261 = arith.constant 4 : index
    %c80_262 = arith.constant 80 : index
    %248 = vector.load %arg12[%c4_261, %c80_262] : memref<16x128xf32, #tpu.memory_space<vmem>>, vector<4x16xf32>
    %c0_263 = arith.constant 0 : index
    %c0_264 = arith.constant 0 : index
    %c0_265 = arith.constant 0 : index
    %249 = vector.load %arg7[%c0_263, %c0_264, %c0_265] : memref<2x16x32xf32, #tpu.memory_space<vmem>>, vector<1x16x32xf32>
    %250 = vector.shape_cast %249 : vector<1x16x32xf32> to vector<16x32xf32>
    %cst_266 = arith.constant dense<0.000000e+00> : vector<4x32xf32>
    %251 = tpu.matmul %248, %250, %cst_266 {dimension_numbers = #tpu.dot_dimension_numbers<[1], [0], [0], [1], [0, 0, 1, 1], [], []>} : vector<4x16xf32>, vector<16x32xf32>, vector<4x32xf32> -> vector<4x32xf32>
    %c12_267 = arith.constant 12 : index
    %c80_268 = arith.constant 80 : index
    %252 = vector.load %arg12[%c12_267, %c80_268] : memref<16x128xf32, #tpu.memory_space<vmem>>, vector<4x16xf32>
    %c1_269 = arith.constant 1 : index
    %c0_270 = arith.constant 0 : index
    %c0_271 = arith.constant 0 : index
    %253 = vector.load %arg7[%c1_269, %c0_270, %c0_271] : memref<2x16x32xf32, #tpu.memory_space<vmem>>, vector<1x16x32xf32>
    %254 = vector.shape_cast %253 : vector<1x16x32xf32> to vector<16x32xf32>
    %cst_272 = arith.constant dense<0.000000e+00> : vector<4x32xf32>
    %255 = tpu.matmul %252, %254, %cst_272 {dimension_numbers = #tpu.dot_dimension_numbers<[1], [0], [0], [1], [0, 0, 1, 1], [], []>} : vector<4x16xf32>, vector<16x32xf32>, vector<4x32xf32> -> vector<4x32xf32>
    %256 = arith.addf %251, %255 : vector<4x32xf32>
    %c0_273 = arith.constant 0 : index
    %c0_274 = arith.constant 0 : index
    %c11 = arith.constant 11 : index
    %c0_275 = arith.constant 0 : index
    %257 = vector.load %arg9[%c0_273, %c0_274, %c11, %c0_275] : memref<1x4x16x32xf32, #tpu.memory_space<vmem>>, vector<1x4x1x32xf32>
    %258 = vector.shape_cast %257 : vector<1x4x1x32xf32> to vector<4x32xf32>
    %259 = vector.shape_cast %256 : vector<4x32xf32> to vector<1x4x1x32xf32>
    tpu.vector_store %arg9[%c0_273, %c0_274, %c11, %c0_275], %259 {strides = array<i32>} : memref<1x4x16x32xf32, #tpu.memory_space<vmem>>, vector<1x4x1x32xf32>,
    %c0_276 = arith.constant 0 : index
    %c96 = arith.constant 96 : index
    %260 = vector.load %arg12[%c0_276, %c96] : memref<16x128xf32, #tpu.memory_space<vmem>>, vector<4x16xf32>
    %c0_277 = arith.constant 0 : index
    %c0_278 = arith.constant 0 : index
    %c0_279 = arith.constant 0 : index
    %261 = vector.load %arg7[%c0_277, %c0_278, %c0_279] : memref<2x16x32xf32, #tpu.memory_space<vmem>>, vector<1x16x32xf32>
    %262 = vector.shape_cast %261 : vector<1x16x32xf32> to vector<16x32xf32>
    %cst_280 = arith.constant dense<0.000000e+00> : vector<4x32xf32>
    %263 = tpu.matmul %260, %262, %cst_280 {dimension_numbers = #tpu.dot_dimension_numbers<[1], [0], [0], [1], [0, 0, 1, 1], [], []>} : vector<4x16xf32>, vector<16x32xf32>, vector<4x32xf32> -> vector<4x32xf32>
    %c8_281 = arith.constant 8 : index
    %c96_282 = arith.constant 96 : index
    %264 = vector.load %arg12[%c8_281, %c96_282] : memref<16x128xf32, #tpu.memory_space<vmem>>, vector<4x16xf32>
    %c1_283 = arith.constant 1 : index
    %c0_284 = arith.constant 0 : index
    %c0_285 = arith.constant 0 : index
    %265 = vector.load %arg7[%c1_283, %c0_284, %c0_285] : memref<2x16x32xf32, #tpu.memory_space<vmem>>, vector<1x16x32xf32>
    %266 = vector.shape_cast %265 : vector<1x16x32xf32> to vector<16x32xf32>
    %cst_286 = arith.constant dense<0.000000e+00> : vector<4x32xf32>
    %267 = tpu.matmul %264, %266, %cst_286 {dimension_numbers = #tpu.dot_dimension_numbers<[1], [0], [0], [1], [0, 0, 1, 1], [], []>} : vector<4x16xf32>, vector<16x32xf32>, vector<4x32xf32> -> vector<4x32xf32>
    %268 = arith.addf %263, %267 : vector<4x32xf32>
    %c0_287 = arith.constant 0 : index
    %c0_288 = arith.constant 0 : index
    %c12_289 = arith.constant 12 : index
    %c0_290 = arith.constant 0 : index
    %269 = vector.load %arg9[%c0_287, %c0_288, %c12_289, %c0_290] : memref<1x4x16x32xf32, #tpu.memory_space<vmem>>, vector<1x4x1x32xf32>
    %270 = vector.shape_cast %269 : vector<1x4x1x32xf32> to vector<4x32xf32>
    %271 = vector.shape_cast %268 : vector<4x32xf32> to vector<1x4x1x32xf32>
    tpu.vector_store %arg9[%c0_287, %c0_288, %c12_289, %c0_290], %271 {strides = array<i32>} : memref<1x4x16x32xf32, #tpu.memory_space<vmem>>, vector<1x4x1x32xf32>,
    %c4_291 = arith.constant 4 : index
    %c96_292 = arith.constant 96 : index
    %272 = vector.load %arg12[%c4_291, %c96_292] : memref<16x128xf32, #tpu.memory_space<vmem>>, vector<4x16xf32>
    %c0_293 = arith.constant 0 : index
    %c0_294 = arith.constant 0 : index
    %c0_295 = arith.constant 0 : index
    %273 = vector.load %arg7[%c0_293, %c0_294, %c0_295] : memref<2x16x32xf32, #tpu.memory_space<vmem>>, vector<1x16x32xf32>
    %274 = vector.shape_cast %273 : vector<1x16x32xf32> to vector<16x32xf32>
    %cst_296 = arith.constant dense<0.000000e+00> : vector<4x32xf32>
    %275 = tpu.matmul %272, %274, %cst_296 {dimension_numbers = #tpu.dot_dimension_numbers<[1], [0], [0], [1], [0, 0, 1, 1], [], []>} : vector<4x16xf32>, vector<16x32xf32>, vector<4x32xf32> -> vector<4x32xf32>
    %c12_297 = arith.constant 12 : index
    %c96_298 = arith.constant 96 : index
    %276 = vector.load %arg12[%c12_297, %c96_298] : memref<16x128xf32, #tpu.memory_space<vmem>>, vector<4x16xf32>
    %c1_299 = arith.constant 1 : index
    %c0_300 = arith.constant 0 : index
    %c0_301 = arith.constant 0 : index
    %277 = vector.load %arg7[%c1_299, %c0_300, %c0_301] : memref<2x16x32xf32, #tpu.memory_space<vmem>>, vector<1x16x32xf32>
    %278 = vector.shape_cast %277 : vector<1x16x32xf32> to vector<16x32xf32>
    %cst_302 = arith.constant dense<0.000000e+00> : vector<4x32xf32>
    %279 = tpu.matmul %276, %278, %cst_302 {dimension_numbers = #tpu.dot_dimension_numbers<[1], [0], [0], [1], [0, 0, 1, 1], [], []>} : vector<4x16xf32>, vector<16x32xf32>, vector<4x32xf32> -> vector<4x32xf32>
    %280 = arith.addf %275, %279 : vector<4x32xf32>
    %c0_303 = arith.constant 0 : index
    %c0_304 = arith.constant 0 : index
    %c13 = arith.constant 13 : index
    %c0_305 = arith.constant 0 : index
    %281 = vector.load %arg9[%c0_303, %c0_304, %c13, %c0_305] : memref<1x4x16x32xf32, #tpu.memory_space<vmem>>, vector<1x4x1x32xf32>
    %282 = vector.shape_cast %281 : vector<1x4x1x32xf32> to vector<4x32xf32>
    %283 = vector.shape_cast %280 : vector<4x32xf32> to vector<1x4x1x32xf32>
    tpu.vector_store %arg9[%c0_303, %c0_304, %c13, %c0_305], %283 {strides = array<i32>} : memref<1x4x16x32xf32, #tpu.memory_space<vmem>>, vector<1x4x1x32xf32>,
    %c0_306 = arith.constant 0 : index
    %c112 = arith.constant 112 : index
    %284 = vector.load %arg12[%c0_306, %c112] : memref<16x128xf32, #tpu.memory_space<vmem>>, vector<4x16xf32>
    %c0_307 = arith.constant 0 : index
    %c0_308 = arith.constant 0 : index
    %c0_309 = arith.constant 0 : index
    %285 = vector.load %arg7[%c0_307, %c0_308, %c0_309] : memref<2x16x32xf32, #tpu.memory_space<vmem>>, vector<1x16x32xf32>
    %286 = vector.shape_cast %285 : vector<1x16x32xf32> to vector<16x32xf32>
    %cst_310 = arith.constant dense<0.000000e+00> : vector<4x32xf32>
    %287 = tpu.matmul %284, %286, %cst_310 {dimension_numbers = #tpu.dot_dimension_numbers<[1], [0], [0], [1], [0, 0, 1, 1], [], []>} : vector<4x16xf32>, vector<16x32xf32>, vector<4x32xf32> -> vector<4x32xf32>
    %c8_311 = arith.constant 8 : index
    %c112_312 = arith.constant 112 : index
    %288 = vector.load %arg12[%c8_311, %c112_312] : memref<16x128xf32, #tpu.memory_space<vmem>>, vector<4x16xf32>
    %c1_313 = arith.constant 1 : index
    %c0_314 = arith.constant 0 : index
    %c0_315 = arith.constant 0 : index
    %289 = vector.load %arg7[%c1_313, %c0_314, %c0_315] : memref<2x16x32xf32, #tpu.memory_space<vmem>>, vector<1x16x32xf32>
    %290 = vector.shape_cast %289 : vector<1x16x32xf32> to vector<16x32xf32>
    %cst_316 = arith.constant dense<0.000000e+00> : vector<4x32xf32>
    %291 = tpu.matmul %288, %290, %cst_316 {dimension_numbers = #tpu.dot_dimension_numbers<[1], [0], [0], [1], [0, 0, 1, 1], [], []>} : vector<4x16xf32>, vector<16x32xf32>, vector<4x32xf32> -> vector<4x32xf32>
    %292 = arith.addf %287, %291 : vector<4x32xf32>
    %c0_317 = arith.constant 0 : index
    %c0_318 = arith.constant 0 : index
    %c14 = arith.constant 14 : index
    %c0_319 = arith.constant 0 : index
    %293 = vector.load %arg9[%c0_317, %c0_318, %c14, %c0_319] : memref<1x4x16x32xf32, #tpu.memory_space<vmem>>, vector<1x4x1x32xf32>
    %294 = vector.shape_cast %293 : vector<1x4x1x32xf32> to vector<4x32xf32>
    %295 = vector.shape_cast %292 : vector<4x32xf32> to vector<1x4x1x32xf32>
    tpu.vector_store %arg9[%c0_317, %c0_318, %c14, %c0_319], %295 {strides = array<i32>} : memref<1x4x16x32xf32, #tpu.memory_space<vmem>>, vector<1x4x1x32xf32>,
    %c4_320 = arith.constant 4 : index
    %c112_321 = arith.constant 112 : index
    %296 = vector.load %arg12[%c4_320, %c112_321] : memref<16x128xf32, #tpu.memory_space<vmem>>, vector<4x16xf32>
    %c0_322 = arith.constant 0 : index
    %c0_323 = arith.constant 0 : index
    %c0_324 = arith.constant 0 : index
    %297 = vector.load %arg7[%c0_322, %c0_323, %c0_324] : memref<2x16x32xf32, #tpu.memory_space<vmem>>, vector<1x16x32xf32>
    %298 = vector.shape_cast %297 : vector<1x16x32xf32> to vector<16x32xf32>
    %cst_325 = arith.constant dense<0.000000e+00> : vector<4x32xf32>
    %299 = tpu.matmul %296, %298, %cst_325 {dimension_numbers = #tpu.dot_dimension_numbers<[1], [0], [0], [1], [0, 0, 1, 1], [], []>} : vector<4x16xf32>, vector<16x32xf32>, vector<4x32xf32> -> vector<4x32xf32>
    %c12_326 = arith.constant 12 : index
    %c112_327 = arith.constant 112 : index
    %300 = vector.load %arg12[%c12_326, %c112_327] : memref<16x128xf32, #tpu.memory_space<vmem>>, vector<4x16xf32>
    %c1_328 = arith.constant 1 : index
    %c0_329 = arith.constant 0 : index
    %c0_330 = arith.constant 0 : index
    %301 = vector.load %arg7[%c1_328, %c0_329, %c0_330] : memref<2x16x32xf32, #tpu.memory_space<vmem>>, vector<1x16x32xf32>
    %302 = vector.shape_cast %301 : vector<1x16x32xf32> to vector<16x32xf32>
    %cst_331 = arith.constant dense<0.000000e+00> : vector<4x32xf32>
    %303 = tpu.matmul %300, %302, %cst_331 {dimension_numbers = #tpu.dot_dimension_numbers<[1], [0], [0], [1], [0, 0, 1, 1], [], []>} : vector<4x16xf32>, vector<16x32xf32>, vector<4x32xf32> -> vector<4x32xf32>
    %304 = arith.addf %299, %303 : vector<4x32xf32>
    %c0_332 = arith.constant 0 : index
    %c0_333 = arith.constant 0 : index
    %c15 = arith.constant 15 : index
    %c0_334 = arith.constant 0 : index
    %305 = vector.load %arg9[%c0_332, %c0_333, %c15, %c0_334] : memref<1x4x16x32xf32, #tpu.memory_space<vmem>>, vector<1x4x1x32xf32>
    %306 = vector.shape_cast %305 : vector<1x4x1x32xf32> to vector<4x32xf32>
    %307 = vector.shape_cast %304 : vector<4x32xf32> to vector<1x4x1x32xf32>
    tpu.vector_store %arg9[%c0_332, %c0_333, %c15, %c0_334], %307 {strides = array<i32>} : memref<1x4x16x32xf32, #tpu.memory_space<vmem>>, vector<1x4x1x32xf32>,
    return
  }
  func.func @transform_0(%arg0: i32, %arg1: i32) -> (i32, i32, i32, i32) {
    %c0_i32 = arith.constant 0 : i32
    %c0_i32_0 = arith.constant 0 : i32
    %c0_i32_1 = arith.constant 0 : i32
    return %arg0, %c0_i32, %arg1, %c0_i32_0 : i32, i32, i32, i32
  }
  func.func @transform_1(%arg0: i32, %arg1: i32) -> (i32, i32, i32, i32) {
    %c0_i32 = arith.constant 0 : i32
    %c0_i32_0 = arith.constant 0 : i32
    %c0_i32_1 = arith.constant 0 : i32
    return %arg0, %arg1, %c0_i32, %c0_i32_0 : i32, i32, i32, i32
  }
  func.func @transform_2(%arg0: i32, %arg1: i32) -> (i32, i32, i32, i32) {
    %c0_i32 = arith.constant 0 : i32
    %c0_i32_0 = arith.constant 0 : i32
    %c0_i32_1 = arith.constant 0 : i32
    return %arg0, %arg1, %c0_i32, %c0_i32_0 : i32, i32, i32, i32
  }
  func.func @transform_3(%arg0: i32, %arg1: i32) -> (i32, i32) {
    %c0_i32 = arith.constant 0 : i32
    %c0_i32_0 = arith.constant 0 : i32
    %c0_i32_1 = arith.constant 0 : i32
    return %c0_i32, %c0_i32_0 : i32, i32
  }
  func.func @transform_4(%arg0: i32, %arg1: i32) -> (i32, i32) {
    %c0_i32 = arith.constant 0 : i32
    %c0_i32_0 = arith.constant 0 : i32
    %c0_i32_1 = arith.constant 0 : i32
    return %c0_i32, %c0_i32_0 : i32, i32
  }
  func.func @transform_5(%arg0: i32, %arg1: i32) -> (i32, i32, i32) {
    %c0_i32 = arith.constant 0 : i32
    %c0_i32_0 = arith.constant 0 : i32
    %c0_i32_1 = arith.constant 0 : i32
    %c0_i32_2 = arith.constant 0 : i32
    return %c0_i32, %c0_i32_0, %c0_i32_1 : i32, i32, i32
  }
  func.func @transform_6(%arg0: i32, %arg1: i32) -> i32 {
    %c0_i32 = arith.constant 0 : i32
    %c0_i32_0 = arith.constant 0 : i32
    return %c0_i32 : i32
  }
  func.func @transform_7(%arg0: i32, %arg1: i32) -> (i32, i32, i32, i32) {
    %c0_i32 = arith.constant 0 : i32
    %c0_i32_0 = arith.constant 0 : i32
    %c0_i32_1 = arith.constant 0 : i32
    return %arg0, %c0_i32, %arg1, %c0_i32_0 : i32, i32, i32, i32
  }
}

</mosaic_0001>

<llo_original>
// kernel: tpu_custom_call.1
$region0: #{tpu_custom_call.1}
  #allocation0 [shape = 'u32[]', space=smem, size = 0x4, offset = 0x4, fixed_abs, tag = 'smem constant byte address 0x4 - core index']
  #allocation1 [shape = 'u32[144,128]{1,0:T(1,128)}', space=vmem, size = 0x12000, scoped, tag = 'internal scratch']
  #allocation2 [shape = 'f32[8,416]{1,0:T(8,128)}', space=vmem, size = 0x4000, scoped, tag = 'scratch operand']
  #allocation3 [shape = 'f32[72,128]{1,0:T(8,128)}', space=vmem, size = 0x9000, scoped, tag = 'scratch operand']
  #allocation4 [shape = 'f32[16,128]{1,0:T(8,128)}', space=vmem, size = 0x2000, scoped, tag = 'scratch operand']
  #allocation5 [shape = 'f32[1]{0:T(128)S(6)}', space=smem, size = 0x200, scoped, tag = 'scoped memory for tpu_custom_call.1']
  #allocation15 [shape = 's32[]', space=sflag, size = 0x4, offset = 0, fixed_abs, tag = 'sflag constant byte address 0x0 - dummy sync flag']
  %s0 = inlined_call_operand.hbm [shape: f32[2,8,16,16], index: 0, kind: input, shape index: {}]
  %s1 = inlined_call_operand.hbm [shape: f32[2,2,8,16], index: 1, kind: input, shape index: {}]
  %s2 = inlined_call_operand.hbm [shape: f32[2,2,8,16], index: 2, kind: input, shape index: {}]
  %s3 = inlined_call_operand.hbm [shape: f32[16,72], index: 3, kind: input, shape index: {}]
  %s4 = inlined_call_operand.vmem [shape: f32[16,1], index: 4, kind: input, shape index: {}]
  %s5 = inlined_call_operand.vmem [shape: f32[2,16,32], index: 5, kind: input, shape index: {}]
  %s6 = inlined_call_operand.<no memory space> [shape: f32[1], index: 6, kind: input, shape index: {}]
  %s7 = inlined_call_operand.hbm [shape: f32[2,4,32,32], index: 7, kind: output, shape index: {}]
  %s8 = sld [smem:[#allocation0]]
  $region77: #{tpu_custom_call.1} parent=0
    _
  %s10 = ssub.s32 1, %s8
  %s11 = scalar_select 0, %s10, %s8
  %12 = sst [smem:[#allocation5]] %s6
  $region1: #{tpu_custom_call.1} parent=0
    #allocation6 [shape = 'u8[65536]{0}', space=vmem, size = 0x10000, scoped, tag = 'input window, operand 0']
    #allocation7 [shape = 's32[2]{0}', space=sflag, size = 0x8, scoped, tag = 'scoped memory for tpu_custom_call.1']
    #allocation8 [shape = 's32[2]{0}', space=sflag, size = 0x8, scoped, tag = 'scoped memory for tpu_custom_call.1']
    #allocation9 [shape = 'u8[8192]{0}', space=vmem, size = 0x2000, scoped, tag = 'input window, operand 1']
    #allocation10 [shape = 's32[2]{0}', space=sflag, size = 0x8, scoped, tag = 'scoped memory for tpu_custom_call.1']
    #allocation11 [shape = 'u8[8192]{0}', space=vmem, size = 0x2000, scoped, tag = 'input window, operand 2']
    #allocation12 [shape = 'u8[8192]{0}', space=vmem, size = 0x2000, scoped, tag = 'input window, operand 3, single buffered']
    #allocation13 [shape = 's32[1]{0}', space=sflag, size = 0x4, scoped, tag = 'scoped memory for tpu_custom_call.1']
    #allocation14 [shape = 'u8[65536]{0}', space=vmem, size = 0x10000, scoped, tag = 'output window, operand 0']
    %13 = vsyncpa [#allocation7], 0
    %s14 = scalar_lea.sflag [#allocation7], 1
    %15 = vsyncpa %s14, 0
    %16 = vsyncpa [#allocation10], 0
    %s17 = scalar_lea.sflag [#allocation10], 1
    %18 = vsyncpa %s17, 0
    %19 = vsyncpa [#allocation13], 0
    %20 = vsyncpa [#allocation8], 0
    %s21 = scalar_lea.sflag [#allocation8], 1
    %22 = vsyncpa %s21, 0
    loop: start=0, step=1, limit=6
    $region2: #{tpu_custom_call.1} parent=1 // loop_pre_header
      _
    $region3: #{tpu_custom_call.1} parent=1 // loop_header
      %s24 = sphi 0, %s28
      %p25 = scmp.ge.s32.totalorder %s24, 6
      %s31 = sphi 0, %s43
      %s32 = sphi 0, %s39
      %s33 = sphi 0, %s31
      %s34 = sphi 0, %s32
      %s35 = sphi 0, %s33
      %s36 = sphi 0, %s34
      %s48 = sphi 0, %s50
      %s51 = sphi 0, %s48
      %s52 = sphi 0, %s51
      %s68 = sphi 0, %s52
      %s76 = sphi 0, %s78
      %s79 = sphi 0, %s76
      %s80 = sphi 0, %s79
      %s96 = sphi 0, %s80
      %s104 = sphi 0, %s106
      %s107 = sphi 0, %s104
      %s108 = sphi 0, %s107
      %s124 = sphi 0, %s108
      %s128 = sphi 0, %s128
      %s130 = sphi 0, %s128
      %s131 = sphi 0, %s130
      %s145 = sphi 0, %s131
      %s149 = sphi 0, %s149
      %s151 = sphi 0, %s149
      %s152 = sphi 0, %s151
      %s166 = sphi 0, %s152
      %s170 = sphi 0, %s170
      %s172 = sphi 0, %s170
      %s173 = sphi 0, %s172
      %s187 = sphi 0, %s173
      %s191 = sphi 0, %s191
      %s193 = sphi 0, %s191
      %s194 = sphi 0, %s193
      %s208 = sphi 0, %s194
      %s216 = sphi 0, %s218
      %s219 = sphi 0, %s216
      %s220 = sphi 0, %s219
      %s236 = sphi 0, %s220
    $region4: #{tpu_custom_call.1} parent=1 // loop_header_branch
      %27 = sbr.rel (%p25) target = $region8
    $region5: #{tpu_custom_call.1} parent=1 // loop_body
      %s29 = ssub.s32 %s24, 1
      %s30 = ssub.s32 %s24, 2
      %s37 = sadd.s32 1, %s32
      %p38 = scmp.ge.s32.totalorder %s37, 2
      %s39 = scalar_select %p38, 0, %s37
      %s40 = sadd.s32 1, %s31
      %s41 = scalar_select %p38, %s40, %s31
      %p42 = scmp.ge.s32.totalorder %s41, 2
      %s43 = scalar_select %p42, 0, %s41
      %s44 = ssub.s32 %s31, %s43
      %s45 = ssub.s32 %s32, %s39
      %s46 = sor.u32 %s44, %s45
      %p47 = scmp.eq.s32.totalorder %s46, 0
      %s49 = sadd.s32 %s48, 1
      %s50 = scalar_select %p47, %s48, %s49
      %p53 = pneg %p47
      %p54 = scmp.eq.s32.totalorder %s24, 3
      %p55 = por %p53, %p54
      %p56 = scmp.ne.s32.totalorder %s48, %s51
      %p57 = scmp.eq.s32.totalorder %s24, 0
      %p58 = por %p56, %p57
      %p59 = scmp.ne.s32.totalorder %s48, %s51
      %p60 = scmp.eq.s32.totalorder %s29, 3
      %p61 = por %p59, %p60
      %p62 = scmp.ne.s32.totalorder %s51, %s52
      %p63 = scmp.eq.s32.totalorder %s29, 0
      %p64 = por %p62, %p63
      %p65 = scmp.ne.s32.totalorder %s51, %s52
      %p66 = scmp.eq.s32.totalorder %s30, 3
      %p67 = por %p65, %p66
      %p69 = scmp.ne.s32.totalorder %s52, %s68
      %p70 = scmp.eq.s32.totalorder %s30, 0
      %p71 = por %p69, %p70
      %s72 = ssub.s32 %s31, %s43
      %s73 = ssub.s32 %s32, %s39
      %s74 = sor.u32 %s72, %s73
      %p75 = scmp.eq.s32.totalorder %s74, 0
      %s77 = sadd.s32 %s76, 1
      %s78 = scalar_select %p75, %s76, %s77
      %p81 = pneg %p75
      %p82 = scmp.eq.s32.totalorder %s24, 3
      %p83 = por %p81, %p82
      %p84 = scmp.ne.s32.totalorder %s76, %s79
      %p85 = scmp.eq.s32.totalorder %s24, 0
      %p86 = por %p84, %p85
      %p87 = scmp.ne.s32.totalorder %s76, %s79
      %p88 = scmp.eq.s32.totalorder %s29, 3
      %p89 = por %p87, %p88
      %p90 = scmp.ne.s32.totalorder %s79, %s80
      %p91 = scmp.eq.s32.totalorder %s29, 0
      %p92 = por %p90, %p91
      %p93 = scmp.ne.s32.totalorder %s79, %s80
      %p94 = scmp.eq.s32.totalorder %s30, 3
      %p95 = por %p93, %p94
      %p97 = scmp.ne.s32.totalorder %s80, %s96
      %p98 = scmp.eq.s32.totalorder %s30, 0
      %p99 = por %p97, %p98
      %s100 = ssub.s32 %s31, %s43
      %s101 = ssub.s32 %s32, %s39
      %s102 = sor.u32 %s100, %s101
      %p103 = scmp.eq.s32.totalorder %s102, 0
      %s105 = sadd.s32 %s104, 1
      %s106 = scalar_select %p103, %s104, %s105
      %p109 = pneg %p103
      %p110 = scmp.eq.s32.totalorder %s24, 3
      %p111 = por %p109, %p110
      %p112 = scmp.ne.s32.totalorder %s104, %s107
      %p113 = scmp.eq.s32.totalorder %s24, 0
      %p114 = por %p112, %p113
      %p115 = scmp.ne.s32.totalorder %s104, %s107
      %p116 = scmp.eq.s32.totalorder %s29, 3
      %p117 = por %p115, %p116
      %p118 = scmp.ne.s32.totalorder %s107, %s108
      %p119 = scmp.eq.s32.totalorder %s29, 0
      %p120 = por %p118, %p119
      %p121 = scmp.ne.s32.totalorder %s107, %s108
      %p122 = scmp.eq.s32.totalorder %s30, 3
      %p123 = por %p121, %p122
      %p125 = scmp.ne.s32.totalorder %s108, %s124
      %p126 = scmp.eq.s32.totalorder %s30, 0
      %p127 = por %p125, %p126
      %s129 = sadd.s32 %s128, 1
      %p132 = scmp.eq.s32.totalorder %s24, 3
      %p133 = scmp.ne.s32.totalorder %s128, %s130
      %p134 = scmp.eq.s32.totalorder %s24, 0
      %p135 = por %p133, %p134
      %p136 = scmp.ne.s32.totalorder %s128, %s130
      %p137 = scmp.eq.s32.totalorder %s29, 3
      %p138 = por %p136, %p137
      %p139 = scmp.ne.s32.totalorder %s130, %s131
      %p140 = scmp.eq.s32.totalorder %s29, 0
      %p141 = por %p139, %p140
      %p142 = scmp.ne.s32.totalorder %s130, %s131
      %p143 = scmp.eq.s32.totalorder %s30, 3
      %p144 = por %p142, %p143
      %p146 = scmp.ne.s32.totalorder %s131, %s145
      %p147 = scmp.eq.s32.totalorder %s30, 0
      %p148 = por %p146, %p147
      %s150 = sadd.s32 %s149, 1
      %p153 = scmp.eq.s32.totalorder %s24, 3
      %p154 = scmp.ne.s32.totalorder %s149, %s151
      %p155 = scmp.eq.s32.totalorder %s24, 0
      %p156 = por %p154, %p155
      %p157 = scmp.ne.s32.totalorder %s149, %s151
      %p158 = scmp.eq.s32.totalorder %s29, 3
      %p159 = por %p157, %p158
      %p160 = scmp.ne.s32.totalorder %s151, %s152
      %p161 = scmp.eq.s32.totalorder %s29, 0
      %p162 = por %p160, %p161
      %p163 = scmp.ne.s32.totalorder %s151, %s152
      %p164 = scmp.eq.s32.totalorder %s30, 3
      %p165 = por %p163, %p164
      %p167 = scmp.ne.s32.totalorder %s152, %s166
      %p168 = scmp.eq.s32.totalorder %s30, 0
      %p169 = por %p167, %p168
      %s171 = sadd.s32 %s170, 1
      %p174 = scmp.eq.s32.totalorder %s24, 3
      %p175 = scmp.ne.s32.totalorder %s170, %s172
      %p176 = scmp.eq.s32.totalorder %s24, 0
      %p177 = por %p175, %p176
      %p178 = scmp.ne.s32.totalorder %s170, %s172
      %p179 = scmp.eq.s32.totalorder %s29, 3
      %p180 = por %p178, %p179
      %p181 = scmp.ne.s32.totalorder %s172, %s173
      %p182 = scmp.eq.s32.totalorder %s29, 0
      %p183 = por %p181, %p182
      %p184 = scmp.ne.s32.totalorder %s172, %s173
      %p185 = scmp.eq.s32.totalorder %s30, 3
      %p186 = por %p184, %p185
      %p188 = scmp.ne.s32.totalorder %s173, %s187
      %p189 = scmp.eq.s32.totalorder %s30, 0
      %p190 = por %p188, %p189
      %s192 = sadd.s32 %s191, 1
      %p195 = scmp.eq.s32.totalorder %s24, 3
      %p196 = scmp.ne.s32.totalorder %s191, %s193
      %p197 = scmp.eq.s32.totalorder %s24, 0
      %p198 = por %p196, %p197
      %p199 = scmp.ne.s32.totalorder %s191, %s193
      %p200 = scmp.eq.s32.totalorder %s29, 3
      %p201 = por %p199, %p200
      %p202 = scmp.ne.s32.totalorder %s193, %s194
      %p203 = scmp.eq.s32.totalorder %s29, 0
      %p204 = por %p202, %p203
      %p205 = scmp.ne.s32.totalorder %s193, %s194
      %p206 = scmp.eq.s32.totalorder %s30, 3
      %p207 = por %p205, %p206
      %p209 = scmp.ne.s32.totalorder %s194, %s208
      %p210 = scmp.eq.s32.totalorder %s30, 0
      %p211 = por %p209, %p210
      %s212 = ssub.s32 %s31, %s43
      %s213 = ssub.s32 %s32, %s39
      %s214 = sor.u32 %s212, %s213
      %p215 = scmp.eq.s32.totalorder %s214, 0
      %s217 = sadd.s32 %s216, 1
      %s218 = scalar_select %p215, %s216, %s217
      %p221 = pneg %p215
      %p222 = scmp.eq.s32.totalorder %s24, 3
      %p223 = por %p221, %p222
      %p224 = scmp.ne.s32.totalorder %s216, %s219
      %p225 = scmp.eq.s32.totalorder %s24, 0
      %p226 = por %p224, %p225
      %p227 = scmp.ne.s32.totalorder %s216, %s219
      %p228 = scmp.eq.s32.totalorder %s29, 3
      %p229 = por %p227, %p228
      %p230 = scmp.ne.s32.totalorder %s219, %s220
      %p231 = scmp.eq.s32.totalorder %s29, 0
      %p232 = por %p230, %p231
      %p233 = scmp.ne.s32.totalorder %s219, %s220
      %p234 = scmp.eq.s32.totalorder %s30, 3
      %p235 = por %p233, %p234
      %p237 = scmp.ne.s32.totalorder %s220, %s236
      %p238 = scmp.eq.s32.totalorder %s30, 0
      %p239 = por %p237, %p238
      %p240 = scmp.le.s32.totalorder 1, %s24
      %p241 = scmp.lt.s32.totalorder %s24, 5
      %p242 = pnand %p240, %p241
      %p243 = pneg %p242
      // Predicated region
      $region9: #{tpu_custom_call.1} parent=5 // pred_check
        _
      $region10: #{tpu_custom_call.1} parent=5 // pred_check_branch
        %245 = sbr.rel (%p242) target = $region12
      $region11: #{tpu_custom_call.1} parent=5 // pred_region
        %s246 = ssub.s32 %s24, 1
        // Predicated region
        $region13: #{tpu_custom_call.1} parent=11 // pred_check
          %p247 = pneg %p141
        $region14: #{tpu_custom_call.1} parent=11 // pred_check_branch
          %249 = sbr.rel (%p247) target = $region16
        $region15: #{tpu_custom_call.1} parent=11 // pred_region
          %s251 = ssub.s32 256, 256
          %252 = vsyncadd [#allocation13], %s251
          %s253 = sshll.u32 [#allocation12], 4
          %s254 = int_to_ptr.vmem [resolvable:$true] %s253
          %259 = dma.hbm_to_vmem [thread:$0]  %s3, 256, %s254, [#allocation13], 128, 128, 8
        $region16: #{tpu_custom_call.1} parent=11 // pred_fallthru
          _
        // Predicated region
        $region17: #{tpu_custom_call.1} parent=11 // pred_check
          %p260 = pneg %p162
        $region18: #{tpu_custom_call.1} parent=11 // pred_check_branch
          %262 = sbr.rel (%p260) target = $region20
        $region19: #{tpu_custom_call.1} parent=11 // pred_region
          _
        $region20: #{tpu_custom_call.1} parent=11 // pred_fallthru
          _
        // Predicated region
        $region21: #{tpu_custom_call.1} parent=11 // pred_check
          %p263 = pneg %p183
        $region22: #{tpu_custom_call.1} parent=11 // pred_check_branch
          %265 = sbr.rel (%p263) target = $region24
        $region23: #{tpu_custom_call.1} parent=11 // pred_region
          _
        $region24: #{tpu_custom_call.1} parent=11 // pred_fallthru
          _
        // Predicated region
        $region25: #{tpu_custom_call.1} parent=11 // pred_check
          %p266 = pneg %p204
        $region26: #{tpu_custom_call.1} parent=11 // pred_check_branch
          %268 = sbr.rel (%p266) target = $region28
        $region27: #{tpu_custom_call.1} parent=11 // pred_region
          _
        $region28: #{tpu_custom_call.1} parent=11 // pred_fallthru
          _
      $region12: #{tpu_custom_call.1} parent=5 // pred_fallthru
        _
      %p269 = scmp.lt.s32.totalorder %s24, 4
      // Predicated region
      $region29: #{tpu_custom_call.1} parent=5 // pred_check
        %p270 = pneg %p269
      $region30: #{tpu_custom_call.1} parent=5 // pred_check_branch
        %272 = sbr.rel (%p270) target = $region32
      $region31: #{tpu_custom_call.1} parent=5 // pred_region
        // Predicated region
        $region33: #{tpu_custom_call.1} parent=31 // pred_check
          %p273 = pneg %p58
        $region34: #{tpu_custom_call.1} parent=31 // pred_check_branch
          %275 = sbr.rel (%p273) target = $region36
        $region35: #{tpu_custom_call.1} parent=31 // pred_region
          %s276 = sand.u32 %s48, 1
          %s277 = scalar_lea.sflag [#allocation7], %s276
          %s278 = sand.u32 %s48, 1
          %s279 = smul.addr %s278, 64
          %s280 = scalar_lea.vmem [#allocation6], %s279
          %s282 = ssub.s32 1024, 1024
          %283 = vsyncadd %s277, %s282
          %s284 = smul.addr %s31, 16
          %s285 = sadd.s32 %s32, %s284
          %s286 = smul.addr %s285, 128
          %s287 = scalar_lea.hbm %s0, %s286
          %s288 = sshll.u32 %s280, 4
          %s289 = int_to_ptr.vmem [resolvable:$true] %s288
          %294 = dma.hbm_to_vmem [thread:$0]  %s287, 1024, %s289, %s277, 256, 128, 8
        $region36: #{tpu_custom_call.1} parent=31 // pred_fallthru
          _
        // Predicated region
        $region37: #{tpu_custom_call.1} parent=31 // pred_check
          %p295 = pneg %p86
        $region38: #{tpu_custom_call.1} parent=31 // pred_check_branch
          %297 = sbr.rel (%p295) target = $region40
        $region39: #{tpu_custom_call.1} parent=31 // pred_region
          %s298 = sand.u32 %s24, 1
          %s299 = scalar_lea.sflag [#allocation10], %s298
          %s300 = sand.u32 %s76, 1
          %s301 = smul.addr %s300, 8
          %s302 = scalar_lea.vmem [#allocation9], %s301
          %s304 = ssub.s32 128, 128
          %305 = vsyncadd %s299, %s304
          %s306 = smul.addr %s31, 2
          %s307 = sadd.s32 %s32, %s306
          %s308 = smul.addr %s307, 128
          %s309 = scalar_lea.hbm %s1, %s308
          %s311 = sshll.u32 %s302, 4
          %s312 = int_to_ptr.vmem [resolvable:$true] %s311
          %314 = dma.hbm_to_vmem [thread:$0]  %s309, 128, %s312, %s299
        $region40: #{tpu_custom_call.1} parent=31 // pred_fallthru
          _
        // Predicated region
        $region41: #{tpu_custom_call.1} parent=31 // pred_check
          %p315 = pneg %p114
        $region42: #{tpu_custom_call.1} parent=31 // pred_check_branch
          %317 = sbr.rel (%p315) target = $region44
        $region43: #{tpu_custom_call.1} parent=31 // pred_region
          %s318 = sand.u32 %s24, 1
          %s319 = scalar_lea.sflag [#allocation10], %s318
          %s320 = sand.u32 %s104, 1
          %s321 = smul.addr %s320, 8
          %s322 = scalar_lea.vmem [#allocation11], %s321
          %s324 = ssub.s32 128, 128
          %325 = vsyncadd %s319, %s324
          %s326 = smul.addr %s31, 2
          %s327 = sadd.s32 %s32, %s326
          %s328 = smul.addr %s327, 128
          %s329 = scalar_lea.hbm %s2, %s328
          %s331 = sshll.u32 %s322, 4
          %s332 = int_to_ptr.vmem [resolvable:$true] %s331
          %334 = dma.hbm_to_vmem [thread:$0]  %s329, 128, %s332, %s319
        $region44: #{tpu_custom_call.1} parent=31 // pred_fallthru
          _
      $region32: #{tpu_custom_call.1} parent=5 // pred_fallthru
        _
      %p335 = scmp.le.s32.totalorder 1, %s24
      %p336 = scmp.lt.s32.totalorder %s24, 5
      %p337 = pnand %p335, %p336
      %p338 = pneg %p337
      // Predicated region
      $region45: #{tpu_custom_call.1} parent=5 // pred_check
        _
      $region46: #{tpu_custom_call.1} parent=5 // pred_check_branch
        %340 = sbr.rel (%p337) target = $region48
      $region47: #{tpu_custom_call.1} parent=5 // pred_region
        %s341 = ssub.s32 %s24, 1
        %s342 = sand.u32 %s51, 1
        %s343 = scalar_lea.sflag [#allocation7], %s342
        %s344 = sand.u32 %s51, 1
        %s345 = smul.addr %s344, 64
        %s346 = scalar_lea.vmem [#allocation6], %s345
        // Predicated region
        $region49: #{tpu_custom_call.1} parent=47 // pred_check
          %p347 = pneg %p64
        $region50: #{tpu_custom_call.1} parent=47 // pred_check_branch
          %349 = sbr.rel (%p347) target = $region52
        $region51: #{tpu_custom_call.1} parent=47 // pred_region
          %350 = dma.done %s343, 1024
        $region52: #{tpu_custom_call.1} parent=47 // pred_fallthru
          _
        %s351 = sand.u32 %s29, 1
        %s352 = scalar_lea.sflag [#allocation10], %s351
        %s353 = sand.u32 %s79, 1
        %s354 = smul.addr %s353, 8
        %s355 = scalar_lea.vmem [#allocation9], %s354
        // Predicated region
        $region53: #{tpu_custom_call.1} parent=47 // pred_check
          %p356 = pneg %p92
        $region54: #{tpu_custom_call.1} parent=47 // pred_check_branch
          %358 = sbr.rel (%p356) target = $region56
        $region55: #{tpu_custom_call.1} parent=47 // pred_region
          %359 = dma.done %s352, 128
        $region56: #{tpu_custom_call.1} parent=47 // pred_fallthru
          _
        %s360 = sand.u32 %s29, 1
        %s361 = scalar_lea.sflag [#allocation10], %s360
        %s362 = sand.u32 %s107, 1
        %s363 = smul.addr %s362, 8
        %s364 = scalar_lea.vmem [#allocation11], %s363
        // Predicated region
        $region57: #{tpu_custom_call.1} parent=47 // pred_check
          %p365 = pneg %p120
        $region58: #{tpu_custom_call.1} parent=47 // pred_check_branch
          %367 = sbr.rel (%p365) target = $region60
        $region59: #{tpu_custom_call.1} parent=47 // pred_region
          %368 = dma.done %s361, 128
        $region60: #{tpu_custom_call.1} parent=47 // pred_fallthru
          _
        // Predicated region
        $region61: #{tpu_custom_call.1} parent=47 // pred_check
          %p369 = pneg %p141
        $region62: #{tpu_custom_call.1} parent=47 // pred_check_branch
          %371 = sbr.rel (%p369) target = $region64
        $region63: #{tpu_custom_call.1} parent=47 // pred_region
          %372 = dma.done [#allocation13], 256
        $region64: #{tpu_custom_call.1} parent=47 // pred_fallthru
          _
        %s373 = sand.u32 %s51, 1
        %s374 = scalar_lea.sflag [#allocation7], %s373
        %s375 = sand.u32 %s51, 1
        %s376 = smul.addr %s375, 64
        %s377 = scalar_lea.vmem [#allocation6], %s376
        %p378 = pneg %p64
        %p379 = pneg %p61
        %s380 = sand.u32 %s29, 1
        %s381 = scalar_lea.sflag [#allocation10], %s380
        %s382 = sand.u32 %s79, 1
        %s383 = smul.addr %s382, 8
        %s384 = scalar_lea.vmem [#allocation9], %s383
        %p385 = pneg %p92
        %p386 = pneg %p89
        %s387 = sand.u32 %s29, 1
        %s388 = scalar_lea.sflag [#allocation10], %s387
        %s389 = sand.u32 %s107, 1
        %s390 = smul.addr %s389, 8
        %s391 = scalar_lea.vmem [#allocation11], %s390
        %p392 = pneg %p120
        %p393 = pneg %p117
        %p394 = pneg %p141
        %p395 = pneg %p138
        %p396 = pneg %p162
        %p397 = pneg %p159
        %p398 = pneg %p183
        %p399 = pneg %p180
        %p400 = pneg %p204
        %p401 = pneg %p201
        %p402 = pneg %p232
        %p403 = pneg %p229
        %s404 = sand.u32 %s219, 1
        %s405 = scalar_lea.sflag [#allocation8], %s404
        %s406 = sand.u32 %s219, 1
        %s407 = smul.addr %s406, 64
        %s408 = scalar_lea.vmem [#allocation14], %s407
        %s409 = smul.u32 2, %s34
        %410 = vst [vmem:[#allocation2] sm:$0xff] 0.0
        %vm411 = vcmask 1047808
        %412 = vst.msk [vmem:[#allocation2 + $0x10] sm:$0xff] %vm411, 0.0
        %vm413 = vcmask 261120
        %414 = vst.msk [vmem:[#allocation2 + $0x18] sm:$0xff] %vm413, 0.0
        %v415 = vld [vmem:[%s355] sm:$0xff]
        %vm416 = vcmask 130048
        %417 = vst.msk [vmem:[#allocation2 + $0x8] sm:$0xff] %vm416, %v415
        %v418 = vld [vmem:[%s346] sm:$0x1]
        %v419 = vld [vmem:[%s346 + $0x8] sm:$0x1]
        %v420 = vld [vmem:[%s346 + $0x10] sm:$0x1]
        %v421 = vld [vmem:[%s346 + $0x18] sm:$0x1]
        %v422 = vld [vmem:[%s346 + $0x20] sm:$0x1]
        %v423 = vld [vmem:[%s346 + $0x28] sm:$0x1]
        %v424 = vld [vmem:[%s346 + $0x30] sm:$0x1]
        %v425 = vld [vmem:[%s346 + $0x38] sm:$0x1]
        %v434 = vrot.slane %v419, 7
        %vm435 = vcmask 1041409
        %v436 = vsel %vm435, %v434, %v418
        %v437 = vrot.slane %v420, 6
        %vm438 = vcmask 1042434
        %v439 = vsel %vm438, %v437, %v436
        %v440 = vrot.slane %v421, 5
        %vm441 = vcmask 1043459
        %v442 = vsel %vm441, %v440, %v439
        %v443 = vrot.slane %v422, 4
        %vm444 = vcmask 1044484
        %v445 = vsel %vm444, %v443, %v442
        %v446 = vrot.slane %v423, 3
        %vm447 = vcmask 1045509
        %v448 = vsel %vm447, %v446, %v445
        %v449 = vrot.slane %v424, 2
        %vm450 = vcmask 1046534
        %v451 = vsel %vm450, %v449, %v448
        %v452 = vrot.slane %v425, 1
        %vm453 = vcmask 1047559
        %v454 = vsel %vm453, %v452, %v451
        %455 = vrot.lane.b32.xlu0 %v454, 16
        %v456 = vpop.permute.xlu0 %455
        %vm458 = vcmask 261248
        %459 = vst.msk [vmem:[#allocation2 + $0x8] sm:$0xff] %vm458, %v456
        %v460 = vld [vmem:[%s346 + $0x1] sm:$0x1]
        %v461 = vld [vmem:[%s346 + $0x9] sm:$0x1]
        %v462 = vld [vmem:[%s346 + $0x11] sm:$0x1]
        %v463 = vld [vmem:[%s346 + $0x19] sm:$0x1]
        %v464 = vld [vmem:[%s346 + $0x21] sm:$0x1]
        %v465 = vld [vmem:[%s346 + $0x29] sm:$0x1]
        %v466 = vld [vmem:[%s346 + $0x31] sm:$0x1]
        %v467 = vld [vmem:[%s346 + $0x39] sm:$0x1]
        %v476 = vrot.slane %v461, 7
        %v477 = vsel %vm435, %v476, %v460
        %v478 = vrot.slane %v462, 6
        %v479 = vsel %vm438, %v478, %v477
        %v480 = vrot.slane %v463, 5
        %v481 = vsel %vm441, %v480, %v479
        %v482 = vrot.slane %v464, 4
        %v483 = vsel %vm444, %v482, %v481
        %v484 = vrot.slane %v465, 3
        %v485 = vsel %vm447, %v484, %v483
        %v486 = vrot.slane %v466, 2
        %v487 = vsel %vm450, %v486, %v485
        %v488 = vrot.slane %v467, 1
        %v489 = vsel %vm453, %v488, %v487
        %490 = vrot.lane.b32.xlu0 %v489, 32
        %v491 = vpop.permute.xlu0 %490
        %vm493 = vcmask 392448
        %494 = vst.msk [vmem:[#allocation2 + $0x8] sm:$0xff] %vm493, %v491
        %v495 = vld [vmem:[%s346 + $0x2] sm:$0x1]
        %v496 = vld [vmem:[%s346 + $0xa] sm:$0x1]
        %v497 = vld [vmem:[%s346 + $0x12] sm:$0x1]
        %v498 = vld [vmem:[%s346 + $0x1a] sm:$0x1]
        %v499 = vld [vmem:[%s346 + $0x22] sm:$0x1]
        %v500 = vld [vmem:[%s346 + $0x2a] sm:$0x1]
        %v501 = vld [vmem:[%s346 + $0x32] sm:$0x1]
        %v502 = vld [vmem:[%s346 + $0x3a] sm:$0x1]
        %v511 = vrot.slane %v496, 7
        %v512 = vsel %vm435, %v511, %v495
        %v513 = vrot.slane %v497, 6
        %v514 = vsel %vm438, %v513, %v512
        %v515 = vrot.slane %v498, 5
        %v516 = vsel %vm441, %v515, %v514
        %v517 = vrot.slane %v499, 4
        %v518 = vsel %vm444, %v517, %v516
        %v519 = vrot.slane %v500, 3
        %v520 = vsel %vm447, %v519, %v518
        %v521 = vrot.slane %v501, 2
        %v522 = vsel %vm450, %v521, %v520
        %v523 = vrot.slane %v502, 1
        %v524 = vsel %vm453, %v523, %v522
        %525 = vrot.lane.b32.xlu0 %v524, 48
        %v526 = vpop.permute.xlu0 %525
        %vm528 = vcmask 523648
        %529 = vst.msk [vmem:[#allocation2 + $0x8] sm:$0xff] %vm528, %v526
        %v530 = vld [vmem:[%s346 + $0x3] sm:$0x1]
        %v531 = vld [vmem:[%s346 + $0xb] sm:$0x1]
        %v532 = vld [vmem:[%s346 + $0x13] sm:$0x1]
        %v533 = vld [vmem:[%s346 + $0x1b] sm:$0x1]
        %v534 = vld [vmem:[%s346 + $0x23] sm:$0x1]
        %v535 = vld [vmem:[%s346 + $0x2b] sm:$0x1]
        %v536 = vld [vmem:[%s346 + $0x33] sm:$0x1]
        %v537 = vld [vmem:[%s346 + $0x3b] sm:$0x1]
        %v546 = vrot.slane %v531, 7
        %v547 = vsel %vm435, %v546, %v530
        %v548 = vrot.slane %v532, 6
        %v549 = vsel %vm438, %v548, %v547
        %v550 = vrot.slane %v533, 5
        %v551 = vsel %vm441, %v550, %v549
        %v552 = vrot.slane %v534, 4
        %v553 = vsel %vm444, %v552, %v551
        %v554 = vrot.slane %v535, 3
        %v555 = vsel %vm447, %v554, %v553
        %v556 = vrot.slane %v536, 2
        %v557 = vsel %vm450, %v556, %v555
        %v558 = vrot.slane %v537, 1
        %v559 = vsel %vm453, %v558, %v557
        %560 = vrot.lane.b32.xlu0 %v559, 64
        %v561 = vpop.permute.xlu0 %560
        %vm563 = vcmask 654848
        %564 = vst.msk [vmem:[#allocation2 + $0x8] sm:$0xff] %vm563, %v561
        %v565 = vld [vmem:[%s346 + $0x4] sm:$0x1]
        %v566 = vld [vmem:[%s346 + $0xc] sm:$0x1]
        %v567 = vld [vmem:[%s346 + $0x14] sm:$0x1]
        %v568 = vld [vmem:[%s346 + $0x1c] sm:$0x1]
        %v569 = vld [vmem:[%s346 + $0x24] sm:$0x1]
        %v570 = vld [vmem:[%s346 + $0x2c] sm:$0x1]
        %v571 = vld [vmem:[%s346 + $0x34] sm:$0x1]
        %v572 = vld [vmem:[%s346 + $0x3c] sm:$0x1]
        %v581 = vrot.slane %v566, 7
        %v582 = vsel %vm435, %v581, %v565
        %v583 = vrot.slane %v567, 6
        %v584 = vsel %vm438, %v583, %v582
        %v585 = vrot.slane %v568, 5
        %v586 = vsel %vm441, %v585, %v584
        %v587 = vrot.slane %v569, 4
        %v588 = vsel %vm444, %v587, %v586
        %v589 = vrot.slane %v570, 3
        %v590 = vsel %vm447, %v589, %v588
        %v591 = vrot.slane %v571, 2
        %v592 = vsel %vm450, %v591, %v590
        %v593 = vrot.slane %v572, 1
        %v594 = vsel %vm453, %v593, %v592
        %595 = vrot.lane.b32.xlu0 %v594, 80
        %v596 = vpop.permute.xlu0 %595
        %vm598 = vcmask 786048
        %599 = vst.msk [vmem:[#allocation2 + $0x8] sm:$0xff] %vm598, %v596
        %v600 = vld [vmem:[%s346 + $0x5] sm:$0x1]
        %v601 = vld [vmem:[%s346 + $0xd] sm:$0x1]
        %v602 = vld [vmem:[%s346 + $0x15] sm:$0x1]
        %v603 = vld [vmem:[%s346 + $0x1d] sm:$0x1]
        %v604 = vld [vmem:[%s346 + $0x25] sm:$0x1]
        %v605 = vld [vmem:[%s346 + $0x2d] sm:$0x1]
        %v606 = vld [vmem:[%s346 + $0x35] sm:$0x1]
        %v607 = vld [vmem:[%s346 + $0x3d] sm:$0x1]
        %v616 = vrot.slane %v601, 7
        %v617 = vsel %vm435, %v616, %v600
        %v618 = vrot.slane %v602, 6
        %v619 = vsel %vm438, %v618, %v617
        %v620 = vrot.slane %v603, 5
        %v621 = vsel %vm441, %v620, %v619
        %v622 = vrot.slane %v604, 4
        %v623 = vsel %vm444, %v622, %v621
        %v624 = vrot.slane %v605, 3
        %v625 = vsel %vm447, %v624, %v623
        %v626 = vrot.slane %v606, 2
        %v627 = vsel %vm450, %v626, %v625
        %v628 = vrot.slane %v607, 1
        %v629 = vsel %vm453, %v628, %v627
        %630 = vrot.lane.b32.xlu0 %v629, 96
        %v631 = vpop.permute.xlu0 %630
        %vm633 = vcmask 917248
        %634 = vst.msk [vmem:[#allocation2 + $0x8] sm:$0xff] %vm633, %v631
        %v635 = vld [vmem:[%s346 + $0x6] sm:$0x1]
        %v636 = vld [vmem:[%s346 + $0xe] sm:$0x1]
        %v637 = vld [vmem:[%s346 + $0x16] sm:$0x1]
        %v638 = vld [vmem:[%s346 + $0x1e] sm:$0x1]
        %v639 = vld [vmem:[%s346 + $0x26] sm:$0x1]
        %v640 = vld [vmem:[%s346 + $0x2e] sm:$0x1]
        %v641 = vld [vmem:[%s346 + $0x36] sm:$0x1]
        %v642 = vld [vmem:[%s346 + $0x3e] sm:$0x1]
        %v651 = vrot.slane %v636, 7
        %v652 = vsel %vm435, %v651, %v635
        %v653 = vrot.slane %v637, 6
        %v654 = vsel %vm438, %v653, %v652
        %v655 = vrot.slane %v638, 5
        %v656 = vsel %vm441, %v655, %v654
        %v657 = vrot.slane %v639, 4
        %v658 = vsel %vm444, %v657, %v656
        %v659 = vrot.slane %v640, 3
        %v660 = vsel %vm447, %v659, %v658
        %v661 = vrot.slane %v641, 2
        %v662 = vsel %vm450, %v661, %v660
        %v663 = vrot.slane %v642, 1
        %v664 = vsel %vm453, %v663, %v662
        %665 = vrot.lane.b32.xlu0 %v664, 112
        %v666 = vpop.permute.xlu0 %665
        %vm668 = vcmask 1048448
        %669 = vst.msk [vmem:[#allocation2 + $0x8] sm:$0xff] %vm668, %v666
        %v670 = vld [vmem:[%s346 + $0x7] sm:$0x1]
        %v671 = vld [vmem:[%s346 + $0xf] sm:$0x1]
        %v672 = vld [vmem:[%s346 + $0x17] sm:$0x1]
        %v673 = vld [vmem:[%s346 + $0x1f] sm:$0x1]
        %v674 = vld [vmem:[%s346 + $0x27] sm:$0x1]
        %v675 = vld [vmem:[%s346 + $0x2f] sm:$0x1]
        %v676 = vld [vmem:[%s346 + $0x37] sm:$0x1]
        %v677 = vld [vmem:[%s346 + $0x3f] sm:$0x1]
        %v686 = vrot.slane %v671, 7
        %v687 = vsel %vm435, %v686, %v670
        %v688 = vrot.slane %v672, 6
        %v689 = vsel %vm438, %v688, %v687
        %v690 = vrot.slane %v673, 5
        %v691 = vsel %vm441, %v690, %v689
        %v692 = vrot.slane %v674, 4
        %v693 = vsel %vm444, %v692, %v691
        %v694 = vrot.slane %v675, 3
        %v695 = vsel %vm447, %v694, %v693
        %v696 = vrot.slane %v676, 2
        %v697 = vsel %vm450, %v696, %v695
        %v698 = vrot.slane %v677, 1
        %v699 = vsel %vm453, %v698, %v697
        %701 = vst.msk [vmem:[#allocation2 + $0x10] sm:$0xff] %vm416, %v699
        %v702 = vld [vmem:[%s364] sm:$0xff]
        %704 = vrot.lane.b32.xlu0 %v702, 16
        %v705 = vpop.permute.xlu0 %704
        %707 = vst.msk [vmem:[#allocation2 + $0x10] sm:$0xff] %vm458, %v705
        %v708 = vlaneseq
        %v709 = vand.u32 %v708, 127
        %vm710 = vcmp.lt.s32.totalorder %v709, 0
        %v711 = vsub.s32 0, %v709
        %v712 = vsel %vm710, %v711, %v709
        %v713 = vshrl.u32 %v712, 4
        %v714 = vand.u32 %v712, 15
        %v715 = vsub.s32 0, %v714
        %v716 = vsel %vm710, %v715, %v714
        %vm717 = vcmp.ne.s32.totalorder %v716, 0
        %vm718 = vcmp.lt.s32.totalorder %v716, 0
        %vm719 = vmand %vm718, %vm717
        %v720 = vadd.s32 %v716, 16
        %v721 = vsel %vm719, %v720, %v716
        %vm722 = vcmp.ne.s32.totalorder %v721, 0
        %vm723 = vcmp.ne.s32.totalorder %v721, 15
        %v724 = vld [vmem:[#allocation2] sm:$0xff]
        %v725 = vld [vmem:[#allocation2 + $0x8] sm:$0xff]
        %v726 = vsel %vm722, 1, 0
        %vm727 = vcmp.eq.s32.totalorder %v726, 1
        %730 = vrot.lane.b32.xlu0 %v724, 1
        %v731 = vpop.permute.xlu0 %730
        %732 = vrot.lane.b32.xlu0 %v725, 1
        %v733 = vpop.permute.xlu0 %732
        %vm734 = vcmask 7168
        %v735 = vsel %vm734, %v731, %v733
        %v737 = vsel %vm727, %v735, 0.0
        %738 = vst [vmem:[#allocation3] sm:$0xff] %v737
        %v739 = vld [vmem:[#allocation2 + $0x8] sm:$0xff]
        %740 = vst [vmem:[#allocation3 + $0x8] sm:$0xff] %v739
        %v741 = vld [vmem:[#allocation2 + $0x8] sm:$0xff]
        %v742 = vld [vmem:[#allocation2 + $0x10] sm:$0xff]
        %v743 = vsel %vm723, 1, 0
        %vm744 = vcmp.eq.s32.totalorder %v743, 1
        %747 = vrot.lane.b32.xlu0 %v741, 127
        %v748 = vpop.permute.xlu0 %747
        %749 = vrot.lane.b32.xlu0 %v742, 127
        %v750 = vpop.permute.xlu0 %749
        %vm751 = vcmask 1039360
        %v752 = vsel %vm751, %v748, %v750
        %v754 = vsel %vm744, %v752, 0.0
        %755 = vst [vmem:[#allocation3 + $0x10] sm:$0xff] %v754
        %v756 = vld [vmem:[#allocation2 + $0x8] sm:$0xff]
        %v757 = vld [vmem:[#allocation2 + $0x10] sm:$0xff]
        %760 = vrot.lane.b32.xlu0 %v756, 113
        %v761 = vpop.permute.xlu0 %760
        %762 = vrot.lane.b32.xlu0 %v757, 113
        %v763 = vpop.permute.xlu0 %762
        %vm764 = vcmask 924672
        %v765 = vsel %vm764, %v761, %v763
        %v767 = vsel %vm727, %v765, 0.0
        %768 = vst [vmem:[#allocation3 + $0x18] sm:$0xff] %v767
        %v769 = vld [vmem:[#allocation2 + $0x8] sm:$0xff]
        %v770 = vld [vmem:[#allocation2 + $0x10] sm:$0xff]
        %773 = vrot.lane.b32.xlu0 %v769, 112
        %v774 = vpop.permute.xlu0 %773
        %775 = vrot.lane.b32.xlu0 %v770, 112
        %v776 = vpop.permute.xlu0 %775
        %vm777 = vcmask 916480
        %v778 = vsel %vm777, %v774, %v776
        %780 = vst [vmem:[#allocation3 + $0x20] sm:$0xff] %v778
        %v781 = vld [vmem:[#allocation2 + $0x8] sm:$0xff]
        %v782 = vld [vmem:[#allocation2 + $0x10] sm:$0xff]
        %785 = vrot.lane.b32.xlu0 %v781, 111
        %v786 = vpop.permute.xlu0 %785
        %787 = vrot.lane.b32.xlu0 %v782, 111
        %v788 = vpop.permute.xlu0 %787
        %vm789 = vcmask 908288
        %v790 = vsel %vm789, %v786, %v788
        %v792 = vsel %vm744, %v790, 0.0
        %793 = vst [vmem:[#allocation3 + $0x28] sm:$0xff] %v792
        %v794 = vld [vmem:[#allocation2 + $0x8] sm:$0xff]
        %v795 = vld [vmem:[#allocation2 + $0x10] sm:$0xff]
        %798 = vrot.lane.b32.xlu0 %v794, 97
        %v799 = vpop.permute.xlu0 %798
        %800 = vrot.lane.b32.xlu0 %v795, 97
        %v801 = vpop.permute.xlu0 %800
        %vm802 = vcmask 793600
        %v803 = vsel %vm802, %v799, %v801
        %v805 = vsel %vm727, %v803, 0.0
        %806 = vst [vmem:[#allocation3 + $0x30] sm:$0xff] %v805
        %v807 = vld [vmem:[#allocation2 + $0x8] sm:$0xff]
        %v808 = vld [vmem:[#allocation2 + $0x10] sm:$0xff]
        %811 = vrot.lane.b32.xlu0 %v807, 96
        %v812 = vpop.permute.xlu0 %811
        %813 = vrot.lane.b32.xlu0 %v808, 96
        %v814 = vpop.permute.xlu0 %813
        %vm815 = vcmask 785408
        %v816 = vsel %vm815, %v812, %v814
        %818 = vst [vmem:[#allocation3 + $0x38] sm:$0xff] %v816
        %v819 = vld [vmem:[#allocation2 + $0x8] sm:$0xff]
        %v820 = vld [vmem:[#allocation2 + $0x10] sm:$0xff]
        %823 = vrot.lane.b32.xlu0 %v819, 95
        %v824 = vpop.permute.xlu0 %823
        %825 = vrot.lane.b32.xlu0 %v820, 95
        %v826 = vpop.permute.xlu0 %825
        %vm827 = vcmask 777216
        %v828 = vsel %vm827, %v824, %v826
        %v830 = vsel %vm744, %v828, 0.0
        %831 = vst [vmem:[#allocation3 + $0x40] sm:$0xff] %v830
        %v832 = vld [vmem:[#allocation12] sm:$0xff]
        %v833 = vld [vmem:[#allocation12 + $0x8] sm:$0xff]
        %v834 = vld [vmem:[#allocation3] sm:$0xff]
        %v835 = vld [vmem:[#allocation3 + $0x8] sm:$0xff]
        %v836 = vld [vmem:[#allocation3 + $0x10] sm:$0xff]
        %v837 = vld [vmem:[#allocation3 + $0x18] sm:$0xff]
        %v838 = vld [vmem:[#allocation3 + $0x20] sm:$0xff]
        %v839 = vld [vmem:[#allocation3 + $0x28] sm:$0xff]
        %v840 = vld [vmem:[#allocation3 + $0x30] sm:$0xff]
        %v841 = vld [vmem:[#allocation3 + $0x38] sm:$0xff]
        %v842 = vld [vmem:[#allocation3 + $0x40] sm:$0xff]
        %v843 = vld [vmem:[%s4] sm:$0xff]
        %v844 = vld [vmem:[%s4 + $0x8] sm:$0xff]
        %846 = vset.pattern.permute.xlu0 0
        %847 = vperm.xlu0 %846, %v843
        %v848 = vpop.permute.xlu0 %847
        %851 = vset.pattern.permute.xlu0 0
        %852 = vperm.xlu0 %851, %v844
        %v853 = vpop.permute.xlu0 %852
        %vm855 = vcmask 588800
        %v857 = vsel %vm855, %v832, 0
        %v860 = vsel %vm855, %v833, 0
        %862 = vmatprep.subr.mxu0 0.0
        %863 = vmatpush1.msra.mxu0 %v834
        %864 = vmatprep.subr.mxu0 0.0
        %865 = vmatpush1.msra.mxu0 %v835
        %866 = vmatprep.subr.mxu0 0.0
        %867 = vmatpush1.msra.mxu0 %v836
        %868 = vmatprep.subr.mxu0 0.0
        %869 = vmatpush1.msra.mxu0 %v837
        %870 = vmatprep.subr.mxu0 0.0
        %871 = vmatpush1.msra.mxu0 %v838
        %872 = vmatprep.subr.mxu0 0.0
        %873 = vmatpush1.msra.mxu0 %v839
        %874 = vmatprep.subr.mxu0 0.0
        %875 = vmatpush1.msra.mxu0 %v840
        %876 = vmatprep.subr.mxu0 0.0
        %877 = vmatpush1.msra.mxu0 %v841
        %878 = vmatprep.subr.mxu0 0.0
        %879 = vmatpush1.msra.mxu0 %v842
        %880 = vmatprep.subr.mxu0 0.0
        %881 = vmatpush1.msra.mxu0 0.0
        %882 = vmatprep.subr.mxu0 0.0
        %883 = vmatpush1.msra.mxu0 0.0
        %884 = vmatprep.subr.mxu0 0.0
        %885 = vmatpush1.msra.mxu0 0.0
        %886 = vmatprep.subr.mxu0 0.0
        %887 = vmatpush1.msra.mxu0 0.0
        %888 = vmatprep.subr.mxu0 0.0
        %889 = vmatpush1.msra.mxu0 0.0
        %890 = vmatprep.subr.mxu0 0.0
        %891 = vmatpush1.msra.mxu0 0.0
        %892 = vmatprep.subr.mxu0 0.0
        %893 = vmatpush1.msra.mxu0 0.0
        %894 = vmatprep.subr.mxu0 0.0
        %895 = vmatpush1.msra.mxu0 0.0
        %896 = vmatprep.subr.mxu0 0.0
        %897 = vmatpush1.msra.mxu0 0.0
        %898 = vmatprep.subr.mxu0 0.0
        %899 = vmatpush1.msra.mxu0 0.0
        %900 = vmatprep.subr.mxu0 0.0
        %901 = vmatpush1.msra.mxu0 0.0
        %902 = vmatprep.subr.mxu0 0.0
        %903 = vmatpush1.msra.mxu0 0.0
        %904 = vmatprep.subr.mxu0 0.0
        %905 = vmatpush1.msra.mxu0 0.0
        %906 = vmatprep.subr.mxu0 0.0
        %907 = vmatpush1.msra.mxu0 0.0
        %908 = vmatprep.subr.mxu0 0.0
        %909 = vmatpush1.msra.mxu0 0.0
        %910 = vmatprep.subr.mxu0 0.0
        %911 = vmatpush1.msra.mxu0 0.0
        %912 = vmatprep.subr.mxu0 0.0
        %913 = vmatpush1.msra.mxu0 0.0
        %914 = vmatprep.subr.mxu0 0.0
        %915 = vmatpush1.msra.mxu0 0.0
        %916 = vmatprep.subr.mxu0 0.0
        %917 = vmatpush1.msra.mxu0 0.0
        %918 = vmatprep.subr.mxu0 0.0
        %919 = vmatpush1.msra.mxu0 0.0
        %920 = vmatprep.subr.mxu0 0.0
        %921 = vmatpush1.msra.mxu0 0.0
        %922 = vmatprep.subr.mxu0 0.0
        %923 = vmatpush1.msra.mxu0 0.0
        %924 = vmatprep.subr.mxu0 0.0
        %925 = vmatpush1.msra.mxu0 0.0
        %926 = vmatprep.mubr.f32.mxu0 0.0
        %927 = vmatmul.mubr.f32.gmra.mrb[0].mxu0 %v857
        %v928 = vpop.f32.mrb[0].mxu0
        %v929 = vadd.f32 %v848, %v928
        %v930 = vpop.f32.mrb[0].mxu0
        %931 = vmatprep.mubr.f32.mxu0 0.0
        %932 = vmatmul.mubr.f32.gmra.mrb[0].mxu0 %v860
        %v933 = vpop.f32.mrb[0].mxu0
        %v934 = vadd.f32 %v853, %v933
        %v935 = vpop.f32.mrb[0].mxu0
        %936 = vdwg.mxu0
        %s937 = sld [smem:[#allocation5]]
        %vm938 = vcmp.ge.f32.partialorder %v929, 0.0
        %vm939 = vcmp.ge.f32.partialorder %v934, 0.0
        %v940 = vstv %s937
        %v941 = vmul.f32 %v940, %v929
        %v942 = vmul.f32 %v940, %v934
        %v943 = vsel %vm938, %v929, %v941
        %v944 = vsel %vm939, %v934, %v942
        %945 = vst [vmem:[#allocation4] sm:$0xff] %v943
        %946 = vst [vmem:[#allocation4 + $0x8] sm:$0xff] %v944
        %v947 = vld [vmem:[#allocation4] sm:$0xf]
        %v948 = vld [vmem:[%s5] sm:$0xff]
        %v949 = vld [vmem:[%s5 + $0x8] sm:$0xff]
        %v950 = vld [vmem:[#allocation4 + $0x8] sm:$0xf]
        %s951 = scalar_lea.vmem %s5, 16
        %v952 = vld [vmem:[%s951] sm:$0xff]
        %v953 = vld [vmem:[%s951 + $0x8] sm:$0xff]
        %v955 = vsel %vm416, %v950, 0
        %957 = vmatprep.subr.mxu0 0.0
        %958 = vmatpush1.msra.mxu0 %v952
        %959 = vmatprep.subr.mxu0 0.0
        %960 = vmatpush1.msra.mxu0 %v953
        %961 = vmatprep.subr.mxu0 0.0
        %962 = vmatpush1.msra.mxu0 0.0
        %963 = vmatprep.subr.mxu0 0.0
        %964 = vmatpush1.msra.mxu0 0.0
        %965 = vmatprep.subr.mxu0 0.0
        %966 = vmatpush1.msra.mxu0 0.0
        %967 = vmatprep.subr.mxu0 0.0
        %968 = vmatpush1.msra.mxu0 0.0
        %969 = vmatprep.subr.mxu0 0.0
        %970 = vmatpush1.msra.mxu0 0.0
        %971 = vmatprep.subr.mxu0 0.0
        %972 = vmatpush1.msra.mxu0 0.0
        %973 = vmatprep.subr.mxu0 0.0
        %974 = vmatpush1.msra.mxu0 0.0
        %975 = vmatprep.subr.mxu0 0.0
        %976 = vmatpush1.msra.mxu0 0.0
        %977 = vmatprep.subr.mxu0 0.0
        %978 = vmatpush1.msra.mxu0 0.0
        %979 = vmatprep.subr.mxu0 0.0
        %980 = vmatpush1.msra.mxu0 0.0
        %981 = vmatprep.subr.mxu0 0.0
        %982 = vmatpush1.msra.mxu0 0.0
        %983 = vmatprep.subr.mxu0 0.0
        %984 = vmatpush1.msra.mxu0 0.0
        %985 = vmatprep.subr.mxu0 0.0
        %986 = vmatpush1.msra.mxu0 0.0
        %987 = vmatprep.subr.mxu0 0.0
        %988 = vmatpush1.msra.mxu0 0.0
        %989 = vmatprep.subr.mxu0 0.0
        %990 = vmatpush1.msra.mxu0 0.0
        %991 = vmatprep.subr.mxu0 0.0
        %992 = vmatpush1.msra.mxu0 0.0
        %993 = vmatprep.subr.mxu0 0.0
        %994 = vmatpush1.msra.mxu0 0.0
        %995 = vmatprep.subr.mxu0 0.0
        %996 = vmatpush1.msra.mxu0 0.0
        %997 = vmatprep.subr.mxu0 0.0
        %998 = vmatpush1.msra.mxu0 0.0
        %999 = vmatprep.subr.mxu0 0.0
        %1000 = vmatpush1.msra.mxu0 0.0
        %1001 = vmatprep.subr.mxu0 0.0
        %1002 = vmatpush1.msra.mxu0 0.0
        %1003 = vmatprep.subr.mxu0 0.0
        %1004 = vmatpush1.msra.mxu0 0.0
        %1005 = vmatprep.subr.mxu0 0.0
        %1006 = vmatpush1.msra.mxu0 0.0
        %1007 = vmatprep.subr.mxu0 0.0
        %1008 = vmatpush1.msra.mxu0 0.0
        %1009 = vmatprep.subr.mxu0 0.0
        %1010 = vmatpush1.msra.mxu0 0.0
        %1011 = vmatprep.subr.mxu0 0.0
        %1012 = vmatpush1.msra.mxu0 0.0
        %1013 = vmatprep.subr.mxu0 0.0
        %1014 = vmatpush1.msra.mxu0 0.0
        %1015 = vmatprep.subr.mxu0 0.0
        %1016 = vmatpush1.msra.mxu0 0.0
        %1017 = vmatprep.subr.mxu0 0.0
        %1018 = vmatpush1.msra.mxu0 0.0
        %1019 = vmatprep.subr.mxu0 0.0
        %1020 = vmatpush1.msra.mxu0 0.0
        %1021 = vmatprep.mubr.f32.mxu0 0.0
        %1022 = vmatmul.mubr.f32.gmra.mrb[0].mxu0 %v955
        %v1023 = vpop.f32.mrb[0].mxu0
        %v1024 = vadd.f32 0.0, %v1023
        %v1025 = vpop.f32.mrb[0].mxu0
        %1026 = vdwg.mxu0
        %v1028 = vsel %vm416, %v947, 0
        %1030 = vmatprep.subr.mxu0 0.0
        %1031 = vmatpush1.msra.mxu0 %v948
        %1032 = vmatprep.subr.mxu0 0.0
        %1033 = vmatpush1.msra.mxu0 %v949
        %1034 = vmatprep.subr.mxu0 0.0
        %1035 = vmatpush1.msra.mxu0 0.0
        %1036 = vmatprep.subr.mxu0 0.0
        %1037 = vmatpush1.msra.mxu0 0.0
        %1038 = vmatprep.subr.mxu0 0.0
        %1039 = vmatpush1.msra.mxu0 0.0
        %1040 = vmatprep.subr.mxu0 0.0
        %1041 = vmatpush1.msra.mxu0 0.0
        %1042 = vmatprep.subr.mxu0 0.0
        %1043 = vmatpush1.msra.mxu0 0.0
        %1044 = vmatprep.subr.mxu0 0.0
        %1045 = vmatpush1.msra.mxu0 0.0
        %1046 = vmatprep.subr.mxu0 0.0
        %1047 = vmatpush1.msra.mxu0 0.0
        %1048 = vmatprep.subr.mxu0 0.0
        %1049 = vmatpush1.msra.mxu0 0.0
        %1050 = vmatprep.subr.mxu0 0.0
        %1051 = vmatpush1.msra.mxu0 0.0
        %1052 = vmatprep.subr.mxu0 0.0
        %1053 = vmatpush1.msra.mxu0 0.0
        %1054 = vmatprep.subr.mxu0 0.0
        %1055 = vmatpush1.msra.mxu0 0.0
        %1056 = vmatprep.subr.mxu0 0.0
        %1057 = vmatpush1.msra.mxu0 0.0
        %1058 = vmatprep.subr.mxu0 0.0
        %1059 = vmatpush1.msra.mxu0 0.0
        %1060 = vmatprep.subr.mxu0 0.0
        %1061 = vmatpush1.msra.mxu0 0.0
        %1062 = vmatprep.subr.mxu0 0.0
        %1063 = vmatpush1.msra.mxu0 0.0
        %1064 = vmatprep.subr.mxu0 0.0
        %1065 = vmatpush1.msra.mxu0 0.0
        %1066 = vmatprep.subr.mxu0 0.0
        %1067 = vmatpush1.msra.mxu0 0.0
        %1068 = vmatprep.subr.mxu0 0.0
        %1069 = vmatpush1.msra.mxu0 0.0
        %1070 = vmatprep.subr.mxu0 0.0
        %1071 = vmatpush1.msra.mxu0 0.0
        %1072 = vmatprep.subr.mxu0 0.0
        %1073 = vmatpush1.msra.mxu0 0.0
        %1074 = vmatprep.subr.mxu0 0.0
        %1075 = vmatpush1.msra.mxu0 0.0
        %1076 = vmatprep.subr.mxu0 0.0
        %1077 = vmatpush1.msra.mxu0 0.0
        %1078 = vmatprep.subr.mxu0 0.0
        %1079 = vmatpush1.msra.mxu0 0.0
        %1080 = vmatprep.subr.mxu0 0.0
        %1081 = vmatpush1.msra.mxu0 0.0
        %1082 = vmatprep.subr.mxu0 0.0
        %1083 = vmatpush1.msra.mxu0 0.0
        %1084 = vmatprep.subr.mxu0 0.0
        %1085 = vmatpush1.msra.mxu0 0.0
        %1086 = vmatprep.subr.mxu0 0.0
        %1087 = vmatpush1.msra.mxu0 0.0
        %1088 = vmatprep.subr.mxu0 0.0
        %1089 = vmatpush1.msra.mxu0 0.0
        %1090 = vmatprep.subr.mxu0 0.0
        %1091 = vmatpush1.msra.mxu0 0.0
        %1092 = vmatprep.subr.mxu0 0.0
        %1093 = vmatpush1.msra.mxu0 0.0
        %1094 = vmatprep.mubr.f32.mxu0 0.0
        %1095 = vmatmul.mubr.f32.gmra.mrb[0].mxu0 %v1028
        %v1096 = vpop.f32.mrb[0].mxu0
        %v1097 = vadd.f32 %v1024, %v1096
        %v1098 = vpop.f32.mrb[0].mxu0
        %1099 = vdwg.mxu0
        %v1102 = vunpack.c.l.s4 1966171168
        %v1103 = vunpack.c.0.s8 %v1102
        %v1104 = vlaneseq
        %v1105 = vshrl.u32 %v1104, 7
        %v1106 = vsub.s32 %v1103, %v1105
        %v1107 = vrot.slane %v1097, %v1106
        %v1108 = vcombine.high %v1107, %v1107
        %v1110 = vunpack.c.l.s4 1966171168
        %v1111 = vunpack.c.0.s8 %v1110
        %v1112 = vlaneseq
        %v1113 = vshrl.u32 %v1112, 7
        %v1114 = vsub.s32 %v1111, %v1113
        %v1115 = vrot.slane %v1107, %v1114
        %v1117 = vunpack.c.l.s4 1966171168
        %v1118 = vunpack.c.0.s8 %v1117
        %v1119 = vlaneseq
        %v1120 = vshrl.u32 %v1119, 7
        %v1121 = vsub.s32 %v1118, %v1120
        %v1122 = vrot.slane %v1108, %v1121
        %v1123 = vcombine.high %v1115, %v1115
        %v1124 = vcombine.high %v1122, %v1122
        %vm1129 = vcmask 253952
        %1130 = vst.msk [vmem:[%s408] sm:$0x1] %vm1129, %v1115
        %1131 = vst.msk [vmem:[%s408 + $0x10] sm:$0x1] %vm1129, %v1122
        %1132 = vst.msk [vmem:[%s408 + $0x20] sm:$0x1] %vm1129, %v1123
        %1133 = vst.msk [vmem:[%s408 + $0x30] sm:$0x1] %vm1129, %v1124
        %v1134 = vld [vmem:[#allocation4 + $0x4] sm:$0xf]
        %v1135 = vld [vmem:[%s5] sm:$0xff]
        %v1136 = vld [vmem:[%s5 + $0x8] sm:$0xff]
        %v1137 = vld [vmem:[#allocation4 + $0xc] sm:$0xf]
        %v1138 = vld [vmem:[%s951] sm:$0xff]
        %v1139 = vld [vmem:[%s951 + $0x8] sm:$0xff]
        %v1141 = vsel %vm416, %v1137, 0
        %1143 = vmatprep.subr.mxu0 0.0
        %1144 = vmatpush1.msra.mxu0 %v1138
        %1145 = vmatprep.subr.mxu0 0.0
        %1146 = vmatpush1.msra.mxu0 %v1139
        %1147 = vmatprep.subr.mxu0 0.0
        %1148 = vmatpush1.msra.mxu0 0.0
        %1149 = vmatprep.subr.mxu0 0.0
        %1150 = vmatpush1.msra.mxu0 0.0
        %1151 = vmatprep.subr.mxu0 0.0
        %1152 = vmatpush1.msra.mxu0 0.0
        %1153 = vmatprep.subr.mxu0 0.0
        %1154 = vmatpush1.msra.mxu0 0.0
        %1155 = vmatprep.subr.mxu0 0.0
        %1156 = vmatpush1.msra.mxu0 0.0
        %1157 = vmatprep.subr.mxu0 0.0
        %1158 = vmatpush1.msra.mxu0 0.0
        %1159 = vmatprep.subr.mxu0 0.0
        %1160 = vmatpush1.msra.mxu0 0.0
        %1161 = vmatprep.subr.mxu0 0.0
        %1162 = vmatpush1.msra.mxu0 0.0
        %1163 = vmatprep.subr.mxu0 0.0
        %1164 = vmatpush1.msra.mxu0 0.0
        %1165 = vmatprep.subr.mxu0 0.0
        %1166 = vmatpush1.msra.mxu0 0.0
        %1167 = vmatprep.subr.mxu0 0.0
        %1168 = vmatpush1.msra.mxu0 0.0
        %1169 = vmatprep.subr.mxu0 0.0
        %1170 = vmatpush1.msra.mxu0 0.0
        %1171 = vmatprep.subr.mxu0 0.0
        %1172 = vmatpush1.msra.mxu0 0.0
        %1173 = vmatprep.subr.mxu0 0.0
        %1174 = vmatpush1.msra.mxu0 0.0
        %1175 = vmatprep.subr.mxu0 0.0
        %1176 = vmatpush1.msra.mxu0 0.0
        %1177 = vmatprep.subr.mxu0 0.0
        %1178 = vmatpush1.msra.mxu0 0.0
        %1179 = vmatprep.subr.mxu0 0.0
        %1180 = vmatpush1.msra.mxu0 0.0
        %1181 = vmatprep.subr.mxu0 0.0
        %1182 = vmatpush1.msra.mxu0 0.0
        %1183 = vmatprep.subr.mxu0 0.0
        %1184 = vmatpush1.msra.mxu0 0.0
        %1185 = vmatprep.subr.mxu0 0.0
        %1186 = vmatpush1.msra.mxu0 0.0
        %1187 = vmatprep.subr.mxu0 0.0
        %1188 = vmatpush1.msra.mxu0 0.0
        %1189 = vmatprep.subr.mxu0 0.0
        %1190 = vmatpush1.msra.mxu0 0.0
        %1191 = vmatprep.subr.mxu0 0.0
        %1192 = vmatpush1.msra.mxu0 0.0
        %1193 = vmatprep.subr.mxu0 0.0
        %1194 = vmatpush1.msra.mxu0 0.0
        %1195 = vmatprep.subr.mxu0 0.0
        %1196 = vmatpush1.msra.mxu0 0.0
        %1197 = vmatprep.subr.mxu0 0.0
        %1198 = vmatpush1.msra.mxu0 0.0
        %1199 = vmatprep.subr.mxu0 0.0
        %1200 = vmatpush1.msra.mxu0 0.0
        %1201 = vmatprep.subr.mxu0 0.0
        %1202 = vmatpush1.msra.mxu0 0.0
        %1203 = vmatprep.subr.mxu0 0.0
        %1204 = vmatpush1.msra.mxu0 0.0
        %1205 = vmatprep.subr.mxu0 0.0
        %1206 = vmatpush1.msra.mxu0 0.0
        %1207 = vmatprep.mubr.f32.mxu0 0.0
        %1208 = vmatmul.mubr.f32.gmra.mrb[0].mxu0 %v1141
        %v1209 = vpop.f32.mrb[0].mxu0
        %v1210 = vadd.f32 0.0, %v1209
        %v1211 = vpop.f32.mrb[0].mxu0
        %1212 = vdwg.mxu0
        %v1214 = vsel %vm416, %v1134, 0
        %1216 = vmatprep.subr.mxu0 0.0
        %1217 = vmatpush1.msra.mxu0 %v1135
        %1218 = vmatprep.subr.mxu0 0.0
        %1219 = vmatpush1.msra.mxu0 %v1136
        %1220 = vmatprep.subr.mxu0 0.0
        %1221 = vmatpush1.msra.mxu0 0.0
        %1222 = vmatprep.subr.mxu0 0.0
        %1223 = vmatpush1.msra.mxu0 0.0
        %1224 = vmatprep.subr.mxu0 0.0
        %1225 = vmatpush1.msra.mxu0 0.0
        %1226 = vmatprep.subr.mxu0 0.0
        %1227 = vmatpush1.msra.mxu0 0.0
        %1228 = vmatprep.subr.mxu0 0.0
        %1229 = vmatpush1.msra.mxu0 0.0
        %1230 = vmatprep.subr.mxu0 0.0
        %1231 = vmatpush1.msra.mxu0 0.0
        %1232 = vmatprep.subr.mxu0 0.0
        %1233 = vmatpush1.msra.mxu0 0.0
        %1234 = vmatprep.subr.mxu0 0.0
        %1235 = vmatpush1.msra.mxu0 0.0
        %1236 = vmatprep.subr.mxu0 0.0
        %1237 = vmatpush1.msra.mxu0 0.0
        %1238 = vmatprep.subr.mxu0 0.0
        %1239 = vmatpush1.msra.mxu0 0.0
        %1240 = vmatprep.subr.mxu0 0.0
        %1241 = vmatpush1.msra.mxu0 0.0
        %1242 = vmatprep.subr.mxu0 0.0
        %1243 = vmatpush1.msra.mxu0 0.0
        %1244 = vmatprep.subr.mxu0 0.0
        %1245 = vmatpush1.msra.mxu0 0.0
        %1246 = vmatprep.subr.mxu0 0.0
        %1247 = vmatpush1.msra.mxu0 0.0
        %1248 = vmatprep.subr.mxu0 0.0
        %1249 = vmatpush1.msra.mxu0 0.0
        %1250 = vmatprep.subr.mxu0 0.0
        %1251 = vmatpush1.msra.mxu0 0.0
        %1252 = vmatprep.subr.mxu0 0.0
        %1253 = vmatpush1.msra.mxu0 0.0
        %1254 = vmatprep.subr.mxu0 0.0
        %1255 = vmatpush1.msra.mxu0 0.0
        %1256 = vmatprep.subr.mxu0 0.0
        %1257 = vmatpush1.msra.mxu0 0.0
        %1258 = vmatprep.subr.mxu0 0.0
        %1259 = vmatpush1.msra.mxu0 0.0
        %1260 = vmatprep.subr.mxu0 0.0
        %1261 = vmatpush1.msra.mxu0 0.0
        %1262 = vmatprep.subr.mxu0 0.0
        %1263 = vmatpush1.msra.mxu0 0.0
        %1264 = vmatprep.subr.mxu0 0.0
        %1265 = vmatpush1.msra.mxu0 0.0
        %1266 = vmatprep.subr.mxu0 0.0
        %1267 = vmatpush1.msra.mxu0 0.0
        %1268 = vmatprep.subr.mxu0 0.0
        %1269 = vmatpush1.msra.mxu0 0.0
        %1270 = vmatprep.subr.mxu0 0.0
        %1271 = vmatpush1.msra.mxu0 0.0
        %1272 = vmatprep.subr.mxu0 0.0
        %1273 = vmatpush1.msra.mxu0 0.0
        %1274 = vmatprep.subr.mxu0 0.0
        %1275 = vmatpush1.msra.mxu0 0.0
        %1276 = vmatprep.subr.mxu0 0.0
        %1277 = vmatpush1.msra.mxu0 0.0
        %1278 = vmatprep.subr.mxu0 0.0
        %1279 = vmatpush1.msra.mxu0 0.0
        %1280 = vmatprep.mubr.f32.mxu0 0.0
        %1281 = vmatmul.mubr.f32.gmra.mrb[0].mxu0 %v1214
        %v1282 = vpop.f32.mrb[0].mxu0
        %v1283 = vadd.f32 %v1210, %v1282
        %v1284 = vpop.f32.mrb[0].mxu0
        %1285 = vdwg.mxu0
        %v1288 = vunpack.c.l.s4 1966171168
        %v1289 = vunpack.c.0.s8 %v1288
        %v1290 = vlaneseq
        %v1291 = vshrl.u32 %v1290, 7
        %v1292 = vsub.s32 %v1289, %v1291
        %v1293 = vrot.slane %v1283, %v1292
        %v1294 = vcombine.high %v1293, %v1293
        %v1296 = vunpack.c.l.s4 1966171168
        %v1297 = vunpack.c.0.s8 %v1296
        %v1298 = vlaneseq
        %v1299 = vshrl.u32 %v1298, 7
        %v1300 = vsub.s32 %v1297, %v1299
        %v1301 = vrot.slane %v1293, %v1300
        %v1303 = vunpack.c.l.s4 1966171168
        %v1304 = vunpack.c.0.s8 %v1303
        %v1305 = vlaneseq
        %v1306 = vshrl.u32 %v1305, 7
        %v1307 = vsub.s32 %v1304, %v1306
        %v1308 = vrot.slane %v1294, %v1307
        %v1309 = vcombine.high %v1301, %v1301
        %v1310 = vcombine.high %v1308, %v1308
        %1315 = vst.msk [vmem:[%s408 + $0x1] sm:$0x1] %vm1129, %v1301
        %1316 = vst.msk [vmem:[%s408 + $0x11] sm:$0x1] %vm1129, %v1308
        %1317 = vst.msk [vmem:[%s408 + $0x21] sm:$0x1] %vm1129, %v1309
        %1318 = vst.msk [vmem:[%s408 + $0x31] sm:$0x1] %vm1129, %v1310
        %v1319 = vld [vmem:[#allocation4] sm:$0xf]
        %v1320 = vld [vmem:[%s5] sm:$0xff]
        %v1321 = vld [vmem:[%s5 + $0x8] sm:$0xff]
        %v1322 = vld [vmem:[#allocation4 + $0x8] sm:$0xf]
        %v1323 = vld [vmem:[%s951] sm:$0xff]
        %v1324 = vld [vmem:[%s951 + $0x8] sm:$0xff]
        %1326 = vrot.lane.b32.xlu0 %v1322, 112
        %v1327 = vpop.permute.xlu0 %1326
        %v1328 = vsel %vm416, %v1327, 0
        %1330 = vmatprep.subr.mxu0 0.0
        %1331 = vmatpush1.msra.mxu0 %v1323
        %1332 = vmatprep.subr.mxu0 0.0
        %1333 = vmatpush1.msra.mxu0 %v1324
        %1334 = vmatprep.subr.mxu0 0.0
        %1335 = vmatpush1.msra.mxu0 0.0
        %1336 = vmatprep.subr.mxu0 0.0
        %1337 = vmatpush1.msra.mxu0 0.0
        %1338 = vmatprep.subr.mxu0 0.0
        %1339 = vmatpush1.msra.mxu0 0.0
        %1340 = vmatprep.subr.mxu0 0.0
        %1341 = vmatpush1.msra.mxu0 0.0
        %1342 = vmatprep.subr.mxu0 0.0
        %1343 = vmatpush1.msra.mxu0 0.0
        %1344 = vmatprep.subr.mxu0 0.0
        %1345 = vmatpush1.msra.mxu0 0.0
        %1346 = vmatprep.subr.mxu0 0.0
        %1347 = vmatpush1.msra.mxu0 0.0
        %1348 = vmatprep.subr.mxu0 0.0
        %1349 = vmatpush1.msra.mxu0 0.0
        %1350 = vmatprep.subr.mxu0 0.0
        %1351 = vmatpush1.msra.mxu0 0.0
        %1352 = vmatprep.subr.mxu0 0.0
        %1353 = vmatpush1.msra.mxu0 0.0
        %1354 = vmatprep.subr.mxu0 0.0
        %1355 = vmatpush1.msra.mxu0 0.0
        %1356 = vmatprep.subr.mxu0 0.0
        %1357 = vmatpush1.msra.mxu0 0.0
        %1358 = vmatprep.subr.mxu0 0.0
        %1359 = vmatpush1.msra.mxu0 0.0
        %1360 = vmatprep.subr.mxu0 0.0
        %1361 = vmatpush1.msra.mxu0 0.0
        %1362 = vmatprep.subr.mxu0 0.0
        %1363 = vmatpush1.msra.mxu0 0.0
        %1364 = vmatprep.subr.mxu0 0.0
        %1365 = vmatpush1.msra.mxu0 0.0
        %1366 = vmatprep.subr.mxu0 0.0
        %1367 = vmatpush1.msra.mxu0 0.0
        %1368 = vmatprep.subr.mxu0 0.0
        %1369 = vmatpush1.msra.mxu0 0.0
        %1370 = vmatprep.subr.mxu0 0.0
        %1371 = vmatpush1.msra.mxu0 0.0
        %1372 = vmatprep.subr.mxu0 0.0
        %1373 = vmatpush1.msra.mxu0 0.0
        %1374 = vmatprep.subr.mxu0 0.0
        %1375 = vmatpush1.msra.mxu0 0.0
        %1376 = vmatprep.subr.mxu0 0.0
        %1377 = vmatpush1.msra.mxu0 0.0
        %1378 = vmatprep.subr.mxu0 0.0
        %1379 = vmatpush1.msra.mxu0 0.0
        %1380 = vmatprep.subr.mxu0 0.0
        %1381 = vmatpush1.msra.mxu0 0.0
        %1382 = vmatprep.subr.mxu0 0.0
        %1383 = vmatpush1.msra.mxu0 0.0
        %1384 = vmatprep.subr.mxu0 0.0
        %1385 = vmatpush1.msra.mxu0 0.0
        %1386 = vmatprep.subr.mxu0 0.0
        %1387 = vmatpush1.msra.mxu0 0.0
        %1388 = vmatprep.subr.mxu0 0.0
        %1389 = vmatpush1.msra.mxu0 0.0
        %1390 = vmatprep.subr.mxu0 0.0
        %1391 = vmatpush1.msra.mxu0 0.0
        %1392 = vmatprep.subr.mxu0 0.0
        %1393 = vmatpush1.msra.mxu0 0.0
        %1394 = vmatprep.mubr.f32.mxu0 0.0
        %1395 = vmatmul.mubr.f32.gmra.mrb[0].mxu0 %v1328
        %v1396 = vpop.f32.mrb[0].mxu0
        %v1397 = vadd.f32 0.0, %v1396
        %v1398 = vpop.f32.mrb[0].mxu0
        %1399 = vdwg.mxu0
        %1401 = vrot.lane.b32.xlu0 %v1319, 112
        %v1402 = vpop.permute.xlu0 %1401
        %v1403 = vsel %vm416, %v1402, 0
        %1405 = vmatprep.subr.mxu0 0.0
        %1406 = vmatpush1.msra.mxu0 %v1320
        %1407 = vmatprep.subr.mxu0 0.0
        %1408 = vmatpush1.msra.mxu0 %v1321
        %1409 = vmatprep.subr.mxu0 0.0
        %1410 = vmatpush1.msra.mxu0 0.0
        %1411 = vmatprep.subr.mxu0 0.0
        %1412 = vmatpush1.msra.mxu0 0.0
        %1413 = vmatprep.subr.mxu0 0.0
        %1414 = vmatpush1.msra.mxu0 0.0
        %1415 = vmatprep.subr.mxu0 0.0
        %1416 = vmatpush1.msra.mxu0 0.0
        %1417 = vmatprep.subr.mxu0 0.0
        %1418 = vmatpush1.msra.mxu0 0.0
        %1419 = vmatprep.subr.mxu0 0.0
        %1420 = vmatpush1.msra.mxu0 0.0
        %1421 = vmatprep.subr.mxu0 0.0
        %1422 = vmatpush1.msra.mxu0 0.0
        %1423 = vmatprep.subr.mxu0 0.0
        %1424 = vmatpush1.msra.mxu0 0.0
        %1425 = vmatprep.subr.mxu0 0.0
        %1426 = vmatpush1.msra.mxu0 0.0
        %1427 = vmatprep.subr.mxu0 0.0
        %1428 = vmatpush1.msra.mxu0 0.0
        %1429 = vmatprep.subr.mxu0 0.0
        %1430 = vmatpush1.msra.mxu0 0.0
        %1431 = vmatprep.subr.mxu0 0.0
        %1432 = vmatpush1.msra.mxu0 0.0
        %1433 = vmatprep.subr.mxu0 0.0
        %1434 = vmatpush1.msra.mxu0 0.0
        %1435 = vmatprep.subr.mxu0 0.0
        %1436 = vmatpush1.msra.mxu0 0.0
        %1437 = vmatprep.subr.mxu0 0.0
        %1438 = vmatpush1.msra.mxu0 0.0
        %1439 = vmatprep.subr.mxu0 0.0
        %1440 = vmatpush1.msra.mxu0 0.0
        %1441 = vmatprep.subr.mxu0 0.0
        %1442 = vmatpush1.msra.mxu0 0.0
        %1443 = vmatprep.subr.mxu0 0.0
        %1444 = vmatpush1.msra.mxu0 0.0
        %1445 = vmatprep.subr.mxu0 0.0
        %1446 = vmatpush1.msra.mxu0 0.0
        %1447 = vmatprep.subr.mxu0 0.0
        %1448 = vmatpush1.msra.mxu0 0.0
        %1449 = vmatprep.subr.mxu0 0.0
        %1450 = vmatpush1.msra.mxu0 0.0
        %1451 = vmatprep.subr.mxu0 0.0
        %1452 = vmatpush1.msra.mxu0 0.0
        %1453 = vmatprep.subr.mxu0 0.0
        %1454 = vmatpush1.msra.mxu0 0.0
        %1455 = vmatprep.subr.mxu0 0.0
        %1456 = vmatpush1.msra.mxu0 0.0
        %1457 = vmatprep.subr.mxu0 0.0
        %1458 = vmatpush1.msra.mxu0 0.0
        %1459 = vmatprep.subr.mxu0 0.0
        %1460 = vmatpush1.msra.mxu0 0.0
        %1461 = vmatprep.subr.mxu0 0.0
        %1462 = vmatpush1.msra.mxu0 0.0
        %1463 = vmatprep.subr.mxu0 0.0
        %1464 = vmatpush1.msra.mxu0 0.0
        %1465 = vmatprep.subr.mxu0 0.0
        %1466 = vmatpush1.msra.mxu0 0.0
        %1467 = vmatprep.subr.mxu0 0.0
        %1468 = vmatpush1.msra.mxu0 0.0
        %1469 = vmatprep.mubr.f32.mxu0 0.0
        %1470 = vmatmul.mubr.f32.gmra.mrb[0].mxu0 %v1403
        %v1471 = vpop.f32.mrb[0].mxu0
        %v1472 = vadd.f32 %v1397, %v1471
        %v1473 = vpop.f32.mrb[0].mxu0
        %1474 = vdwg.mxu0
        %v1477 = vunpack.c.l.s4 1966171168
        %v1478 = vunpack.c.0.s8 %v1477
        %v1479 = vlaneseq
        %v1480 = vshrl.u32 %v1479, 7
        %v1481 = vsub.s32 %v1478, %v1480
        %v1482 = vrot.slane %v1472, %v1481
        %v1483 = vcombine.high %v1482, %v1482
        %v1485 = vunpack.c.l.s4 1966171168
        %v1486 = vunpack.c.0.s8 %v1485
        %v1487 = vlaneseq
        %v1488 = vshrl.u32 %v1487, 7
        %v1489 = vsub.s32 %v1486, %v1488
        %v1490 = vrot.slane %v1482, %v1489
        %v1492 = vunpack.c.l.s4 1966171168
        %v1493 = vunpack.c.0.s8 %v1492
        %v1494 = vlaneseq
        %v1495 = vshrl.u32 %v1494, 7
        %v1496 = vsub.s32 %v1493, %v1495
        %v1497 = vrot.slane %v1483, %v1496
        %v1498 = vcombine.high %v1490, %v1490
        %v1499 = vcombine.high %v1497, %v1497
        %1504 = vst.msk [vmem:[%s408 + $0x2] sm:$0x1] %vm1129, %v1490
        %1505 = vst.msk [vmem:[%s408 + $0x12] sm:$0x1] %vm1129, %v1497
        %1506 = vst.msk [vmem:[%s408 + $0x22] sm:$0x1] %vm1129, %v1498
        %1507 = vst.msk [vmem:[%s408 + $0x32] sm:$0x1] %vm1129, %v1499
        %v1508 = vld [vmem:[#allocation4 + $0x4] sm:$0xf]
        %v1509 = vld [vmem:[%s5] sm:$0xff]
        %v1510 = vld [vmem:[%s5 + $0x8] sm:$0xff]
        %v1511 = vld [vmem:[#allocation4 + $0xc] sm:$0xf]
        %v1512 = vld [vmem:[%s951] sm:$0xff]
        %v1513 = vld [vmem:[%s951 + $0x8] sm:$0xff]
        %1515 = vrot.lane.b32.xlu0 %v1511, 112
        %v1516 = vpop.permute.xlu0 %1515
        %v1517 = vsel %vm416, %v1516, 0
        %1519 = vmatprep.subr.mxu0 0.0
        %1520 = vmatpush1.msra.mxu0 %v1512
        %1521 = vmatprep.subr.mxu0 0.0
        %1522 = vmatpush1.msra.mxu0 %v1513
        %1523 = vmatprep.subr.mxu0 0.0
        %1524 = vmatpush1.msra.mxu0 0.0
        %1525 = vmatprep.subr.mxu0 0.0
        %1526 = vmatpush1.msra.mxu0 0.0
        %1527 = vmatprep.subr.mxu0 0.0
        %1528 = vmatpush1.msra.mxu0 0.0
        %1529 = vmatprep.subr.mxu0 0.0
        %1530 = vmatpush1.msra.mxu0 0.0
        %1531 = vmatprep.subr.mxu0 0.0
        %1532 = vmatpush1.msra.mxu0 0.0
        %1533 = vmatprep.subr.mxu0 0.0
        %1534 = vmatpush1.msra.mxu0 0.0
        %1535 = vmatprep.subr.mxu0 0.0
        %1536 = vmatpush1.msra.mxu0 0.0
        %1537 = vmatprep.subr.mxu0 0.0
        %1538 = vmatpush1.msra.mxu0 0.0
        %1539 = vmatprep.subr.mxu0 0.0
        %1540 = vmatpush1.msra.mxu0 0.0
        %1541 = vmatprep.subr.mxu0 0.0
        %1542 = vmatpush1.msra.mxu0 0.0
        %1543 = vmatprep.subr.mxu0 0.0
        %1544 = vmatpush1.msra.mxu0 0.0
        %1545 = vmatprep.subr.mxu0 0.0
        %1546 = vmatpush1.msra.mxu0 0.0
        %1547 = vmatprep.subr.mxu0 0.0
        %1548 = vmatpush1.msra.mxu0 0.0
        %1549 = vmatprep.subr.mxu0 0.0
        %1550 = vmatpush1.msra.mxu0 0.0
        %1551 = vmatprep.subr.mxu0 0.0
        %1552 = vmatpush1.msra.mxu0 0.0
        %1553 = vmatprep.subr.mxu0 0.0
        %1554 = vmatpush1.msra.mxu0 0.0
        %1555 = vmatprep.subr.mxu0 0.0
        %1556 = vmatpush1.msra.mxu0 0.0
        %1557 = vmatprep.subr.mxu0 0.0
        %1558 = vmatpush1.msra.mxu0 0.0
        %1559 = vmatprep.subr.mxu0 0.0
        %1560 = vmatpush1.msra.mxu0 0.0
        %1561 = vmatprep.subr.mxu0 0.0
        %1562 = vmatpush1.msra.mxu0 0.0
        %1563 = vmatprep.subr.mxu0 0.0
        %1564 = vmatpush1.msra.mxu0 0.0
        %1565 = vmatprep.subr.mxu0 0.0
        %1566 = vmatpush1.msra.mxu0 0.0
        %1567 = vmatprep.subr.mxu0 0.0
        %1568 = vmatpush1.msra.mxu0 0.0
        %1569 = vmatprep.subr.mxu0 0.0
        %1570 = vmatpush1.msra.mxu0 0.0
        %1571 = vmatprep.subr.mxu0 0.0
        %1572 = vmatpush1.msra.mxu0 0.0
        %1573 = vmatprep.subr.mxu0 0.0
        %1574 = vmatpush1.msra.mxu0 0.0
        %1575 = vmatprep.subr.mxu0 0.0
        %1576 = vmatpush1.msra.mxu0 0.0
        %1577 = vmatprep.subr.mxu0 0.0
        %1578 = vmatpush1.msra.mxu0 0.0
        %1579 = vmatprep.subr.mxu0 0.0
        %1580 = vmatpush1.msra.mxu0 0.0
        %1581 = vmatprep.subr.mxu0 0.0
        %1582 = vmatpush1.msra.mxu0 0.0
        %1583 = vmatprep.mubr.f32.mxu0 0.0
        %1584 = vmatmul.mubr.f32.gmra.mrb[0].mxu0 %v1517
        %v1585 = vpop.f32.mrb[0].mxu0
        %v1586 = vadd.f32 0.0, %v1585
        %v1587 = vpop.f32.mrb[0].mxu0
        %1588 = vdwg.mxu0
        %1590 = vrot.lane.b32.xlu0 %v1508, 112
        %v1591 = vpop.permute.xlu0 %1590
        %v1592 = vsel %vm416, %v1591, 0
        %1594 = vmatprep.subr.mxu0 0.0
        %1595 = vmatpush1.msra.mxu0 %v1509
        %1596 = vmatprep.subr.mxu0 0.0
        %1597 = vmatpush1.msra.mxu0 %v1510
        %1598 = vmatprep.subr.mxu0 0.0
        %1599 = vmatpush1.msra.mxu0 0.0
        %1600 = vmatprep.subr.mxu0 0.0
        %1601 = vmatpush1.msra.mxu0 0.0
        %1602 = vmatprep.subr.mxu0 0.0
        %1603 = vmatpush1.msra.mxu0 0.0
        %1604 = vmatprep.subr.mxu0 0.0
        %1605 = vmatpush1.msra.mxu0 0.0
        %1606 = vmatprep.subr.mxu0 0.0
        %1607 = vmatpush1.msra.mxu0 0.0
        %1608 = vmatprep.subr.mxu0 0.0
        %1609 = vmatpush1.msra.mxu0 0.0
        %1610 = vmatprep.subr.mxu0 0.0
        %1611 = vmatpush1.msra.mxu0 0.0
        %1612 = vmatprep.subr.mxu0 0.0
        %1613 = vmatpush1.msra.mxu0 0.0
        %1614 = vmatprep.subr.mxu0 0.0
        %1615 = vmatpush1.msra.mxu0 0.0
        %1616 = vmatprep.subr.mxu0 0.0
        %1617 = vmatpush1.msra.mxu0 0.0
        %1618 = vmatprep.subr.mxu0 0.0
        %1619 = vmatpush1.msra.mxu0 0.0
        %1620 = vmatprep.subr.mxu0 0.0
        %1621 = vmatpush1.msra.mxu0 0.0
        %1622 = vmatprep.subr.mxu0 0.0
        %1623 = vmatpush1.msra.mxu0 0.0
        %1624 = vmatprep.subr.mxu0 0.0
        %1625 = vmatpush1.msra.mxu0 0.0
        %1626 = vmatprep.subr.mxu0 0.0
        %1627 = vmatpush1.msra.mxu0 0.0
        %1628 = vmatprep.subr.mxu0 0.0
        %1629 = vmatpush1.msra.mxu0 0.0
        %1630 = vmatprep.subr.mxu0 0.0
        %1631 = vmatpush1.msra.mxu0 0.0
        %1632 = vmatprep.subr.mxu0 0.0
        %1633 = vmatpush1.msra.mxu0 0.0
        %1634 = vmatprep.subr.mxu0 0.0
        %1635 = vmatpush1.msra.mxu0 0.0
        %1636 = vmatprep.subr.mxu0 0.0
        %1637 = vmatpush1.msra.mxu0 0.0
        %1638 = vmatprep.subr.mxu0 0.0
        %1639 = vmatpush1.msra.mxu0 0.0
        %1640 = vmatprep.subr.mxu0 0.0
        %1641 = vmatpush1.msra.mxu0 0.0
        %1642 = vmatprep.subr.mxu0 0.0
        %1643 = vmatpush1.msra.mxu0 0.0
        %1644 = vmatprep.subr.mxu0 0.0
        %1645 = vmatpush1.msra.mxu0 0.0
        %1646 = vmatprep.subr.mxu0 0.0
        %1647 = vmatpush1.msra.mxu0 0.0
        %1648 = vmatprep.subr.mxu0 0.0
        %1649 = vmatpush1.msra.mxu0 0.0
        %1650 = vmatprep.subr.mxu0 0.0
        %1651 = vmatpush1.msra.mxu0 0.0
        %1652 = vmatprep.subr.mxu0 0.0
        %1653 = vmatpush1.msra.mxu0 0.0
        %1654 = vmatprep.subr.mxu0 0.0
        %1655 = vmatpush1.msra.mxu0 0.0
        %1656 = vmatprep.subr.mxu0 0.0
        %1657 = vmatpush1.msra.mxu0 0.0
        %1658 = vmatprep.mubr.f32.mxu0 0.0
        %1659 = vmatmul.mubr.f32.gmra.mrb[0].mxu0 %v1592
        %v1660 = vpop.f32.mrb[0].mxu0
        %v1661 = vadd.f32 %v1586, %v1660
        %v1662 = vpop.f32.mrb[0].mxu0
        %1663 = vdwg.mxu0
        %v1666 = vunpack.c.l.s4 1966171168
        %v1667 = vunpack.c.0.s8 %v1666
        %v1668 = vlaneseq
        %v1669 = vshrl.u32 %v1668, 7
        %v1670 = vsub.s32 %v1667, %v1669
        %v1671 = vrot.slane %v1661, %v1670
        %v1672 = vcombine.high %v1671, %v1671
        %v1674 = vunpack.c.l.s4 1966171168
        %v1675 = vunpack.c.0.s8 %v1674
        %v1676 = vlaneseq
        %v1677 = vshrl.u32 %v1676, 7
        %v1678 = vsub.s32 %v1675, %v1677
        %v1679 = vrot.slane %v1671, %v1678
        %v1681 = vunpack.c.l.s4 1966171168
        %v1682 = vunpack.c.0.s8 %v1681
        %v1683 = vlaneseq
        %v1684 = vshrl.u32 %v1683, 7
        %v1685 = vsub.s32 %v1682, %v1684
        %v1686 = vrot.slane %v1672, %v1685
        %v1687 = vcombine.high %v1679, %v1679
        %v1688 = vcombine.high %v1686, %v1686
        %1693 = vst.msk [vmem:[%s408 + $0x3] sm:$0x1] %vm1129, %v1679
        %1694 = vst.msk [vmem:[%s408 + $0x13] sm:$0x1] %vm1129, %v1686
        %1695 = vst.msk [vmem:[%s408 + $0x23] sm:$0x1] %vm1129, %v1687
        %1696 = vst.msk [vmem:[%s408 + $0x33] sm:$0x1] %vm1129, %v1688
        %v1697 = vld [vmem:[#allocation4] sm:$0xf]
        %v1698 = vld [vmem:[%s5] sm:$0xff]
        %v1699 = vld [vmem:[%s5 + $0x8] sm:$0xff]
        %v1700 = vld [vmem:[#allocation4 + $0x8] sm:$0xf]
        %v1701 = vld [vmem:[%s951] sm:$0xff]
        %v1702 = vld [vmem:[%s951 + $0x8] sm:$0xff]
        %1704 = vrot.lane.b32.xlu0 %v1700, 96
        %v1705 = vpop.permute.xlu0 %1704
        %v1706 = vsel %vm416, %v1705, 0
        %1708 = vmatprep.subr.mxu0 0.0
        %1709 = vmatpush1.msra.mxu0 %v1701
        %1710 = vmatprep.subr.mxu0 0.0
        %1711 = vmatpush1.msra.mxu0 %v1702
        %1712 = vmatprep.subr.mxu0 0.0
        %1713 = vmatpush1.msra.mxu0 0.0
        %1714 = vmatprep.subr.mxu0 0.0
        %1715 = vmatpush1.msra.mxu0 0.0
        %1716 = vmatprep.subr.mxu0 0.0
        %1717 = vmatpush1.msra.mxu0 0.0
        %1718 = vmatprep.subr.mxu0 0.0
        %1719 = vmatpush1.msra.mxu0 0.0
        %1720 = vmatprep.subr.mxu0 0.0
        %1721 = vmatpush1.msra.mxu0 0.0
        %1722 = vmatprep.subr.mxu0 0.0
        %1723 = vmatpush1.msra.mxu0 0.0
        %1724 = vmatprep.subr.mxu0 0.0
        %1725 = vmatpush1.msra.mxu0 0.0
        %1726 = vmatprep.subr.mxu0 0.0
        %1727 = vmatpush1.msra.mxu0 0.0
        %1728 = vmatprep.subr.mxu0 0.0
        %1729 = vmatpush1.msra.mxu0 0.0
        %1730 = vmatprep.subr.mxu0 0.0
        %1731 = vmatpush1.msra.mxu0 0.0
        %1732 = vmatprep.subr.mxu0 0.0
        %1733 = vmatpush1.msra.mxu0 0.0
        %1734 = vmatprep.subr.mxu0 0.0
        %1735 = vmatpush1.msra.mxu0 0.0
        %1736 = vmatprep.subr.mxu0 0.0
        %1737 = vmatpush1.msra.mxu0 0.0
        %1738 = vmatprep.subr.mxu0 0.0
        %1739 = vmatpush1.msra.mxu0 0.0
        %1740 = vmatprep.subr.mxu0 0.0
        %1741 = vmatpush1.msra.mxu0 0.0
        %1742 = vmatprep.subr.mxu0 0.0
        %1743 = vmatpush1.msra.mxu0 0.0
        %1744 = vmatprep.subr.mxu0 0.0
        %1745 = vmatpush1.msra.mxu0 0.0
        %1746 = vmatprep.subr.mxu0 0.0
        %1747 = vmatpush1.msra.mxu0 0.0
        %1748 = vmatprep.subr.mxu0 0.0
        %1749 = vmatpush1.msra.mxu0 0.0
        %1750 = vmatprep.subr.mxu0 0.0
        %1751 = vmatpush1.msra.mxu0 0.0
        %1752 = vmatprep.subr.mxu0 0.0
        %1753 = vmatpush1.msra.mxu0 0.0
        %1754 = vmatprep.subr.mxu0 0.0
        %1755 = vmatpush1.msra.mxu0 0.0
        %1756 = vmatprep.subr.mxu0 0.0
        %1757 = vmatpush1.msra.mxu0 0.0
        %1758 = vmatprep.subr.mxu0 0.0
        %1759 = vmatpush1.msra.mxu0 0.0
        %1760 = vmatprep.subr.mxu0 0.0
        %1761 = vmatpush1.msra.mxu0 0.0
        %1762 = vmatprep.subr.mxu0 0.0
        %1763 = vmatpush1.msra.mxu0 0.0
        %1764 = vmatprep.subr.mxu0 0.0
        %1765 = vmatpush1.msra.mxu0 0.0
        %1766 = vmatprep.subr.mxu0 0.0
        %1767 = vmatpush1.msra.mxu0 0.0
        %1768 = vmatprep.subr.mxu0 0.0
        %1769 = vmatpush1.msra.mxu0 0.0
        %1770 = vmatprep.subr.mxu0 0.0
        %1771 = vmatpush1.msra.mxu0 0.0
        %1772 = vmatprep.mubr.f32.mxu0 0.0
        %1773 = vmatmul.mubr.f32.gmra.mrb[0].mxu0 %v1706
        %v1774 = vpop.f32.mrb[0].mxu0
        %v1775 = vadd.f32 0.0, %v1774
        %v1776 = vpop.f32.mrb[0].mxu0
        %1777 = vdwg.mxu0
        %1779 = vrot.lane.b32.xlu0 %v1697, 96
        %v1780 = vpop.permute.xlu0 %1779
        %v1781 = vsel %vm416, %v1780, 0
        %1783 = vmatprep.subr.mxu0 0.0
        %1784 = vmatpush1.msra.mxu0 %v1698
        %1785 = vmatprep.subr.mxu0 0.0
        %1786 = vmatpush1.msra.mxu0 %v1699
        %1787 = vmatprep.subr.mxu0 0.0
        %1788 = vmatpush1.msra.mxu0 0.0
        %1789 = vmatprep.subr.mxu0 0.0
        %1790 = vmatpush1.msra.mxu0 0.0
        %1791 = vmatprep.subr.mxu0 0.0
        %1792 = vmatpush1.msra.mxu0 0.0
        %1793 = vmatprep.subr.mxu0 0.0
        %1794 = vmatpush1.msra.mxu0 0.0
        %1795 = vmatprep.subr.mxu0 0.0
        %1796 = vmatpush1.msra.mxu0 0.0
        %1797 = vmatprep.subr.mxu0 0.0
        %1798 = vmatpush1.msra.mxu0 0.0
        %1799 = vmatprep.subr.mxu0 0.0
        %1800 = vmatpush1.msra.mxu0 0.0
        %1801 = vmatprep.subr.mxu0 0.0
        %1802 = vmatpush1.msra.mxu0 0.0
        %1803 = vmatprep.subr.mxu0 0.0
        %1804 = vmatpush1.msra.mxu0 0.0
        %1805 = vmatprep.subr.mxu0 0.0
        %1806 = vmatpush1.msra.mxu0 0.0
        %1807 = vmatprep.subr.mxu0 0.0
        %1808 = vmatpush1.msra.mxu0 0.0
        %1809 = vmatprep.subr.mxu0 0.0
        %1810 = vmatpush1.msra.mxu0 0.0
        %1811 = vmatprep.subr.mxu0 0.0
        %1812 = vmatpush1.msra.mxu0 0.0
        %1813 = vmatprep.subr.mxu0 0.0
        %1814 = vmatpush1.msra.mxu0 0.0
        %1815 = vmatprep.subr.mxu0 0.0
        %1816 = vmatpush1.msra.mxu0 0.0
        %1817 = vmatprep.subr.mxu0 0.0
        %1818 = vmatpush1.msra.mxu0 0.0
        %1819 = vmatprep.subr.mxu0 0.0
        %1820 = vmatpush1.msra.mxu0 0.0
        %1821 = vmatprep.subr.mxu0 0.0
        %1822 = vmatpush1.msra.mxu0 0.0
        %1823 = vmatprep.subr.mxu0 0.0
        %1824 = vmatpush1.msra.mxu0 0.0
        %1825 = vmatprep.subr.mxu0 0.0
        %1826 = vmatpush1.msra.mxu0 0.0
        %1827 = vmatprep.subr.mxu0 0.0
        %1828 = vmatpush1.msra.mxu0 0.0
        %1829 = vmatprep.subr.mxu0 0.0
        %1830 = vmatpush1.msra.mxu0 0.0
        %1831 = vmatprep.subr.mxu0 0.0
        %1832 = vmatpush1.msra.mxu0 0.0
        %1833 = vmatprep.subr.mxu0 0.0
        %1834 = vmatpush1.msra.mxu0 0.0
        %1835 = vmatprep.subr.mxu0 0.0
        %1836 = vmatpush1.msra.mxu0 0.0
        %1837 = vmatprep.subr.mxu0 0.0
        %1838 = vmatpush1.msra.mxu0 0.0
        %1839 = vmatprep.subr.mxu0 0.0
        %1840 = vmatpush1.msra.mxu0 0.0
        %1841 = vmatprep.subr.mxu0 0.0
        %1842 = vmatpush1.msra.mxu0 0.0
        %1843 = vmatprep.subr.mxu0 0.0
        %1844 = vmatpush1.msra.mxu0 0.0
        %1845 = vmatprep.subr.mxu0 0.0
        %1846 = vmatpush1.msra.mxu0 0.0
        %1847 = vmatprep.mubr.f32.mxu0 0.0
        %1848 = vmatmul.mubr.f32.gmra.mrb[0].mxu0 %v1781
        %v1849 = vpop.f32.mrb[0].mxu0
        %v1850 = vadd.f32 %v1775, %v1849
        %v1851 = vpop.f32.mrb[0].mxu0
        %1852 = vdwg.mxu0
        %v1855 = vunpack.c.l.s4 1966171168
        %v1856 = vunpack.c.0.s8 %v1855
        %v1857 = vlaneseq
        %v1858 = vshrl.u32 %v1857, 7
        %v1859 = vsub.s32 %v1856, %v1858
        %v1860 = vrot.slane %v1850, %v1859
        %v1861 = vcombine.high %v1860, %v1860
        %v1863 = vunpack.c.l.s4 1966171168
        %v1864 = vunpack.c.0.s8 %v1863
        %v1865 = vlaneseq
        %v1866 = vshrl.u32 %v1865, 7
        %v1867 = vsub.s32 %v1864, %v1866
        %v1868 = vrot.slane %v1860, %v1867
        %v1870 = vunpack.c.l.s4 1966171168
        %v1871 = vunpack.c.0.s8 %v1870
        %v1872 = vlaneseq
        %v1873 = vshrl.u32 %v1872, 7
        %v1874 = vsub.s32 %v1871, %v1873
        %v1875 = vrot.slane %v1861, %v1874
        %v1876 = vcombine.high %v1868, %v1868
        %v1877 = vcombine.high %v1875, %v1875
        %1882 = vst.msk [vmem:[%s408 + $0x4] sm:$0x1] %vm1129, %v1868
        %1883 = vst.msk [vmem:[%s408 + $0x14] sm:$0x1] %vm1129, %v1875
        %1884 = vst.msk [vmem:[%s408 + $0x24] sm:$0x1] %vm1129, %v1876
        %1885 = vst.msk [vmem:[%s408 + $0x34] sm:$0x1] %vm1129, %v1877
        %v1886 = vld [vmem:[#allocation4 + $0x4] sm:$0xf]
        %v1887 = vld [vmem:[%s5] sm:$0xff]
        %v1888 = vld [vmem:[%s5 + $0x8] sm:$0xff]
        %v1889 = vld [vmem:[#allocation4 + $0xc] sm:$0xf]
        %v1890 = vld [vmem:[%s951] sm:$0xff]
        %v1891 = vld [vmem:[%s951 + $0x8] sm:$0xff]
        %1893 = vrot.lane.b32.xlu0 %v1889, 96
        %v1894 = vpop.permute.xlu0 %1893
        %v1895 = vsel %vm416, %v1894, 0
        %1897 = vmatprep.subr.mxu0 0.0
        %1898 = vmatpush1.msra.mxu0 %v1890
        %1899 = vmatprep.subr.mxu0 0.0
        %1900 = vmatpush1.msra.mxu0 %v1891
        %1901 = vmatprep.subr.mxu0 0.0
        %1902 = vmatpush1.msra.mxu0 0.0
        %1903 = vmatprep.subr.mxu0 0.0
        %1904 = vmatpush1.msra.mxu0 0.0
        %1905 = vmatprep.subr.mxu0 0.0
        %1906 = vmatpush1.msra.mxu0 0.0
        %1907 = vmatprep.subr.mxu0 0.0
        %1908 = vmatpush1.msra.mxu0 0.0
        %1909 = vmatprep.subr.mxu0 0.0
        %1910 = vmatpush1.msra.mxu0 0.0
        %1911 = vmatprep.subr.mxu0 0.0
        %1912 = vmatpush1.msra.mxu0 0.0
        %1913 = vmatprep.subr.mxu0 0.0
        %1914 = vmatpush1.msra.mxu0 0.0
        %1915 = vmatprep.subr.mxu0 0.0
        %1916 = vmatpush1.msra.mxu0 0.0
        %1917 = vmatprep.subr.mxu0 0.0
        %1918 = vmatpush1.msra.mxu0 0.0
        %1919 = vmatprep.subr.mxu0 0.0
        %1920 = vmatpush1.msra.mxu0 0.0
        %1921 = vmatprep.subr.mxu0 0.0
        %1922 = vmatpush1.msra.mxu0 0.0
        %1923 = vmatprep.subr.mxu0 0.0
        %1924 = vmatpush1.msra.mxu0 0.0
        %1925 = vmatprep.subr.mxu0 0.0
        %1926 = vmatpush1.msra.mxu0 0.0
        %1927 = vmatprep.subr.mxu0 0.0
        %1928 = vmatpush1.msra.mxu0 0.0
        %1929 = vmatprep.subr.mxu0 0.0
        %1930 = vmatpush1.msra.mxu0 0.0
        %1931 = vmatprep.subr.mxu0 0.0
        %1932 = vmatpush1.msra.mxu0 0.0
        %1933 = vmatprep.subr.mxu0 0.0
        %1934 = vmatpush1.msra.mxu0 0.0
        %1935 = vmatprep.subr.mxu0 0.0
        %1936 = vmatpush1.msra.mxu0 0.0
        %1937 = vmatprep.subr.mxu0 0.0
        %1938 = vmatpush1.msra.mxu0 0.0
        %1939 = vmatprep.subr.mxu0 0.0
        %1940 = vmatpush1.msra.mxu0 0.0
        %1941 = vmatprep.subr.mxu0 0.0
        %1942 = vmatpush1.msra.mxu0 0.0
        %1943 = vmatprep.subr.mxu0 0.0
        %1944 = vmatpush1.msra.mxu0 0.0
        %1945 = vmatprep.subr.mxu0 0.0
        %1946 = vmatpush1.msra.mxu0 0.0
        %1947 = vmatprep.subr.mxu0 0.0
        %1948 = vmatpush1.msra.mxu0 0.0
        %1949 = vmatprep.subr.mxu0 0.0
        %1950 = vmatpush1.msra.mxu0 0.0
        %1951 = vmatprep.subr.mxu0 0.0
        %1952 = vmatpush1.msra.mxu0 0.0
        %1953 = vmatprep.subr.mxu0 0.0
        %1954 = vmatpush1.msra.mxu0 0.0
        %1955 = vmatprep.subr.mxu0 0.0
        %1956 = vmatpush1.msra.mxu0 0.0
        %1957 = vmatprep.subr.mxu0 0.0
        %1958 = vmatpush1.msra.mxu0 0.0
        %1959 = vmatprep.subr.mxu0 0.0
        %1960 = vmatpush1.msra.mxu0 0.0
        %1961 = vmatprep.mubr.f32.mxu0 0.0
        %1962 = vmatmul.mubr.f32.gmra.mrb[0].mxu0 %v1895
        %v1963 = vpop.f32.mrb[0].mxu0
        %v1964 = vadd.f32 0.0, %v1963
        %v1965 = vpop.f32.mrb[0].mxu0
        %1966 = vdwg.mxu0
        %1968 = vrot.lane.b32.xlu0 %v1886, 96
        %v1969 = vpop.permute.xlu0 %1968
        %v1970 = vsel %vm416, %v1969, 0
        %1972 = vmatprep.subr.mxu0 0.0
        %1973 = vmatpush1.msra.mxu0 %v1887
        %1974 = vmatprep.subr.mxu0 0.0
        %1975 = vmatpush1.msra.mxu0 %v1888
        %1976 = vmatprep.subr.mxu0 0.0
        %1977 = vmatpush1.msra.mxu0 0.0
        %1978 = vmatprep.subr.mxu0 0.0
        %1979 = vmatpush1.msra.mxu0 0.0
        %1980 = vmatprep.subr.mxu0 0.0
        %1981 = vmatpush1.msra.mxu0 0.0
        %1982 = vmatprep.subr.mxu0 0.0
        %1983 = vmatpush1.msra.mxu0 0.0
        %1984 = vmatprep.subr.mxu0 0.0
        %1985 = vmatpush1.msra.mxu0 0.0
        %1986 = vmatprep.subr.mxu0 0.0
        %1987 = vmatpush1.msra.mxu0 0.0
        %1988 = vmatprep.subr.mxu0 0.0
        %1989 = vmatpush1.msra.mxu0 0.0
        %1990 = vmatprep.subr.mxu0 0.0
        %1991 = vmatpush1.msra.mxu0 0.0
        %1992 = vmatprep.subr.mxu0 0.0
        %1993 = vmatpush1.msra.mxu0 0.0
        %1994 = vmatprep.subr.mxu0 0.0
        %1995 = vmatpush1.msra.mxu0 0.0
        %1996 = vmatprep.subr.mxu0 0.0
        %1997 = vmatpush1.msra.mxu0 0.0
        %1998 = vmatprep.subr.mxu0 0.0
        %1999 = vmatpush1.msra.mxu0 0.0
        %2000 = vmatprep.subr.mxu0 0.0
        %2001 = vmatpush1.msra.mxu0 0.0
        %2002 = vmatprep.subr.mxu0 0.0
        %2003 = vmatpush1.msra.mxu0 0.0
        %2004 = vmatprep.subr.mxu0 0.0
        %2005 = vmatpush1.msra.mxu0 0.0
        %2006 = vmatprep.subr.mxu0 0.0
        %2007 = vmatpush1.msra.mxu0 0.0
        %2008 = vmatprep.subr.mxu0 0.0
        %2009 = vmatpush1.msra.mxu0 0.0
        %2010 = vmatprep.subr.mxu0 0.0
        %2011 = vmatpush1.msra.mxu0 0.0
        %2012 = vmatprep.subr.mxu0 0.0
        %2013 = vmatpush1.msra.mxu0 0.0
        %2014 = vmatprep.subr.mxu0 0.0
        %2015 = vmatpush1.msra.mxu0 0.0
        %2016 = vmatprep.subr.mxu0 0.0
        %2017 = vmatpush1.msra.mxu0 0.0
        %2018 = vmatprep.subr.mxu0 0.0
        %2019 = vmatpush1.msra.mxu0 0.0
        %2020 = vmatprep.subr.mxu0 0.0
        %2021 = vmatpush1.msra.mxu0 0.0
        %2022 = vmatprep.subr.mxu0 0.0
        %2023 = vmatpush1.msra.mxu0 0.0
        %2024 = vmatprep.subr.mxu0 0.0
        %2025 = vmatpush1.msra.mxu0 0.0
        %2026 = vmatprep.subr.mxu0 0.0
        %2027 = vmatpush1.msra.mxu0 0.0
        %2028 = vmatprep.subr.mxu0 0.0
        %2029 = vmatpush1.msra.mxu0 0.0
        %2030 = vmatprep.subr.mxu0 0.0
        %2031 = vmatpush1.msra.mxu0 0.0
        %2032 = vmatprep.subr.mxu0 0.0
        %2033 = vmatpush1.msra.mxu0 0.0
        %2034 = vmatprep.subr.mxu0 0.0
        %2035 = vmatpush1.msra.mxu0 0.0
        %2036 = vmatprep.mubr.f32.mxu0 0.0
        %2037 = vmatmul.mubr.f32.gmra.mrb[0].mxu0 %v1970
        %v2038 = vpop.f32.mrb[0].mxu0
        %v2039 = vadd.f32 %v1964, %v2038
        %v2040 = vpop.f32.mrb[0].mxu0
        %2041 = vdwg.mxu0
        %v2044 = vunpack.c.l.s4 1966171168
        %v2045 = vunpack.c.0.s8 %v2044
        %v2046 = vlaneseq
        %v2047 = vshrl.u32 %v2046, 7
        %v2048 = vsub.s32 %v2045, %v2047
        %v2049 = vrot.slane %v2039, %v2048
        %v2050 = vcombine.high %v2049, %v2049
        %v2052 = vunpack.c.l.s4 1966171168
        %v2053 = vunpack.c.0.s8 %v2052
        %v2054 = vlaneseq
        %v2055 = vshrl.u32 %v2054, 7
        %v2056 = vsub.s32 %v2053, %v2055
        %v2057 = vrot.slane %v2049, %v2056
        %v2059 = vunpack.c.l.s4 1966171168
        %v2060 = vunpack.c.0.s8 %v2059
        %v2061 = vlaneseq
        %v2062 = vshrl.u32 %v2061, 7
        %v2063 = vsub.s32 %v2060, %v2062
        %v2064 = vrot.slane %v2050, %v2063
        %v2065 = vcombine.high %v2057, %v2057
        %v2066 = vcombine.high %v2064, %v2064
        %2071 = vst.msk [vmem:[%s408 + $0x5] sm:$0x1] %vm1129, %v2057
        %2072 = vst.msk [vmem:[%s408 + $0x15] sm:$0x1] %vm1129, %v2064
        %2073 = vst.msk [vmem:[%s408 + $0x25] sm:$0x1] %vm1129, %v2065
        %2074 = vst.msk [vmem:[%s408 + $0x35] sm:$0x1] %vm1129, %v2066
        %v2075 = vld [vmem:[#allocation4] sm:$0xf]
        %v2076 = vld [vmem:[%s5] sm:$0xff]
        %v2077 = vld [vmem:[%s5 + $0x8] sm:$0xff]
        %v2078 = vld [vmem:[#allocation4 + $0x8] sm:$0xf]
        %v2079 = vld [vmem:[%s951] sm:$0xff]
        %v2080 = vld [vmem:[%s951 + $0x8] sm:$0xff]
        %2082 = vrot.lane.b32.xlu0 %v2078, 80
        %v2083 = vpop.permute.xlu0 %2082
        %v2084 = vsel %vm416, %v2083, 0
        %2086 = vmatprep.subr.mxu0 0.0
        %2087 = vmatpush1.msra.mxu0 %v2079
        %2088 = vmatprep.subr.mxu0 0.0
        %2089 = vmatpush1.msra.mxu0 %v2080
        %2090 = vmatprep.subr.mxu0 0.0
        %2091 = vmatpush1.msra.mxu0 0.0
        %2092 = vmatprep.subr.mxu0 0.0
        %2093 = vmatpush1.msra.mxu0 0.0
        %2094 = vmatprep.subr.mxu0 0.0
        %2095 = vmatpush1.msra.mxu0 0.0
        %2096 = vmatprep.subr.mxu0 0.0
        %2097 = vmatpush1.msra.mxu0 0.0
        %2098 = vmatprep.subr.mxu0 0.0
        %2099 = vmatpush1.msra.mxu0 0.0
        %2100 = vmatprep.subr.mxu0 0.0
        %2101 = vmatpush1.msra.mxu0 0.0
        %2102 = vmatprep.subr.mxu0 0.0
        %2103 = vmatpush1.msra.mxu0 0.0
        %2104 = vmatprep.subr.mxu0 0.0
        %2105 = vmatpush1.msra.mxu0 0.0
        %2106 = vmatprep.subr.mxu0 0.0
        %2107 = vmatpush1.msra.mxu0 0.0
        %2108 = vmatprep.subr.mxu0 0.0
        %2109 = vmatpush1.msra.mxu0 0.0
        %2110 = vmatprep.subr.mxu0 0.0
        %2111 = vmatpush1.msra.mxu0 0.0
        %2112 = vmatprep.subr.mxu0 0.0
        %2113 = vmatpush1.msra.mxu0 0.0
        %2114 = vmatprep.subr.mxu0 0.0
        %2115 = vmatpush1.msra.mxu0 0.0
        %2116 = vmatprep.subr.mxu0 0.0
        %2117 = vmatpush1.msra.mxu0 0.0
        %2118 = vmatprep.subr.mxu0 0.0
        %2119 = vmatpush1.msra.mxu0 0.0
        %2120 = vmatprep.subr.mxu0 0.0
        %2121 = vmatpush1.msra.mxu0 0.0
        %2122 = vmatprep.subr.mxu0 0.0
        %2123 = vmatpush1.msra.mxu0 0.0
        %2124 = vmatprep.subr.mxu0 0.0
        %2125 = vmatpush1.msra.mxu0 0.0
        %2126 = vmatprep.subr.mxu0 0.0
        %2127 = vmatpush1.msra.mxu0 0.0
        %2128 = vmatprep.subr.mxu0 0.0
        %2129 = vmatpush1.msra.mxu0 0.0
        %2130 = vmatprep.subr.mxu0 0.0
        %2131 = vmatpush1.msra.mxu0 0.0
        %2132 = vmatprep.subr.mxu0 0.0
        %2133 = vmatpush1.msra.mxu0 0.0
        %2134 = vmatprep.subr.mxu0 0.0
        %2135 = vmatpush1.msra.mxu0 0.0
        %2136 = vmatprep.subr.mxu0 0.0
        %2137 = vmatpush1.msra.mxu0 0.0
        %2138 = vmatprep.subr.mxu0 0.0
        %2139 = vmatpush1.msra.mxu0 0.0
        %2140 = vmatprep.subr.mxu0 0.0
        %2141 = vmatpush1.msra.mxu0 0.0
        %2142 = vmatprep.subr.mxu0 0.0
        %2143 = vmatpush1.msra.mxu0 0.0
        %2144 = vmatprep.subr.mxu0 0.0
        %2145 = vmatpush1.msra.mxu0 0.0
        %2146 = vmatprep.subr.mxu0 0.0
        %2147 = vmatpush1.msra.mxu0 0.0
        %2148 = vmatprep.subr.mxu0 0.0
        %2149 = vmatpush1.msra.mxu0 0.0
        %2150 = vmatprep.mubr.f32.mxu0 0.0
        %2151 = vmatmul.mubr.f32.gmra.mrb[0].mxu0 %v2084
        %v2152 = vpop.f32.mrb[0].mxu0
        %v2153 = vadd.f32 0.0, %v2152
        %v2154 = vpop.f32.mrb[0].mxu0
        %2155 = vdwg.mxu0
        %2157 = vrot.lane.b32.xlu0 %v2075, 80
        %v2158 = vpop.permute.xlu0 %2157
        %v2159 = vsel %vm416, %v2158, 0
        %2161 = vmatprep.subr.mxu0 0.0
        %2162 = vmatpush1.msra.mxu0 %v2076
        %2163 = vmatprep.subr.mxu0 0.0
        %2164 = vmatpush1.msra.mxu0 %v2077
        %2165 = vmatprep.subr.mxu0 0.0
        %2166 = vmatpush1.msra.mxu0 0.0
        %2167 = vmatprep.subr.mxu0 0.0
        %2168 = vmatpush1.msra.mxu0 0.0
        %2169 = vmatprep.subr.mxu0 0.0
        %2170 = vmatpush1.msra.mxu0 0.0
        %2171 = vmatprep.subr.mxu0 0.0
        %2172 = vmatpush1.msra.mxu0 0.0
        %2173 = vmatprep.subr.mxu0 0.0
        %2174 = vmatpush1.msra.mxu0 0.0
        %2175 = vmatprep.subr.mxu0 0.0
        %2176 = vmatpush1.msra.mxu0 0.0
        %2177 = vmatprep.subr.mxu0 0.0
        %2178 = vmatpush1.msra.mxu0 0.0
        %2179 = vmatprep.subr.mxu0 0.0
        %2180 = vmatpush1.msra.mxu0 0.0
        %2181 = vmatprep.subr.mxu0 0.0
        %2182 = vmatpush1.msra.mxu0 0.0
        %2183 = vmatprep.subr.mxu0 0.0
        %2184 = vmatpush1.msra.mxu0 0.0
        %2185 = vmatprep.subr.mxu0 0.0
        %2186 = vmatpush1.msra.mxu0 0.0
        %2187 = vmatprep.subr.mxu0 0.0
        %2188 = vmatpush1.msra.mxu0 0.0
        %2189 = vmatprep.subr.mxu0 0.0
        %2190 = vmatpush1.msra.mxu0 0.0
        %2191 = vmatprep.subr.mxu0 0.0
        %2192 = vmatpush1.msra.mxu0 0.0
        %2193 = vmatprep.subr.mxu0 0.0
        %2194 = vmatpush1.msra.mxu0 0.0
        %2195 = vmatprep.subr.mxu0 0.0
        %2196 = vmatpush1.msra.mxu0 0.0
        %2197 = vmatprep.subr.mxu0 0.0
        %2198 = vmatpush1.msra.mxu0 0.0
        %2199 = vmatprep.subr.mxu0 0.0
        %2200 = vmatpush1.msra.mxu0 0.0
        %2201 = vmatprep.subr.mxu0 0.0
        %2202 = vmatpush1.msra.mxu0 0.0
        %2203 = vmatprep.subr.mxu0 0.0
        %2204 = vmatpush1.msra.mxu0 0.0
        %2205 = vmatprep.subr.mxu0 0.0
        %2206 = vmatpush1.msra.mxu0 0.0
        %2207 = vmatprep.subr.mxu0 0.0
        %2208 = vmatpush1.msra.mxu0 0.0
        %2209 = vmatprep.subr.mxu0 0.0
        %2210 = vmatpush1.msra.mxu0 0.0
        %2211 = vmatprep.subr.mxu0 0.0
        %2212 = vmatpush1.msra.mxu0 0.0
        %2213 = vmatprep.subr.mxu0 0.0
        %2214 = vmatpush1.msra.mxu0 0.0
        %2215 = vmatprep.subr.mxu0 0.0
        %2216 = vmatpush1.msra.mxu0 0.0
        %2217 = vmatprep.subr.mxu0 0.0
        %2218 = vmatpush1.msra.mxu0 0.0
        %2219 = vmatprep.subr.mxu0 0.0
        %2220 = vmatpush1.msra.mxu0 0.0
        %2221 = vmatprep.subr.mxu0 0.0
        %2222 = vmatpush1.msra.mxu0 0.0
        %2223 = vmatprep.subr.mxu0 0.0
        %2224 = vmatpush1.msra.mxu0 0.0
        %2225 = vmatprep.mubr.f32.mxu0 0.0
        %2226 = vmatmul.mubr.f32.gmra.mrb[0].mxu0 %v2159
        %v2227 = vpop.f32.mrb[0].mxu0
        %v2228 = vadd.f32 %v2153, %v2227
        %v2229 = vpop.f32.mrb[0].mxu0
        %2230 = vdwg.mxu0
        %v2233 = vunpack.c.l.s4 1966171168
        %v2234 = vunpack.c.0.s8 %v2233
        %v2235 = vlaneseq
        %v2236 = vshrl.u32 %v2235, 7
        %v2237 = vsub.s32 %v2234, %v2236
        %v2238 = vrot.slane %v2228, %v2237
        %v2239 = vcombine.high %v2238, %v2238
        %v2241 = vunpack.c.l.s4 1966171168
        %v2242 = vunpack.c.0.s8 %v2241
        %v2243 = vlaneseq
        %v2244 = vshrl.u32 %v2243, 7
        %v2245 = vsub.s32 %v2242, %v2244
        %v2246 = vrot.slane %v2238, %v2245
        %v2248 = vunpack.c.l.s4 1966171168
        %v2249 = vunpack.c.0.s8 %v2248
        %v2250 = vlaneseq
        %v2251 = vshrl.u32 %v2250, 7
        %v2252 = vsub.s32 %v2249, %v2251
        %v2253 = vrot.slane %v2239, %v2252
        %v2254 = vcombine.high %v2246, %v2246
        %v2255 = vcombine.high %v2253, %v2253
        %2260 = vst.msk [vmem:[%s408 + $0x6] sm:$0x1] %vm1129, %v2246
        %2261 = vst.msk [vmem:[%s408 + $0x16] sm:$0x1] %vm1129, %v2253
        %2262 = vst.msk [vmem:[%s408 + $0x26] sm:$0x1] %vm1129, %v2254
        %2263 = vst.msk [vmem:[%s408 + $0x36] sm:$0x1] %vm1129, %v2255
        %v2264 = vld [vmem:[#allocation4 + $0x4] sm:$0xf]
        %v2265 = vld [vmem:[%s5] sm:$0xff]
        %v2266 = vld [vmem:[%s5 + $0x8] sm:$0xff]
        %v2267 = vld [vmem:[#allocation4 + $0xc] sm:$0xf]
        %v2268 = vld [vmem:[%s951] sm:$0xff]
        %v2269 = vld [vmem:[%s951 + $0x8] sm:$0xff]
        %2271 = vrot.lane.b32.xlu0 %v2267, 80
        %v2272 = vpop.permute.xlu0 %2271
        %v2273 = vsel %vm416, %v2272, 0
        %2275 = vmatprep.subr.mxu0 0.0
        %2276 = vmatpush1.msra.mxu0 %v2268
        %2277 = vmatprep.subr.mxu0 0.0
        %2278 = vmatpush1.msra.mxu0 %v2269
        %2279 = vmatprep.subr.mxu0 0.0
        %2280 = vmatpush1.msra.mxu0 0.0
        %2281 = vmatprep.subr.mxu0 0.0
        %2282 = vmatpush1.msra.mxu0 0.0
        %2283 = vmatprep.subr.mxu0 0.0
        %2284 = vmatpush1.msra.mxu0 0.0
        %2285 = vmatprep.subr.mxu0 0.0
        %2286 = vmatpush1.msra.mxu0 0.0
        %2287 = vmatprep.subr.mxu0 0.0
        %2288 = vmatpush1.msra.mxu0 0.0
        %2289 = vmatprep.subr.mxu0 0.0
        %2290 = vmatpush1.msra.mxu0 0.0
        %2291 = vmatprep.subr.mxu0 0.0
        %2292 = vmatpush1.msra.mxu0 0.0
        %2293 = vmatprep.subr.mxu0 0.0
        %2294 = vmatpush1.msra.mxu0 0.0
        %2295 = vmatprep.subr.mxu0 0.0
        %2296 = vmatpush1.msra.mxu0 0.0
        %2297 = vmatprep.subr.mxu0 0.0
        %2298 = vmatpush1.msra.mxu0 0.0
        %2299 = vmatprep.subr.mxu0 0.0
        %2300 = vmatpush1.msra.mxu0 0.0
        %2301 = vmatprep.subr.mxu0 0.0
        %2302 = vmatpush1.msra.mxu0 0.0
        %2303 = vmatprep.subr.mxu0 0.0
        %2304 = vmatpush1.msra.mxu0 0.0
        %2305 = vmatprep.subr.mxu0 0.0
        %2306 = vmatpush1.msra.mxu0 0.0
        %2307 = vmatprep.subr.mxu0 0.0
        %2308 = vmatpush1.msra.mxu0 0.0
        %2309 = vmatprep.subr.mxu0 0.0
        %2310 = vmatpush1.msra.mxu0 0.0
        %2311 = vmatprep.subr.mxu0 0.0
        %2312 = vmatpush1.msra.mxu0 0.0
        %2313 = vmatprep.subr.mxu0 0.0
        %2314 = vmatpush1.msra.mxu0 0.0
        %2315 = vmatprep.subr.mxu0 0.0
        %2316 = vmatpush1.msra.mxu0 0.0
        %2317 = vmatprep.subr.mxu0 0.0
        %2318 = vmatpush1.msra.mxu0 0.0
        %2319 = vmatprep.subr.mxu0 0.0
        %2320 = vmatpush1.msra.mxu0 0.0
        %2321 = vmatprep.subr.mxu0 0.0
        %2322 = vmatpush1.msra.mxu0 0.0
        %2323 = vmatprep.subr.mxu0 0.0
        %2324 = vmatpush1.msra.mxu0 0.0
        %2325 = vmatprep.subr.mxu0 0.0
        %2326 = vmatpush1.msra.mxu0 0.0
        %2327 = vmatprep.subr.mxu0 0.0
        %2328 = vmatpush1.msra.mxu0 0.0
        %2329 = vmatprep.subr.mxu0 0.0
        %2330 = vmatpush1.msra.mxu0 0.0
        %2331 = vmatprep.subr.mxu0 0.0
        %2332 = vmatpush1.msra.mxu0 0.0
        %2333 = vmatprep.subr.mxu0 0.0
        %2334 = vmatpush1.msra.mxu0 0.0
        %2335 = vmatprep.subr.mxu0 0.0
        %2336 = vmatpush1.msra.mxu0 0.0
        %2337 = vmatprep.subr.mxu0 0.0
        %2338 = vmatpush1.msra.mxu0 0.0
        %2339 = vmatprep.mubr.f32.mxu0 0.0
        %2340 = vmatmul.mubr.f32.gmra.mrb[0].mxu0 %v2273
        %v2341 = vpop.f32.mrb[0].mxu0
        %v2342 = vadd.f32 0.0, %v2341
        %v2343 = vpop.f32.mrb[0].mxu0
        %2344 = vdwg.mxu0
        %2346 = vrot.lane.b32.xlu0 %v2264, 80
        %v2347 = vpop.permute.xlu0 %2346
        %v2348 = vsel %vm416, %v2347, 0
        %2350 = vmatprep.subr.mxu0 0.0
        %2351 = vmatpush1.msra.mxu0 %v2265
        %2352 = vmatprep.subr.mxu0 0.0
        %2353 = vmatpush1.msra.mxu0 %v2266
        %2354 = vmatprep.subr.mxu0 0.0
        %2355 = vmatpush1.msra.mxu0 0.0
        %2356 = vmatprep.subr.mxu0 0.0
        %2357 = vmatpush1.msra.mxu0 0.0
        %2358 = vmatprep.subr.mxu0 0.0
        %2359 = vmatpush1.msra.mxu0 0.0
        %2360 = vmatprep.subr.mxu0 0.0
        %2361 = vmatpush1.msra.mxu0 0.0
        %2362 = vmatprep.subr.mxu0 0.0
        %2363 = vmatpush1.msra.mxu0 0.0
        %2364 = vmatprep.subr.mxu0 0.0
        %2365 = vmatpush1.msra.mxu0 0.0
        %2366 = vmatprep.subr.mxu0 0.0
        %2367 = vmatpush1.msra.mxu0 0.0
        %2368 = vmatprep.subr.mxu0 0.0
        %2369 = vmatpush1.msra.mxu0 0.0
        %2370 = vmatprep.subr.mxu0 0.0
        %2371 = vmatpush1.msra.mxu0 0.0
        %2372 = vmatprep.subr.mxu0 0.0
        %2373 = vmatpush1.msra.mxu0 0.0
        %2374 = vmatprep.subr.mxu0 0.0
        %2375 = vmatpush1.msra.mxu0 0.0
        %2376 = vmatprep.subr.mxu0 0.0
        %2377 = vmatpush1.msra.mxu0 0.0
        %2378 = vmatprep.subr.mxu0 0.0
        %2379 = vmatpush1.msra.mxu0 0.0
        %2380 = vmatprep.subr.mxu0 0.0
        %2381 = vmatpush1.msra.mxu0 0.0
        %2382 = vmatprep.subr.mxu0 0.0
        %2383 = vmatpush1.msra.mxu0 0.0
        %2384 = vmatprep.subr.mxu0 0.0
        %2385 = vmatpush1.msra.mxu0 0.0
        %2386 = vmatprep.subr.mxu0 0.0
        %2387 = vmatpush1.msra.mxu0 0.0
        %2388 = vmatprep.subr.mxu0 0.0
        %2389 = vmatpush1.msra.mxu0 0.0
        %2390 = vmatprep.subr.mxu0 0.0
        %2391 = vmatpush1.msra.mxu0 0.0
        %2392 = vmatprep.subr.mxu0 0.0
        %2393 = vmatpush1.msra.mxu0 0.0
        %2394 = vmatprep.subr.mxu0 0.0
        %2395 = vmatpush1.msra.mxu0 0.0
        %2396 = vmatprep.subr.mxu0 0.0
        %2397 = vmatpush1.msra.mxu0 0.0
        %2398 = vmatprep.subr.mxu0 0.0
        %2399 = vmatpush1.msra.mxu0 0.0
        %2400 = vmatprep.subr.mxu0 0.0
        %2401 = vmatpush1.msra.mxu0 0.0
        %2402 = vmatprep.subr.mxu0 0.0
        %2403 = vmatpush1.msra.mxu0 0.0
        %2404 = vmatprep.subr.mxu0 0.0
        %2405 = vmatpush1.msra.mxu0 0.0
        %2406 = vmatprep.subr.mxu0 0.0
        %2407 = vmatpush1.msra.mxu0 0.0
        %2408 = vmatprep.subr.mxu0 0.0
        %2409 = vmatpush1.msra.mxu0 0.0
        %2410 = vmatprep.subr.mxu0 0.0
        %2411 = vmatpush1.msra.mxu0 0.0
        %2412 = vmatprep.subr.mxu0 0.0
        %2413 = vmatpush1.msra.mxu0 0.0
        %2414 = vmatprep.mubr.f32.mxu0 0.0
        %2415 = vmatmul.mubr.f32.gmra.mrb[0].mxu0 %v2348
        %v2416 = vpop.f32.mrb[0].mxu0
        %v2417 = vadd.f32 %v2342, %v2416
        %v2418 = vpop.f32.mrb[0].mxu0
        %2419 = vdwg.mxu0
        %v2422 = vunpack.c.l.s4 1966171168
        %v2423 = vunpack.c.0.s8 %v2422
        %v2424 = vlaneseq
        %v2425 = vshrl.u32 %v2424, 7
        %v2426 = vsub.s32 %v2423, %v2425
        %v2427 = vrot.slane %v2417, %v2426
        %v2428 = vcombine.high %v2427, %v2427
        %v2430 = vunpack.c.l.s4 1966171168
        %v2431 = vunpack.c.0.s8 %v2430
        %v2432 = vlaneseq
        %v2433 = vshrl.u32 %v2432, 7
        %v2434 = vsub.s32 %v2431, %v2433
        %v2435 = vrot.slane %v2427, %v2434
        %v2437 = vunpack.c.l.s4 1966171168
        %v2438 = vunpack.c.0.s8 %v2437
        %v2439 = vlaneseq
        %v2440 = vshrl.u32 %v2439, 7
        %v2441 = vsub.s32 %v2438, %v2440
        %v2442 = vrot.slane %v2428, %v2441
        %v2443 = vcombine.high %v2435, %v2435
        %v2444 = vcombine.high %v2442, %v2442
        %2449 = vst.msk [vmem:[%s408 + $0x7] sm:$0x1] %vm1129, %v2435
        %2450 = vst.msk [vmem:[%s408 + $0x17] sm:$0x1] %vm1129, %v2442
        %2451 = vst.msk [vmem:[%s408 + $0x27] sm:$0x1] %vm1129, %v2443
        %2452 = vst.msk [vmem:[%s408 + $0x37] sm:$0x1] %vm1129, %v2444
        %v2453 = vld [vmem:[#allocation4] sm:$0xf]
        %v2454 = vld [vmem:[%s5] sm:$0xff]
        %v2455 = vld [vmem:[%s5 + $0x8] sm:$0xff]
        %v2456 = vld [vmem:[#allocation4 + $0x8] sm:$0xf]
        %v2457 = vld [vmem:[%s951] sm:$0xff]
        %v2458 = vld [vmem:[%s951 + $0x8] sm:$0xff]
        %2460 = vrot.lane.b32.xlu0 %v2456, 64
        %v2461 = vpop.permute.xlu0 %2460
        %v2462 = vsel %vm416, %v2461, 0
        %2464 = vmatprep.subr.mxu0 0.0
        %2465 = vmatpush1.msra.mxu0 %v2457
        %2466 = vmatprep.subr.mxu0 0.0
        %2467 = vmatpush1.msra.mxu0 %v2458
        %2468 = vmatprep.subr.mxu0 0.0
        %2469 = vmatpush1.msra.mxu0 0.0
        %2470 = vmatprep.subr.mxu0 0.0
        %2471 = vmatpush1.msra.mxu0 0.0
        %2472 = vmatprep.subr.mxu0 0.0
        %2473 = vmatpush1.msra.mxu0 0.0
        %2474 = vmatprep.subr.mxu0 0.0
        %2475 = vmatpush1.msra.mxu0 0.0
        %2476 = vmatprep.subr.mxu0 0.0
        %2477 = vmatpush1.msra.mxu0 0.0
        %2478 = vmatprep.subr.mxu0 0.0
        %2479 = vmatpush1.msra.mxu0 0.0
        %2480 = vmatprep.subr.mxu0 0.0
        %2481 = vmatpush1.msra.mxu0 0.0
        %2482 = vmatprep.subr.mxu0 0.0
        %2483 = vmatpush1.msra.mxu0 0.0
        %2484 = vmatprep.subr.mxu0 0.0
        %2485 = vmatpush1.msra.mxu0 0.0
        %2486 = vmatprep.subr.mxu0 0.0
        %2487 = vmatpush1.msra.mxu0 0.0
        %2488 = vmatprep.subr.mxu0 0.0
        %2489 = vmatpush1.msra.mxu0 0.0
        %2490 = vmatprep.subr.mxu0 0.0
        %2491 = vmatpush1.msra.mxu0 0.0
        %2492 = vmatprep.subr.mxu0 0.0
        %2493 = vmatpush1.msra.mxu0 0.0
        %2494 = vmatprep.subr.mxu0 0.0
        %2495 = vmatpush1.msra.mxu0 0.0
        %2496 = vmatprep.subr.mxu0 0.0
        %2497 = vmatpush1.msra.mxu0 0.0
        %2498 = vmatprep.subr.mxu0 0.0
        %2499 = vmatpush1.msra.mxu0 0.0
        %2500 = vmatprep.subr.mxu0 0.0
        %2501 = vmatpush1.msra.mxu0 0.0
        %2502 = vmatprep.subr.mxu0 0.0
        %2503 = vmatpush1.msra.mxu0 0.0
        %2504 = vmatprep.subr.mxu0 0.0
        %2505 = vmatpush1.msra.mxu0 0.0
        %2506 = vmatprep.subr.mxu0 0.0
        %2507 = vmatpush1.msra.mxu0 0.0
        %2508 = vmatprep.subr.mxu0 0.0
        %2509 = vmatpush1.msra.mxu0 0.0
        %2510 = vmatprep.subr.mxu0 0.0
        %2511 = vmatpush1.msra.mxu0 0.0
        %2512 = vmatprep.subr.mxu0 0.0
        %2513 = vmatpush1.msra.mxu0 0.0
        %2514 = vmatprep.subr.mxu0 0.0
        %2515 = vmatpush1.msra.mxu0 0.0
        %2516 = vmatprep.subr.mxu0 0.0
        %2517 = vmatpush1.msra.mxu0 0.0
        %2518 = vmatprep.subr.mxu0 0.0
        %2519 = vmatpush1.msra.mxu0 0.0
        %2520 = vmatprep.subr.mxu0 0.0
        %2521 = vmatpush1.msra.mxu0 0.0
        %2522 = vmatprep.subr.mxu0 0.0
        %2523 = vmatpush1.msra.mxu0 0.0
        %2524 = vmatprep.subr.mxu0 0.0
        %2525 = vmatpush1.msra.mxu0 0.0
        %2526 = vmatprep.subr.mxu0 0.0
        %2527 = vmatpush1.msra.mxu0 0.0
        %2528 = vmatprep.mubr.f32.mxu0 0.0
        %2529 = vmatmul.mubr.f32.gmra.mrb[0].mxu0 %v2462
        %v2530 = vpop.f32.mrb[0].mxu0
        %v2531 = vadd.f32 0.0, %v2530
        %v2532 = vpop.f32.mrb[0].mxu0
        %2533 = vdwg.mxu0
        %2535 = vrot.lane.b32.xlu0 %v2453, 64
        %v2536 = vpop.permute.xlu0 %2535
        %v2537 = vsel %vm416, %v2536, 0
        %2539 = vmatprep.subr.mxu0 0.0
        %2540 = vmatpush1.msra.mxu0 %v2454
        %2541 = vmatprep.subr.mxu0 0.0
        %2542 = vmatpush1.msra.mxu0 %v2455
        %2543 = vmatprep.subr.mxu0 0.0
        %2544 = vmatpush1.msra.mxu0 0.0
        %2545 = vmatprep.subr.mxu0 0.0
        %2546 = vmatpush1.msra.mxu0 0.0
        %2547 = vmatprep.subr.mxu0 0.0
        %2548 = vmatpush1.msra.mxu0 0.0
        %2549 = vmatprep.subr.mxu0 0.0
        %2550 = vmatpush1.msra.mxu0 0.0
        %2551 = vmatprep.subr.mxu0 0.0
        %2552 = vmatpush1.msra.mxu0 0.0
        %2553 = vmatprep.subr.mxu0 0.0
        %2554 = vmatpush1.msra.mxu0 0.0
        %2555 = vmatprep.subr.mxu0 0.0
        %2556 = vmatpush1.msra.mxu0 0.0
        %2557 = vmatprep.subr.mxu0 0.0
        %2558 = vmatpush1.msra.mxu0 0.0
        %2559 = vmatprep.subr.mxu0 0.0
        %2560 = vmatpush1.msra.mxu0 0.0
        %2561 = vmatprep.subr.mxu0 0.0
        %2562 = vmatpush1.msra.mxu0 0.0
        %2563 = vmatprep.subr.mxu0 0.0
        %2564 = vmatpush1.msra.mxu0 0.0
        %2565 = vmatprep.subr.mxu0 0.0
        %2566 = vmatpush1.msra.mxu0 0.0
        %2567 = vmatprep.subr.mxu0 0.0
        %2568 = vmatpush1.msra.mxu0 0.0
        %2569 = vmatprep.subr.mxu0 0.0
        %2570 = vmatpush1.msra.mxu0 0.0
        %2571 = vmatprep.subr.mxu0 0.0
        %2572 = vmatpush1.msra.mxu0 0.0
        %2573 = vmatprep.subr.mxu0 0.0
        %2574 = vmatpush1.msra.mxu0 0.0
        %2575 = vmatprep.subr.mxu0 0.0
        %2576 = vmatpush1.msra.mxu0 0.0
        %2577 = vmatprep.subr.mxu0 0.0
        %2578 = vmatpush1.msra.mxu0 0.0
        %2579 = vmatprep.subr.mxu0 0.0
        %2580 = vmatpush1.msra.mxu0 0.0
        %2581 = vmatprep.subr.mxu0 0.0
        %2582 = vmatpush1.msra.mxu0 0.0
        %2583 = vmatprep.subr.mxu0 0.0
        %2584 = vmatpush1.msra.mxu0 0.0
        %2585 = vmatprep.subr.mxu0 0.0
        %2586 = vmatpush1.msra.mxu0 0.0
        %2587 = vmatprep.subr.mxu0 0.0
        %2588 = vmatpush1.msra.mxu0 0.0
        %2589 = vmatprep.subr.mxu0 0.0
        %2590 = vmatpush1.msra.mxu0 0.0
        %2591 = vmatprep.subr.mxu0 0.0
        %2592 = vmatpush1.msra.mxu0 0.0
        %2593 = vmatprep.subr.mxu0 0.0
        %2594 = vmatpush1.msra.mxu0 0.0
        %2595 = vmatprep.subr.mxu0 0.0
        %2596 = vmatpush1.msra.mxu0 0.0
        %2597 = vmatprep.subr.mxu0 0.0
        %2598 = vmatpush1.msra.mxu0 0.0
        %2599 = vmatprep.subr.mxu0 0.0
        %2600 = vmatpush1.msra.mxu0 0.0
        %2601 = vmatprep.subr.mxu0 0.0
        %2602 = vmatpush1.msra.mxu0 0.0
        %2603 = vmatprep.mubr.f32.mxu0 0.0
        %2604 = vmatmul.mubr.f32.gmra.mrb[0].mxu0 %v2537
        %v2605 = vpop.f32.mrb[0].mxu0
        %v2606 = vadd.f32 %v2531, %v2605
        %v2607 = vpop.f32.mrb[0].mxu0
        %2608 = vdwg.mxu0
        %v2611 = vunpack.c.l.s4 1966171168
        %v2612 = vunpack.c.0.s8 %v2611
        %v2613 = vlaneseq
        %v2614 = vshrl.u32 %v2613, 7
        %v2615 = vsub.s32 %v2612, %v2614
        %v2616 = vrot.slane %v2606, %v2615
        %v2617 = vcombine.high %v2616, %v2616
        %v2619 = vunpack.c.l.s4 1966171168
        %v2620 = vunpack.c.0.s8 %v2619
        %v2621 = vlaneseq
        %v2622 = vshrl.u32 %v2621, 7
        %v2623 = vsub.s32 %v2620, %v2622
        %v2624 = vrot.slane %v2616, %v2623
        %v2626 = vunpack.c.l.s4 1966171168
        %v2627 = vunpack.c.0.s8 %v2626
        %v2628 = vlaneseq
        %v2629 = vshrl.u32 %v2628, 7
        %v2630 = vsub.s32 %v2627, %v2629
        %v2631 = vrot.slane %v2617, %v2630
        %v2632 = vcombine.high %v2624, %v2624
        %v2633 = vcombine.high %v2631, %v2631
        %2638 = vst.msk [vmem:[%s408 + $0x8] sm:$0x1] %vm1129, %v2624
        %2639 = vst.msk [vmem:[%s408 + $0x18] sm:$0x1] %vm1129, %v2631
        %2640 = vst.msk [vmem:[%s408 + $0x28] sm:$0x1] %vm1129, %v2632
        %2641 = vst.msk [vmem:[%s408 + $0x38] sm:$0x1] %vm1129, %v2633
        %v2642 = vld [vmem:[#allocation4 + $0x4] sm:$0xf]
        %v2643 = vld [vmem:[%s5] sm:$0xff]
        %v2644 = vld [vmem:[%s5 + $0x8] sm:$0xff]
        %v2645 = vld [vmem:[#allocation4 + $0xc] sm:$0xf]
        %v2646 = vld [vmem:[%s951] sm:$0xff]
        %v2647 = vld [vmem:[%s951 + $0x8] sm:$0xff]
        %2649 = vrot.lane.b32.xlu0 %v2645, 64
        %v2650 = vpop.permute.xlu0 %2649
        %v2651 = vsel %vm416, %v2650, 0
        %2653 = vmatprep.subr.mxu0 0.0
        %2654 = vmatpush1.msra.mxu0 %v2646
        %2655 = vmatprep.subr.mxu0 0.0
        %2656 = vmatpush1.msra.mxu0 %v2647
        %2657 = vmatprep.subr.mxu0 0.0
        %2658 = vmatpush1.msra.mxu0 0.0
        %2659 = vmatprep.subr.mxu0 0.0
        %2660 = vmatpush1.msra.mxu0 0.0
        %2661 = vmatprep.subr.mxu0 0.0
        %2662 = vmatpush1.msra.mxu0 0.0
        %2663 = vmatprep.subr.mxu0 0.0
        %2664 = vmatpush1.msra.mxu0 0.0
        %2665 = vmatprep.subr.mxu0 0.0
        %2666 = vmatpush1.msra.mxu0 0.0
        %2667 = vmatprep.subr.mxu0 0.0
        %2668 = vmatpush1.msra.mxu0 0.0
        %2669 = vmatprep.subr.mxu0 0.0
        %2670 = vmatpush1.msra.mxu0 0.0
        %2671 = vmatprep.subr.mxu0 0.0
        %2672 = vmatpush1.msra.mxu0 0.0
        %2673 = vmatprep.subr.mxu0 0.0
        %2674 = vmatpush1.msra.mxu0 0.0
        %2675 = vmatprep.subr.mxu0 0.0
        %2676 = vmatpush1.msra.mxu0 0.0
        %2677 = vmatprep.subr.mxu0 0.0
        %2678 = vmatpush1.msra.mxu0 0.0
        %2679 = vmatprep.subr.mxu0 0.0
        %2680 = vmatpush1.msra.mxu0 0.0
        %2681 = vmatprep.subr.mxu0 0.0
        %2682 = vmatpush1.msra.mxu0 0.0
        %2683 = vmatprep.subr.mxu0 0.0
        %2684 = vmatpush1.msra.mxu0 0.0
        %2685 = vmatprep.subr.mxu0 0.0
        %2686 = vmatpush1.msra.mxu0 0.0
        %2687 = vmatprep.subr.mxu0 0.0
        %2688 = vmatpush1.msra.mxu0 0.0
        %2689 = vmatprep.subr.mxu0 0.0
        %2690 = vmatpush1.msra.mxu0 0.0
        %2691 = vmatprep.subr.mxu0 0.0
        %2692 = vmatpush1.msra.mxu0 0.0
        %2693 = vmatprep.subr.mxu0 0.0
        %2694 = vmatpush1.msra.mxu0 0.0
        %2695 = vmatprep.subr.mxu0 0.0
        %2696 = vmatpush1.msra.mxu0 0.0
        %2697 = vmatprep.subr.mxu0 0.0
        %2698 = vmatpush1.msra.mxu0 0.0
        %2699 = vmatprep.subr.mxu0 0.0
        %2700 = vmatpush1.msra.mxu0 0.0
        %2701 = vmatprep.subr.mxu0 0.0
        %2702 = vmatpush1.msra.mxu0 0.0
        %2703 = vmatprep.subr.mxu0 0.0
        %2704 = vmatpush1.msra.mxu0 0.0
        %2705 = vmatprep.subr.mxu0 0.0
        %2706 = vmatpush1.msra.mxu0 0.0
        %2707 = vmatprep.subr.mxu0 0.0
        %2708 = vmatpush1.msra.mxu0 0.0
        %2709 = vmatprep.subr.mxu0 0.0
        %2710 = vmatpush1.msra.mxu0 0.0
        %2711 = vmatprep.subr.mxu0 0.0
        %2712 = vmatpush1.msra.mxu0 0.0
        %2713 = vmatprep.subr.mxu0 0.0
        %2714 = vmatpush1.msra.mxu0 0.0
        %2715 = vmatprep.subr.mxu0 0.0
        %2716 = vmatpush1.msra.mxu0 0.0
        %2717 = vmatprep.mubr.f32.mxu0 0.0
        %2718 = vmatmul.mubr.f32.gmra.mrb[0].mxu0 %v2651
        %v2719 = vpop.f32.mrb[0].mxu0
        %v2720 = vadd.f32 0.0, %v2719
        %v2721 = vpop.f32.mrb[0].mxu0
        %2722 = vdwg.mxu0
        %2724 = vrot.lane.b32.xlu0 %v2642, 64
        %v2725 = vpop.permute.xlu0 %2724
        %v2726 = vsel %vm416, %v2725, 0
        %2728 = vmatprep.subr.mxu0 0.0
        %2729 = vmatpush1.msra.mxu0 %v2643
        %2730 = vmatprep.subr.mxu0 0.0
        %2731 = vmatpush1.msra.mxu0 %v2644
        %2732 = vmatprep.subr.mxu0 0.0
        %2733 = vmatpush1.msra.mxu0 0.0
        %2734 = vmatprep.subr.mxu0 0.0
        %2735 = vmatpush1.msra.mxu0 0.0
        %2736 = vmatprep.subr.mxu0 0.0
        %2737 = vmatpush1.msra.mxu0 0.0
        %2738 = vmatprep.subr.mxu0 0.0
        %2739 = vmatpush1.msra.mxu0 0.0
        %2740 = vmatprep.subr.mxu0 0.0
        %2741 = vmatpush1.msra.mxu0 0.0
        %2742 = vmatprep.subr.mxu0 0.0
        %2743 = vmatpush1.msra.mxu0 0.0
        %2744 = vmatprep.subr.mxu0 0.0
        %2745 = vmatpush1.msra.mxu0 0.0
        %2746 = vmatprep.subr.mxu0 0.0
        %2747 = vmatpush1.msra.mxu0 0.0
        %2748 = vmatprep.subr.mxu0 0.0
        %2749 = vmatpush1.msra.mxu0 0.0
        %2750 = vmatprep.subr.mxu0 0.0
        %2751 = vmatpush1.msra.mxu0 0.0
        %2752 = vmatprep.subr.mxu0 0.0
        %2753 = vmatpush1.msra.mxu0 0.0
        %2754 = vmatprep.subr.mxu0 0.0
        %2755 = vmatpush1.msra.mxu0 0.0
        %2756 = vmatprep.subr.mxu0 0.0
        %2757 = vmatpush1.msra.mxu0 0.0
        %2758 = vmatprep.subr.mxu0 0.0
        %2759 = vmatpush1.msra.mxu0 0.0
        %2760 = vmatprep.subr.mxu0 0.0
        %2761 = vmatpush1.msra.mxu0 0.0
        %2762 = vmatprep.subr.mxu0 0.0
        %2763 = vmatpush1.msra.mxu0 0.0
        %2764 = vmatprep.subr.mxu0 0.0
        %2765 = vmatpush1.msra.mxu0 0.0
        %2766 = vmatprep.subr.mxu0 0.0
        %2767 = vmatpush1.msra.mxu0 0.0
        %2768 = vmatprep.subr.mxu0 0.0
        %2769 = vmatpush1.msra.mxu0 0.0
        %2770 = vmatprep.subr.mxu0 0.0
        %2771 = vmatpush1.msra.mxu0 0.0
        %2772 = vmatprep.subr.mxu0 0.0
        %2773 = vmatpush1.msra.mxu0 0.0
        %2774 = vmatprep.subr.mxu0 0.0
        %2775 = vmatpush1.msra.mxu0 0.0
        %2776 = vmatprep.subr.mxu0 0.0
        %2777 = vmatpush1.msra.mxu0 0.0
        %2778 = vmatprep.subr.mxu0 0.0
        %2779 = vmatpush1.msra.mxu0 0.0
        %2780 = vmatprep.subr.mxu0 0.0
        %2781 = vmatpush1.msra.mxu0 0.0
        %2782 = vmatprep.subr.mxu0 0.0
        %2783 = vmatpush1.msra.mxu0 0.0
        %2784 = vmatprep.subr.mxu0 0.0
        %2785 = vmatpush1.msra.mxu0 0.0
        %2786 = vmatprep.subr.mxu0 0.0
        %2787 = vmatpush1.msra.mxu0 0.0
        %2788 = vmatprep.subr.mxu0 0.0
        %2789 = vmatpush1.msra.mxu0 0.0
        %2790 = vmatprep.subr.mxu0 0.0
        %2791 = vmatpush1.msra.mxu0 0.0
        %2792 = vmatprep.mubr.f32.mxu0 0.0
        %2793 = vmatmul.mubr.f32.gmra.mrb[0].mxu0 %v2726
        %v2794 = vpop.f32.mrb[0].mxu0
        %v2795 = vadd.f32 %v2720, %v2794
        %v2796 = vpop.f32.mrb[0].mxu0
        %2797 = vdwg.mxu0
        %v2800 = vunpack.c.l.s4 1966171168
        %v2801 = vunpack.c.0.s8 %v2800
        %v2802 = vlaneseq
        %v2803 = vshrl.u32 %v2802, 7
        %v2804 = vsub.s32 %v2801, %v2803
        %v2805 = vrot.slane %v2795, %v2804
        %v2806 = vcombine.high %v2805, %v2805
        %v2808 = vunpack.c.l.s4 1966171168
        %v2809 = vunpack.c.0.s8 %v2808
        %v2810 = vlaneseq
        %v2811 = vshrl.u32 %v2810, 7
        %v2812 = vsub.s32 %v2809, %v2811
        %v2813 = vrot.slane %v2805, %v2812
        %v2815 = vunpack.c.l.s4 1966171168
        %v2816 = vunpack.c.0.s8 %v2815
        %v2817 = vlaneseq
        %v2818 = vshrl.u32 %v2817, 7
        %v2819 = vsub.s32 %v2816, %v2818
        %v2820 = vrot.slane %v2806, %v2819
        %v2821 = vcombine.high %v2813, %v2813
        %v2822 = vcombine.high %v2820, %v2820
        %2827 = vst.msk [vmem:[%s408 + $0x9] sm:$0x1] %vm1129, %v2813
        %2828 = vst.msk [vmem:[%s408 + $0x19] sm:$0x1] %vm1129, %v2820
        %2829 = vst.msk [vmem:[%s408 + $0x29] sm:$0x1] %vm1129, %v2821
        %2830 = vst.msk [vmem:[%s408 + $0x39] sm:$0x1] %vm1129, %v2822
        %v2831 = vld [vmem:[#allocation4] sm:$0xf]
        %v2832 = vld [vmem:[%s5] sm:$0xff]
        %v2833 = vld [vmem:[%s5 + $0x8] sm:$0xff]
        %v2834 = vld [vmem:[#allocation4 + $0x8] sm:$0xf]
        %v2835 = vld [vmem:[%s951] sm:$0xff]
        %v2836 = vld [vmem:[%s951 + $0x8] sm:$0xff]
        %2838 = vrot.lane.b32.xlu0 %v2834, 48
        %v2839 = vpop.permute.xlu0 %2838
        %v2840 = vsel %vm416, %v2839, 0
        %2842 = vmatprep.subr.mxu0 0.0
        %2843 = vmatpush1.msra.mxu0 %v2835
        %2844 = vmatprep.subr.mxu0 0.0
        %2845 = vmatpush1.msra.mxu0 %v2836
        %2846 = vmatprep.subr.mxu0 0.0
        %2847 = vmatpush1.msra.mxu0 0.0
        %2848 = vmatprep.subr.mxu0 0.0
        %2849 = vmatpush1.msra.mxu0 0.0
        %2850 = vmatprep.subr.mxu0 0.0
        %2851 = vmatpush1.msra.mxu0 0.0
        %2852 = vmatprep.subr.mxu0 0.0
        %2853 = vmatpush1.msra.mxu0 0.0
        %2854 = vmatprep.subr.mxu0 0.0
        %2855 = vmatpush1.msra.mxu0 0.0
        %2856 = vmatprep.subr.mxu0 0.0
        %2857 = vmatpush1.msra.mxu0 0.0
        %2858 = vmatprep.subr.mxu0 0.0
        %2859 = vmatpush1.msra.mxu0 0.0
        %2860 = vmatprep.subr.mxu0 0.0
        %2861 = vmatpush1.msra.mxu0 0.0
        %2862 = vmatprep.subr.mxu0 0.0
        %2863 = vmatpush1.msra.mxu0 0.0
        %2864 = vmatprep.subr.mxu0 0.0
        %2865 = vmatpush1.msra.mxu0 0.0
        %2866 = vmatprep.subr.mxu0 0.0
        %2867 = vmatpush1.msra.mxu0 0.0
        %2868 = vmatprep.subr.mxu0 0.0
        %2869 = vmatpush1.msra.mxu0 0.0
        %2870 = vmatprep.subr.mxu0 0.0
        %2871 = vmatpush1.msra.mxu0 0.0
        %2872 = vmatprep.subr.mxu0 0.0
        %2873 = vmatpush1.msra.mxu0 0.0
        %2874 = vmatprep.subr.mxu0 0.0
        %2875 = vmatpush1.msra.mxu0 0.0
        %2876 = vmatprep.subr.mxu0 0.0
        %2877 = vmatpush1.msra.mxu0 0.0
        %2878 = vmatprep.subr.mxu0 0.0
        %2879 = vmatpush1.msra.mxu0 0.0
        %2880 = vmatprep.subr.mxu0 0.0
        %2881 = vmatpush1.msra.mxu0 0.0
        %2882 = vmatprep.subr.mxu0 0.0
        %2883 = vmatpush1.msra.mxu0 0.0
        %2884 = vmatprep.subr.mxu0 0.0
        %2885 = vmatpush1.msra.mxu0 0.0
        %2886 = vmatprep.subr.mxu0 0.0
        %2887 = vmatpush1.msra.mxu0 0.0
        %2888 = vmatprep.subr.mxu0 0.0
        %2889 = vmatpush1.msra.mxu0 0.0
        %2890 = vmatprep.subr.mxu0 0.0
        %2891 = vmatpush1.msra.mxu0 0.0
        %2892 = vmatprep.subr.mxu0 0.0
        %2893 = vmatpush1.msra.mxu0 0.0
        %2894 = vmatprep.subr.mxu0 0.0
        %2895 = vmatpush1.msra.mxu0 0.0
        %2896 = vmatprep.subr.mxu0 0.0
        %2897 = vmatpush1.msra.mxu0 0.0
        %2898 = vmatprep.subr.mxu0 0.0
        %2899 = vmatpush1.msra.mxu0 0.0
        %2900 = vmatprep.subr.mxu0 0.0
        %2901 = vmatpush1.msra.mxu0 0.0
        %2902 = vmatprep.subr.mxu0 0.0
        %2903 = vmatpush1.msra.mxu0 0.0
        %2904 = vmatprep.subr.mxu0 0.0
        %2905 = vmatpush1.msra.mxu0 0.0
        %2906 = vmatprep.mubr.f32.mxu0 0.0
        %2907 = vmatmul.mubr.f32.gmra.mrb[0].mxu0 %v2840
        %v2908 = vpop.f32.mrb[0].mxu0
        %v2909 = vadd.f32 0.0, %v2908
        %v2910 = vpop.f32.mrb[0].mxu0
        %2911 = vdwg.mxu0
        %2913 = vrot.lane.b32.xlu0 %v2831, 48
        %v2914 = vpop.permute.xlu0 %2913
        %v2915 = vsel %vm416, %v2914, 0
        %2917 = vmatprep.subr.mxu0 0.0
        %2918 = vmatpush1.msra.mxu0 %v2832
        %2919 = vmatprep.subr.mxu0 0.0
        %2920 = vmatpush1.msra.mxu0 %v2833
        %2921 = vmatprep.subr.mxu0 0.0
        %2922 = vmatpush1.msra.mxu0 0.0
        %2923 = vmatprep.subr.mxu0 0.0
        %2924 = vmatpush1.msra.mxu0 0.0
        %2925 = vmatprep.subr.mxu0 0.0
        %2926 = vmatpush1.msra.mxu0 0.0
        %2927 = vmatprep.subr.mxu0 0.0
        %2928 = vmatpush1.msra.mxu0 0.0
        %2929 = vmatprep.subr.mxu0 0.0
        %2930 = vmatpush1.msra.mxu0 0.0
        %2931 = vmatprep.subr.mxu0 0.0
        %2932 = vmatpush1.msra.mxu0 0.0
        %2933 = vmatprep.subr.mxu0 0.0
        %2934 = vmatpush1.msra.mxu0 0.0
        %2935 = vmatprep.subr.mxu0 0.0
        %2936 = vmatpush1.msra.mxu0 0.0
        %2937 = vmatprep.subr.mxu0 0.0
        %2938 = vmatpush1.msra.mxu0 0.0
        %2939 = vmatprep.subr.mxu0 0.0
        %2940 = vmatpush1.msra.mxu0 0.0
        %2941 = vmatprep.subr.mxu0 0.0
        %2942 = vmatpush1.msra.mxu0 0.0
        %2943 = vmatprep.subr.mxu0 0.0
        %2944 = vmatpush1.msra.mxu0 0.0
        %2945 = vmatprep.subr.mxu0 0.0
        %2946 = vmatpush1.msra.mxu0 0.0
        %2947 = vmatprep.subr.mxu0 0.0
        %2948 = vmatpush1.msra.mxu0 0.0
        %2949 = vmatprep.subr.mxu0 0.0
        %2950 = vmatpush1.msra.mxu0 0.0
        %2951 = vmatprep.subr.mxu0 0.0
        %2952 = vmatpush1.msra.mxu0 0.0
        %2953 = vmatprep.subr.mxu0 0.0
        %2954 = vmatpush1.msra.mxu0 0.0
        %2955 = vmatprep.subr.mxu0 0.0
        %2956 = vmatpush1.msra.mxu0 0.0
        %2957 = vmatprep.subr.mxu0 0.0
        %2958 = vmatpush1.msra.mxu0 0.0
        %2959 = vmatprep.subr.mxu0 0.0
        %2960 = vmatpush1.msra.mxu0 0.0
        %2961 = vmatprep.subr.mxu0 0.0
        %2962 = vmatpush1.msra.mxu0 0.0
        %2963 = vmatprep.subr.mxu0 0.0
        %2964 = vmatpush1.msra.mxu0 0.0
        %2965 = vmatprep.subr.mxu0 0.0
        %2966 = vmatpush1.msra.mxu0 0.0
        %2967 = vmatprep.subr.mxu0 0.0
        %2968 = vmatpush1.msra.mxu0 0.0
        %2969 = vmatprep.subr.mxu0 0.0
        %2970 = vmatpush1.msra.mxu0 0.0
        %2971 = vmatprep.subr.mxu0 0.0
        %2972 = vmatpush1.msra.mxu0 0.0
        %2973 = vmatprep.subr.mxu0 0.0
        %2974 = vmatpush1.msra.mxu0 0.0
        %2975 = vmatprep.subr.mxu0 0.0
        %2976 = vmatpush1.msra.mxu0 0.0
        %2977 = vmatprep.subr.mxu0 0.0
        %2978 = vmatpush1.msra.mxu0 0.0
        %2979 = vmatprep.subr.mxu0 0.0
        %2980 = vmatpush1.msra.mxu0 0.0
        %2981 = vmatprep.mubr.f32.mxu0 0.0
        %2982 = vmatmul.mubr.f32.gmra.mrb[0].mxu0 %v2915
        %v2983 = vpop.f32.mrb[0].mxu0
        %v2984 = vadd.f32 %v2909, %v2983
        %v2985 = vpop.f32.mrb[0].mxu0
        %2986 = vdwg.mxu0
        %v2989 = vunpack.c.l.s4 1966171168
        %v2990 = vunpack.c.0.s8 %v2989
        %v2991 = vlaneseq
        %v2992 = vshrl.u32 %v2991, 7
        %v2993 = vsub.s32 %v2990, %v2992
        %v2994 = vrot.slane %v2984, %v2993
        %v2995 = vcombine.high %v2994, %v2994
        %v2997 = vunpack.c.l.s4 1966171168
        %v2998 = vunpack.c.0.s8 %v2997
        %v2999 = vlaneseq
        %v3000 = vshrl.u32 %v2999, 7
        %v3001 = vsub.s32 %v2998, %v3000
        %v3002 = vrot.slane %v2994, %v3001
        %v3004 = vunpack.c.l.s4 1966171168
        %v3005 = vunpack.c.0.s8 %v3004
        %v3006 = vlaneseq
        %v3007 = vshrl.u32 %v3006, 7
        %v3008 = vsub.s32 %v3005, %v3007
        %v3009 = vrot.slane %v2995, %v3008
        %v3010 = vcombine.high %v3002, %v3002
        %v3011 = vcombine.high %v3009, %v3009
        %3016 = vst.msk [vmem:[%s408 + $0xa] sm:$0x1] %vm1129, %v3002
        %3017 = vst.msk [vmem:[%s408 + $0x1a] sm:$0x1] %vm1129, %v3009
        %3018 = vst.msk [vmem:[%s408 + $0x2a] sm:$0x1] %vm1129, %v3010
        %3019 = vst.msk [vmem:[%s408 + $0x3a] sm:$0x1] %vm1129, %v3011
        %v3020 = vld [vmem:[#allocation4 + $0x4] sm:$0xf]
        %v3021 = vld [vmem:[%s5] sm:$0xff]
        %v3022 = vld [vmem:[%s5 + $0x8] sm:$0xff]
        %v3023 = vld [vmem:[#allocation4 + $0xc] sm:$0xf]
        %v3024 = vld [vmem:[%s951] sm:$0xff]
        %v3025 = vld [vmem:[%s951 + $0x8] sm:$0xff]
        %3027 = vrot.lane.b32.xlu0 %v3023, 48
        %v3028 = vpop.permute.xlu0 %3027
        %v3029 = vsel %vm416, %v3028, 0
        %3031 = vmatprep.subr.mxu0 0.0
        %3032 = vmatpush1.msra.mxu0 %v3024
        %3033 = vmatprep.subr.mxu0 0.0
        %3034 = vmatpush1.msra.mxu0 %v3025
        %3035 = vmatprep.subr.mxu0 0.0
        %3036 = vmatpush1.msra.mxu0 0.0
        %3037 = vmatprep.subr.mxu0 0.0
        %3038 = vmatpush1.msra.mxu0 0.0
        %3039 = vmatprep.subr.mxu0 0.0
        %3040 = vmatpush1.msra.mxu0 0.0
        %3041 = vmatprep.subr.mxu0 0.0
        %3042 = vmatpush1.msra.mxu0 0.0
        %3043 = vmatprep.subr.mxu0 0.0
        %3044 = vmatpush1.msra.mxu0 0.0
        %3045 = vmatprep.subr.mxu0 0.0
        %3046 = vmatpush1.msra.mxu0 0.0
        %3047 = vmatprep.subr.mxu0 0.0
        %3048 = vmatpush1.msra.mxu0 0.0
        %3049 = vmatprep.subr.mxu0 0.0
        %3050 = vmatpush1.msra.mxu0 0.0
        %3051 = vmatprep.subr.mxu0 0.0
        %3052 = vmatpush1.msra.mxu0 0.0
        %3053 = vmatprep.subr.mxu0 0.0
        %3054 = vmatpush1.msra.mxu0 0.0
        %3055 = vmatprep.subr.mxu0 0.0
        %3056 = vmatpush1.msra.mxu0 0.0
        %3057 = vmatprep.subr.mxu0 0.0
        %3058 = vmatpush1.msra.mxu0 0.0
        %3059 = vmatprep.subr.mxu0 0.0
        %3060 = vmatpush1.msra.mxu0 0.0
        %3061 = vmatprep.subr.mxu0 0.0
        %3062 = vmatpush1.msra.mxu0 0.0
        %3063 = vmatprep.subr.mxu0 0.0
        %3064 = vmatpush1.msra.mxu0 0.0
        %3065 = vmatprep.subr.mxu0 0.0
        %3066 = vmatpush1.msra.mxu0 0.0
        %3067 = vmatprep.subr.mxu0 0.0
        %3068 = vmatpush1.msra.mxu0 0.0
        %3069 = vmatprep.subr.mxu0 0.0
        %3070 = vmatpush1.msra.mxu0 0.0
        %3071 = vmatprep.subr.mxu0 0.0
        %3072 = vmatpush1.msra.mxu0 0.0
        %3073 = vmatprep.subr.mxu0 0.0
        %3074 = vmatpush1.msra.mxu0 0.0
        %3075 = vmatprep.subr.mxu0 0.0
        %3076 = vmatpush1.msra.mxu0 0.0
        %3077 = vmatprep.subr.mxu0 0.0
        %3078 = vmatpush1.msra.mxu0 0.0
        %3079 = vmatprep.subr.mxu0 0.0
        %3080 = vmatpush1.msra.mxu0 0.0
        %3081 = vmatprep.subr.mxu0 0.0
        %3082 = vmatpush1.msra.mxu0 0.0
        %3083 = vmatprep.subr.mxu0 0.0
        %3084 = vmatpush1.msra.mxu0 0.0
        %3085 = vmatprep.subr.mxu0 0.0
        %3086 = vmatpush1.msra.mxu0 0.0
        %3087 = vmatprep.subr.mxu0 0.0
        %3088 = vmatpush1.msra.mxu0 0.0
        %3089 = vmatprep.subr.mxu0 0.0
        %3090 = vmatpush1.msra.mxu0 0.0
        %3091 = vmatprep.subr.mxu0 0.0
        %3092 = vmatpush1.msra.mxu0 0.0
        %3093 = vmatprep.subr.mxu0 0.0
        %3094 = vmatpush1.msra.mxu0 0.0
        %3095 = vmatprep.mubr.f32.mxu0 0.0
        %3096 = vmatmul.mubr.f32.gmra.mrb[0].mxu0 %v3029
        %v3097 = vpop.f32.mrb[0].mxu0
        %v3098 = vadd.f32 0.0, %v3097
        %v3099 = vpop.f32.mrb[0].mxu0
        %3100 = vdwg.mxu0
        %3102 = vrot.lane.b32.xlu0 %v3020, 48
        %v3103 = vpop.permute.xlu0 %3102
        %v3104 = vsel %vm416, %v3103, 0
        %3106 = vmatprep.subr.mxu0 0.0
        %3107 = vmatpush1.msra.mxu0 %v3021
        %3108 = vmatprep.subr.mxu0 0.0
        %3109 = vmatpush1.msra.mxu0 %v3022
        %3110 = vmatprep.subr.mxu0 0.0
        %3111 = vmatpush1.msra.mxu0 0.0
        %3112 = vmatprep.subr.mxu0 0.0
        %3113 = vmatpush1.msra.mxu0 0.0
        %3114 = vmatprep.subr.mxu0 0.0
        %3115 = vmatpush1.msra.mxu0 0.0
        %3116 = vmatprep.subr.mxu0 0.0
        %3117 = vmatpush1.msra.mxu0 0.0
        %3118 = vmatprep.subr.mxu0 0.0
        %3119 = vmatpush1.msra.mxu0 0.0
        %3120 = vmatprep.subr.mxu0 0.0
        %3121 = vmatpush1.msra.mxu0 0.0
        %3122 = vmatprep.subr.mxu0 0.0
        %3123 = vmatpush1.msra.mxu0 0.0
        %3124 = vmatprep.subr.mxu0 0.0
        %3125 = vmatpush1.msra.mxu0 0.0
        %3126 = vmatprep.subr.mxu0 0.0
        %3127 = vmatpush1.msra.mxu0 0.0
        %3128 = vmatprep.subr.mxu0 0.0
        %3129 = vmatpush1.msra.mxu0 0.0
        %3130 = vmatprep.subr.mxu0 0.0
        %3131 = vmatpush1.msra.mxu0 0.0
        %3132 = vmatprep.subr.mxu0 0.0
        %3133 = vmatpush1.msra.mxu0 0.0
        %3134 = vmatprep.subr.mxu0 0.0
        %3135 = vmatpush1.msra.mxu0 0.0
        %3136 = vmatprep.subr.mxu0 0.0
        %3137 = vmatpush1.msra.mxu0 0.0
        %3138 = vmatprep.subr.mxu0 0.0
        %3139 = vmatpush1.msra.mxu0 0.0
        %3140 = vmatprep.subr.mxu0 0.0
        %3141 = vmatpush1.msra.mxu0 0.0
        %3142 = vmatprep.subr.mxu0 0.0
        %3143 = vmatpush1.msra.mxu0 0.0
        %3144 = vmatprep.subr.mxu0 0.0
        %3145 = vmatpush1.msra.mxu0 0.0
        %3146 = vmatprep.subr.mxu0 0.0
        %3147 = vmatpush1.msra.mxu0 0.0
        %3148 = vmatprep.subr.mxu0 0.0
        %3149 = vmatpush1.msra.mxu0 0.0
        %3150 = vmatprep.subr.mxu0 0.0
        %3151 = vmatpush1.msra.mxu0 0.0
        %3152 = vmatprep.subr.mxu0 0.0
        %3153 = vmatpush1.msra.mxu0 0.0
        %3154 = vmatprep.subr.mxu0 0.0
        %3155 = vmatpush1.msra.mxu0 0.0
        %3156 = vmatprep.subr.mxu0 0.0
        %3157 = vmatpush1.msra.mxu0 0.0
        %3158 = vmatprep.subr.mxu0 0.0
        %3159 = vmatpush1.msra.mxu0 0.0
        %3160 = vmatprep.subr.mxu0 0.0
        %3161 = vmatpush1.msra.mxu0 0.0
        %3162 = vmatprep.subr.mxu0 0.0
        %3163 = vmatpush1.msra.mxu0 0.0
        %3164 = vmatprep.subr.mxu0 0.0
        %3165 = vmatpush1.msra.mxu0 0.0
        %3166 = vmatprep.subr.mxu0 0.0
        %3167 = vmatpush1.msra.mxu0 0.0
        %3168 = vmatprep.subr.mxu0 0.0
        %3169 = vmatpush1.msra.mxu0 0.0
        %3170 = vmatprep.mubr.f32.mxu0 0.0
        %3171 = vmatmul.mubr.f32.gmra.mrb[0].mxu0 %v3104
        %v3172 = vpop.f32.mrb[0].mxu0
        %v3173 = vadd.f32 %v3098, %v3172
        %v3174 = vpop.f32.mrb[0].mxu0
        %3175 = vdwg.mxu0
        %v3178 = vunpack.c.l.s4 1966171168
        %v3179 = vunpack.c.0.s8 %v3178
        %v3180 = vlaneseq
        %v3181 = vshrl.u32 %v3180, 7
        %v3182 = vsub.s32 %v3179, %v3181
        %v3183 = vrot.slane %v3173, %v3182
        %v3184 = vcombine.high %v3183, %v3183
        %v3186 = vunpack.c.l.s4 1966171168
        %v3187 = vunpack.c.0.s8 %v3186
        %v3188 = vlaneseq
        %v3189 = vshrl.u32 %v3188, 7
        %v3190 = vsub.s32 %v3187, %v3189
        %v3191 = vrot.slane %v3183, %v3190
        %v3193 = vunpack.c.l.s4 1966171168
        %v3194 = vunpack.c.0.s8 %v3193
        %v3195 = vlaneseq
        %v3196 = vshrl.u32 %v3195, 7
        %v3197 = vsub.s32 %v3194, %v3196
        %v3198 = vrot.slane %v3184, %v3197
        %v3199 = vcombine.high %v3191, %v3191
        %v3200 = vcombine.high %v3198, %v3198
        %3205 = vst.msk [vmem:[%s408 + $0xb] sm:$0x1] %vm1129, %v3191
        %3206 = vst.msk [vmem:[%s408 + $0x1b] sm:$0x1] %vm1129, %v3198
        %3207 = vst.msk [vmem:[%s408 + $0x2b] sm:$0x1] %vm1129, %v3199
        %3208 = vst.msk [vmem:[%s408 + $0x3b] sm:$0x1] %vm1129, %v3200
        %v3209 = vld [vmem:[#allocation4] sm:$0xf]
        %v3210 = vld [vmem:[%s5] sm:$0xff]
        %v3211 = vld [vmem:[%s5 + $0x8] sm:$0xff]
        %v3212 = vld [vmem:[#allocation4 + $0x8] sm:$0xf]
        %v3213 = vld [vmem:[%s951] sm:$0xff]
        %v3214 = vld [vmem:[%s951 + $0x8] sm:$0xff]
        %3216 = vrot.lane.b32.xlu0 %v3212, 32
        %v3217 = vpop.permute.xlu0 %3216
        %v3218 = vsel %vm416, %v3217, 0
        %3220 = vmatprep.subr.mxu0 0.0
        %3221 = vmatpush1.msra.mxu0 %v3213
        %3222 = vmatprep.subr.mxu0 0.0
        %3223 = vmatpush1.msra.mxu0 %v3214
        %3224 = vmatprep.subr.mxu0 0.0
        %3225 = vmatpush1.msra.mxu0 0.0
        %3226 = vmatprep.subr.mxu0 0.0
        %3227 = vmatpush1.msra.mxu0 0.0
        %3228 = vmatprep.subr.mxu0 0.0
        %3229 = vmatpush1.msra.mxu0 0.0
        %3230 = vmatprep.subr.mxu0 0.0
        %3231 = vmatpush1.msra.mxu0 0.0
        %3232 = vmatprep.subr.mxu0 0.0
        %3233 = vmatpush1.msra.mxu0 0.0
        %3234 = vmatprep.subr.mxu0 0.0
        %3235 = vmatpush1.msra.mxu0 0.0
        %3236 = vmatprep.subr.mxu0 0.0
        %3237 = vmatpush1.msra.mxu0 0.0
        %3238 = vmatprep.subr.mxu0 0.0
        %3239 = vmatpush1.msra.mxu0 0.0
        %3240 = vmatprep.subr.mxu0 0.0
        %3241 = vmatpush1.msra.mxu0 0.0
        %3242 = vmatprep.subr.mxu0 0.0
        %3243 = vmatpush1.msra.mxu0 0.0
        %3244 = vmatprep.subr.mxu0 0.0
        %3245 = vmatpush1.msra.mxu0 0.0
        %3246 = vmatprep.subr.mxu0 0.0
        %3247 = vmatpush1.msra.mxu0 0.0
        %3248 = vmatprep.subr.mxu0 0.0
        %3249 = vmatpush1.msra.mxu0 0.0
        %3250 = vmatprep.subr.mxu0 0.0
        %3251 = vmatpush1.msra.mxu0 0.0
        %3252 = vmatprep.subr.mxu0 0.0
        %3253 = vmatpush1.msra.mxu0 0.0
        %3254 = vmatprep.subr.mxu0 0.0
        %3255 = vmatpush1.msra.mxu0 0.0
        %3256 = vmatprep.subr.mxu0 0.0
        %3257 = vmatpush1.msra.mxu0 0.0
        %3258 = vmatprep.subr.mxu0 0.0
        %3259 = vmatpush1.msra.mxu0 0.0
        %3260 = vmatprep.subr.mxu0 0.0
        %3261 = vmatpush1.msra.mxu0 0.0
        %3262 = vmatprep.subr.mxu0 0.0
        %3263 = vmatpush1.msra.mxu0 0.0
        %3264 = vmatprep.subr.mxu0 0.0
        %3265 = vmatpush1.msra.mxu0 0.0
        %3266 = vmatprep.subr.mxu0 0.0
        %3267 = vmatpush1.msra.mxu0 0.0
        %3268 = vmatprep.subr.mxu0 0.0
        %3269 = vmatpush1.msra.mxu0 0.0
        %3270 = vmatprep.subr.mxu0 0.0
        %3271 = vmatpush1.msra.mxu0 0.0
        %3272 = vmatprep.subr.mxu0 0.0
        %3273 = vmatpush1.msra.mxu0 0.0
        %3274 = vmatprep.subr.mxu0 0.0
        %3275 = vmatpush1.msra.mxu0 0.0
        %3276 = vmatprep.subr.mxu0 0.0
        %3277 = vmatpush1.msra.mxu0 0.0
        %3278 = vmatprep.subr.mxu0 0.0
        %3279 = vmatpush1.msra.mxu0 0.0
        %3280 = vmatprep.subr.mxu0 0.0
        %3281 = vmatpush1.msra.mxu0 0.0
        %3282 = vmatprep.subr.mxu0 0.0
        %3283 = vmatpush1.msra.mxu0 0.0
        %3284 = vmatprep.mubr.f32.mxu0 0.0
        %3285 = vmatmul.mubr.f32.gmra.mrb[0].mxu0 %v3218
        %v3286 = vpop.f32.mrb[0].mxu0
        %v3287 = vadd.f32 0.0, %v3286
        %v3288 = vpop.f32.mrb[0].mxu0
        %3289 = vdwg.mxu0
        %3291 = vrot.lane.b32.xlu0 %v3209, 32
        %v3292 = vpop.permute.xlu0 %3291
        %v3293 = vsel %vm416, %v3292, 0
        %3295 = vmatprep.subr.mxu0 0.0
        %3296 = vmatpush1.msra.mxu0 %v3210
        %3297 = vmatprep.subr.mxu0 0.0
        %3298 = vmatpush1.msra.mxu0 %v3211
        %3299 = vmatprep.subr.mxu0 0.0
        %3300 = vmatpush1.msra.mxu0 0.0
        %3301 = vmatprep.subr.mxu0 0.0
        %3302 = vmatpush1.msra.mxu0 0.0
        %3303 = vmatprep.subr.mxu0 0.0
        %3304 = vmatpush1.msra.mxu0 0.0
        %3305 = vmatprep.subr.mxu0 0.0
        %3306 = vmatpush1.msra.mxu0 0.0
        %3307 = vmatprep.subr.mxu0 0.0
        %3308 = vmatpush1.msra.mxu0 0.0
        %3309 = vmatprep.subr.mxu0 0.0
        %3310 = vmatpush1.msra.mxu0 0.0
        %3311 = vmatprep.subr.mxu0 0.0
        %3312 = vmatpush1.msra.mxu0 0.0
        %3313 = vmatprep.subr.mxu0 0.0
        %3314 = vmatpush1.msra.mxu0 0.0
        %3315 = vmatprep.subr.mxu0 0.0
        %3316 = vmatpush1.msra.mxu0 0.0
        %3317 = vmatprep.subr.mxu0 0.0
        %3318 = vmatpush1.msra.mxu0 0.0
        %3319 = vmatprep.subr.mxu0 0.0
        %3320 = vmatpush1.msra.mxu0 0.0
        %3321 = vmatprep.subr.mxu0 0.0
        %3322 = vmatpush1.msra.mxu0 0.0
        %3323 = vmatprep.subr.mxu0 0.0
        %3324 = vmatpush1.msra.mxu0 0.0
        %3325 = vmatprep.subr.mxu0 0.0
        %3326 = vmatpush1.msra.mxu0 0.0
        %3327 = vmatprep.subr.mxu0 0.0
        %3328 = vmatpush1.msra.mxu0 0.0
        %3329 = vmatprep.subr.mxu0 0.0
        %3330 = vmatpush1.msra.mxu0 0.0
        %3331 = vmatprep.subr.mxu0 0.0
        %3332 = vmatpush1.msra.mxu0 0.0
        %3333 = vmatprep.subr.mxu0 0.0
        %3334 = vmatpush1.msra.mxu0 0.0
        %3335 = vmatprep.subr.mxu0 0.0
        %3336 = vmatpush1.msra.mxu0 0.0
        %3337 = vmatprep.subr.mxu0 0.0
        %3338 = vmatpush1.msra.mxu0 0.0
        %3339 = vmatprep.subr.mxu0 0.0
        %3340 = vmatpush1.msra.mxu0 0.0
        %3341 = vmatprep.subr.mxu0 0.0
        %3342 = vmatpush1.msra.mxu0 0.0
        %3343 = vmatprep.subr.mxu0 0.0
        %3344 = vmatpush1.msra.mxu0 0.0
        %3345 = vmatprep.subr.mxu0 0.0
        %3346 = vmatpush1.msra.mxu0 0.0
        %3347 = vmatprep.subr.mxu0 0.0
        %3348 = vmatpush1.msra.mxu0 0.0
        %3349 = vmatprep.subr.mxu0 0.0
        %3350 = vmatpush1.msra.mxu0 0.0
        %3351 = vmatprep.subr.mxu0 0.0
        %3352 = vmatpush1.msra.mxu0 0.0
        %3353 = vmatprep.subr.mxu0 0.0
        %3354 = vmatpush1.msra.mxu0 0.0
        %3355 = vmatprep.subr.mxu0 0.0
        %3356 = vmatpush1.msra.mxu0 0.0
        %3357 = vmatprep.subr.mxu0 0.0
        %3358 = vmatpush1.msra.mxu0 0.0
        %3359 = vmatprep.mubr.f32.mxu0 0.0
        %3360 = vmatmul.mubr.f32.gmra.mrb[0].mxu0 %v3293
        %v3361 = vpop.f32.mrb[0].mxu0
        %v3362 = vadd.f32 %v3287, %v3361
        %v3363 = vpop.f32.mrb[0].mxu0
        %3364 = vdwg.mxu0
        %v3367 = vunpack.c.l.s4 1966171168
        %v3368 = vunpack.c.0.s8 %v3367
        %v3369 = vlaneseq
        %v3370 = vshrl.u32 %v3369, 7
        %v3371 = vsub.s32 %v3368, %v3370
        %v3372 = vrot.slane %v3362, %v3371
        %v3373 = vcombine.high %v3372, %v3372
        %v3375 = vunpack.c.l.s4 1966171168
        %v3376 = vunpack.c.0.s8 %v3375
        %v3377 = vlaneseq
        %v3378 = vshrl.u32 %v3377, 7
        %v3379 = vsub.s32 %v3376, %v3378
        %v3380 = vrot.slane %v3372, %v3379
        %v3382 = vunpack.c.l.s4 1966171168
        %v3383 = vunpack.c.0.s8 %v3382
        %v3384 = vlaneseq
        %v3385 = vshrl.u32 %v3384, 7
        %v3386 = vsub.s32 %v3383, %v3385
        %v3387 = vrot.slane %v3373, %v3386
        %v3388 = vcombine.high %v3380, %v3380
        %v3389 = vcombine.high %v3387, %v3387
        %3394 = vst.msk [vmem:[%s408 + $0xc] sm:$0x1] %vm1129, %v3380
        %3395 = vst.msk [vmem:[%s408 + $0x1c] sm:$0x1] %vm1129, %v3387
        %3396 = vst.msk [vmem:[%s408 + $0x2c] sm:$0x1] %vm1129, %v3388
        %3397 = vst.msk [vmem:[%s408 + $0x3c] sm:$0x1] %vm1129, %v3389
        %v3398 = vld [vmem:[#allocation4 + $0x4] sm:$0xf]
        %v3399 = vld [vmem:[%s5] sm:$0xff]
        %v3400 = vld [vmem:[%s5 + $0x8] sm:$0xff]
        %v3401 = vld [vmem:[#allocation4 + $0xc] sm:$0xf]
        %v3402 = vld [vmem:[%s951] sm:$0xff]
        %v3403 = vld [vmem:[%s951 + $0x8] sm:$0xff]
        %3405 = vrot.lane.b32.xlu0 %v3401, 32
        %v3406 = vpop.permute.xlu0 %3405
        %v3407 = vsel %vm416, %v3406, 0
        %3409 = vmatprep.subr.mxu0 0.0
        %3410 = vmatpush1.msra.mxu0 %v3402
        %3411 = vmatprep.subr.mxu0 0.0
        %3412 = vmatpush1.msra.mxu0 %v3403
        %3413 = vmatprep.subr.mxu0 0.0
        %3414 = vmatpush1.msra.mxu0 0.0
        %3415 = vmatprep.subr.mxu0 0.0
        %3416 = vmatpush1.msra.mxu0 0.0
        %3417 = vmatprep.subr.mxu0 0.0
        %3418 = vmatpush1.msra.mxu0 0.0
        %3419 = vmatprep.subr.mxu0 0.0
        %3420 = vmatpush1.msra.mxu0 0.0
        %3421 = vmatprep.subr.mxu0 0.0
        %3422 = vmatpush1.msra.mxu0 0.0
        %3423 = vmatprep.subr.mxu0 0.0
        %3424 = vmatpush1.msra.mxu0 0.0
        %3425 = vmatprep.subr.mxu0 0.0
        %3426 = vmatpush1.msra.mxu0 0.0
        %3427 = vmatprep.subr.mxu0 0.0
        %3428 = vmatpush1.msra.mxu0 0.0
        %3429 = vmatprep.subr.mxu0 0.0
        %3430 = vmatpush1.msra.mxu0 0.0
        %3431 = vmatprep.subr.mxu0 0.0
        %3432 = vmatpush1.msra.mxu0 0.0
        %3433 = vmatprep.subr.mxu0 0.0
        %3434 = vmatpush1.msra.mxu0 0.0
        %3435 = vmatprep.subr.mxu0 0.0
        %3436 = vmatpush1.msra.mxu0 0.0
        %3437 = vmatprep.subr.mxu0 0.0
        %3438 = vmatpush1.msra.mxu0 0.0
        %3439 = vmatprep.subr.mxu0 0.0
        %3440 = vmatpush1.msra.mxu0 0.0
        %3441 = vmatprep.subr.mxu0 0.0
        %3442 = vmatpush1.msra.mxu0 0.0
        %3443 = vmatprep.subr.mxu0 0.0
        %3444 = vmatpush1.msra.mxu0 0.0
        %3445 = vmatprep.subr.mxu0 0.0
        %3446 = vmatpush1.msra.mxu0 0.0
        %3447 = vmatprep.subr.mxu0 0.0
        %3448 = vmatpush1.msra.mxu0 0.0
        %3449 = vmatprep.subr.mxu0 0.0
        %3450 = vmatpush1.msra.mxu0 0.0
        %3451 = vmatprep.subr.mxu0 0.0
        %3452 = vmatpush1.msra.mxu0 0.0
        %3453 = vmatprep.subr.mxu0 0.0
        %3454 = vmatpush1.msra.mxu0 0.0
        %3455 = vmatprep.subr.mxu0 0.0
        %3456 = vmatpush1.msra.mxu0 0.0
        %3457 = vmatprep.subr.mxu0 0.0
        %3458 = vmatpush1.msra.mxu0 0.0
        %3459 = vmatprep.subr.mxu0 0.0
        %3460 = vmatpush1.msra.mxu0 0.0
        %3461 = vmatprep.subr.mxu0 0.0
        %3462 = vmatpush1.msra.mxu0 0.0
        %3463 = vmatprep.subr.mxu0 0.0
        %3464 = vmatpush1.msra.mxu0 0.0
        %3465 = vmatprep.subr.mxu0 0.0
        %3466 = vmatpush1.msra.mxu0 0.0
        %3467 = vmatprep.subr.mxu0 0.0
        %3468 = vmatpush1.msra.mxu0 0.0
        %3469 = vmatprep.subr.mxu0 0.0
        %3470 = vmatpush1.msra.mxu0 0.0
        %3471 = vmatprep.subr.mxu0 0.0
        %3472 = vmatpush1.msra.mxu0 0.0
        %3473 = vmatprep.mubr.f32.mxu0 0.0
        %3474 = vmatmul.mubr.f32.gmra.mrb[0].mxu0 %v3407
        %v3475 = vpop.f32.mrb[0].mxu0
        %v3476 = vadd.f32 0.0, %v3475
        %v3477 = vpop.f32.mrb[0].mxu0
        %3478 = vdwg.mxu0
        %3480 = vrot.lane.b32.xlu0 %v3398, 32
        %v3481 = vpop.permute.xlu0 %3480
        %v3482 = vsel %vm416, %v3481, 0
        %3484 = vmatprep.subr.mxu0 0.0
        %3485 = vmatpush1.msra.mxu0 %v3399
        %3486 = vmatprep.subr.mxu0 0.0
        %3487 = vmatpush1.msra.mxu0 %v3400
        %3488 = vmatprep.subr.mxu0 0.0
        %3489 = vmatpush1.msra.mxu0 0.0
        %3490 = vmatprep.subr.mxu0 0.0
        %3491 = vmatpush1.msra.mxu0 0.0
        %3492 = vmatprep.subr.mxu0 0.0
        %3493 = vmatpush1.msra.mxu0 0.0
        %3494 = vmatprep.subr.mxu0 0.0
        %3495 = vmatpush1.msra.mxu0 0.0
        %3496 = vmatprep.subr.mxu0 0.0
        %3497 = vmatpush1.msra.mxu0 0.0
        %3498 = vmatprep.subr.mxu0 0.0
        %3499 = vmatpush1.msra.mxu0 0.0
        %3500 = vmatprep.subr.mxu0 0.0
        %3501 = vmatpush1.msra.mxu0 0.0
        %3502 = vmatprep.subr.mxu0 0.0
        %3503 = vmatpush1.msra.mxu0 0.0
        %3504 = vmatprep.subr.mxu0 0.0
        %3505 = vmatpush1.msra.mxu0 0.0
        %3506 = vmatprep.subr.mxu0 0.0
        %3507 = vmatpush1.msra.mxu0 0.0
        %3508 = vmatprep.subr.mxu0 0.0
        %3509 = vmatpush1.msra.mxu0 0.0
        %3510 = vmatprep.subr.mxu0 0.0
        %3511 = vmatpush1.msra.mxu0 0.0
        %3512 = vmatprep.subr.mxu0 0.0
        %3513 = vmatpush1.msra.mxu0 0.0
        %3514 = vmatprep.subr.mxu0 0.0
        %3515 = vmatpush1.msra.mxu0 0.0
        %3516 = vmatprep.subr.mxu0 0.0
        %3517 = vmatpush1.msra.mxu0 0.0
        %3518 = vmatprep.subr.mxu0 0.0
        %3519 = vmatpush1.msra.mxu0 0.0
        %3520 = vmatprep.subr.mxu0 0.0
        %3521 = vmatpush1.msra.mxu0 0.0
        %3522 = vmatprep.subr.mxu0 0.0
        %3523 = vmatpush1.msra.mxu0 0.0
        %3524 = vmatprep.subr.mxu0 0.0
        %3525 = vmatpush1.msra.mxu0 0.0
        %3526 = vmatprep.subr.mxu0 0.0
        %3527 = vmatpush1.msra.mxu0 0.0
        %3528 = vmatprep.subr.mxu0 0.0
        %3529 = vmatpush1.msra.mxu0 0.0
        %3530 = vmatprep.subr.mxu0 0.0
        %3531 = vmatpush1.msra.mxu0 0.0
        %3532 = vmatprep.subr.mxu0 0.0
        %3533 = vmatpush1.msra.mxu0 0.0
        %3534 = vmatprep.subr.mxu0 0.0
        %3535 = vmatpush1.msra.mxu0 0.0
        %3536 = vmatprep.subr.mxu0 0.0
        %3537 = vmatpush1.msra.mxu0 0.0
        %3538 = vmatprep.subr.mxu0 0.0
        %3539 = vmatpush1.msra.mxu0 0.0
        %3540 = vmatprep.subr.mxu0 0.0
        %3541 = vmatpush1.msra.mxu0 0.0
        %3542 = vmatprep.subr.mxu0 0.0
        %3543 = vmatpush1.msra.mxu0 0.0
        %3544 = vmatprep.subr.mxu0 0.0
        %3545 = vmatpush1.msra.mxu0 0.0
        %3546 = vmatprep.subr.mxu0 0.0
        %3547 = vmatpush1.msra.mxu0 0.0
        %3548 = vmatprep.mubr.f32.mxu0 0.0
        %3549 = vmatmul.mubr.f32.gmra.mrb[0].mxu0 %v3482
        %v3550 = vpop.f32.mrb[0].mxu0
        %v3551 = vadd.f32 %v3476, %v3550
        %v3552 = vpop.f32.mrb[0].mxu0
        %3553 = vdwg.mxu0
        %v3556 = vunpack.c.l.s4 1966171168
        %v3557 = vunpack.c.0.s8 %v3556
        %v3558 = vlaneseq
        %v3559 = vshrl.u32 %v3558, 7
        %v3560 = vsub.s32 %v3557, %v3559
        %v3561 = vrot.slane %v3551, %v3560
        %v3562 = vcombine.high %v3561, %v3561
        %v3564 = vunpack.c.l.s4 1966171168
        %v3565 = vunpack.c.0.s8 %v3564
        %v3566 = vlaneseq
        %v3567 = vshrl.u32 %v3566, 7
        %v3568 = vsub.s32 %v3565, %v3567
        %v3569 = vrot.slane %v3561, %v3568
        %v3571 = vunpack.c.l.s4 1966171168
        %v3572 = vunpack.c.0.s8 %v3571
        %v3573 = vlaneseq
        %v3574 = vshrl.u32 %v3573, 7
        %v3575 = vsub.s32 %v3572, %v3574
        %v3576 = vrot.slane %v3562, %v3575
        %v3577 = vcombine.high %v3569, %v3569
        %v3578 = vcombine.high %v3576, %v3576
        %3583 = vst.msk [vmem:[%s408 + $0xd] sm:$0x1] %vm1129, %v3569
        %3584 = vst.msk [vmem:[%s408 + $0x1d] sm:$0x1] %vm1129, %v3576
        %3585 = vst.msk [vmem:[%s408 + $0x2d] sm:$0x1] %vm1129, %v3577
        %3586 = vst.msk [vmem:[%s408 + $0x3d] sm:$0x1] %vm1129, %v3578
        %v3587 = vld [vmem:[#allocation4] sm:$0xf]
        %v3588 = vld [vmem:[%s5] sm:$0xff]
        %v3589 = vld [vmem:[%s5 + $0x8] sm:$0xff]
        %v3590 = vld [vmem:[#allocation4 + $0x8] sm:$0xf]
        %v3591 = vld [vmem:[%s951] sm:$0xff]
        %v3592 = vld [vmem:[%s951 + $0x8] sm:$0xff]
        %3594 = vrot.lane.b32.xlu0 %v3590, 16
        %v3595 = vpop.permute.xlu0 %3594
        %v3596 = vsel %vm416, %v3595, 0
        %3598 = vmatprep.subr.mxu0 0.0
        %3599 = vmatpush1.msra.mxu0 %v3591
        %3600 = vmatprep.subr.mxu0 0.0
        %3601 = vmatpush1.msra.mxu0 %v3592
        %3602 = vmatprep.subr.mxu0 0.0
        %3603 = vmatpush1.msra.mxu0 0.0
        %3604 = vmatprep.subr.mxu0 0.0
        %3605 = vmatpush1.msra.mxu0 0.0
        %3606 = vmatprep.subr.mxu0 0.0
        %3607 = vmatpush1.msra.mxu0 0.0
        %3608 = vmatprep.subr.mxu0 0.0
        %3609 = vmatpush1.msra.mxu0 0.0
        %3610 = vmatprep.subr.mxu0 0.0
        %3611 = vmatpush1.msra.mxu0 0.0
        %3612 = vmatprep.subr.mxu0 0.0
        %3613 = vmatpush1.msra.mxu0 0.0
        %3614 = vmatprep.subr.mxu0 0.0
        %3615 = vmatpush1.msra.mxu0 0.0
        %3616 = vmatprep.subr.mxu0 0.0
        %3617 = vmatpush1.msra.mxu0 0.0
        %3618 = vmatprep.subr.mxu0 0.0
        %3619 = vmatpush1.msra.mxu0 0.0
        %3620 = vmatprep.subr.mxu0 0.0
        %3621 = vmatpush1.msra.mxu0 0.0
        %3622 = vmatprep.subr.mxu0 0.0
        %3623 = vmatpush1.msra.mxu0 0.0
        %3624 = vmatprep.subr.mxu0 0.0
        %3625 = vmatpush1.msra.mxu0 0.0
        %3626 = vmatprep.subr.mxu0 0.0
        %3627 = vmatpush1.msra.mxu0 0.0
        %3628 = vmatprep.subr.mxu0 0.0
        %3629 = vmatpush1.msra.mxu0 0.0
        %3630 = vmatprep.subr.mxu0 0.0
        %3631 = vmatpush1.msra.mxu0 0.0
        %3632 = vmatprep.subr.mxu0 0.0
        %3633 = vmatpush1.msra.mxu0 0.0
        %3634 = vmatprep.subr.mxu0 0.0
        %3635 = vmatpush1.msra.mxu0 0.0
        %3636 = vmatprep.subr.mxu0 0.0
        %3637 = vmatpush1.msra.mxu0 0.0
        %3638 = vmatprep.subr.mxu0 0.0
        %3639 = vmatpush1.msra.mxu0 0.0
        %3640 = vmatprep.subr.mxu0 0.0
        %3641 = vmatpush1.msra.mxu0 0.0
        %3642 = vmatprep.subr.mxu0 0.0
        %3643 = vmatpush1.msra.mxu0 0.0
        %3644 = vmatprep.subr.mxu0 0.0
        %3645 = vmatpush1.msra.mxu0 0.0
        %3646 = vmatprep.subr.mxu0 0.0
        %3647 = vmatpush1.msra.mxu0 0.0
        %3648 = vmatprep.subr.mxu0 0.0
        %3649 = vmatpush1.msra.mxu0 0.0
        %3650 = vmatprep.subr.mxu0 0.0
        %3651 = vmatpush1.msra.mxu0 0.0
        %3652 = vmatprep.subr.mxu0 0.0
        %3653 = vmatpush1.msra.mxu0 0.0
        %3654 = vmatprep.subr.mxu0 0.0
        %3655 = vmatpush1.msra.mxu0 0.0
        %3656 = vmatprep.subr.mxu0 0.0
        %3657 = vmatpush1.msra.mxu0 0.0
        %3658 = vmatprep.subr.mxu0 0.0
        %3659 = vmatpush1.msra.mxu0 0.0
        %3660 = vmatprep.subr.mxu0 0.0
        %3661 = vmatpush1.msra.mxu0 0.0
        %3662 = vmatprep.mubr.f32.mxu0 0.0
        %3663 = vmatmul.mubr.f32.gmra.mrb[0].mxu0 %v3596
        %v3664 = vpop.f32.mrb[0].mxu0
        %v3665 = vadd.f32 0.0, %v3664
        %v3666 = vpop.f32.mrb[0].mxu0
        %3667 = vdwg.mxu0
        %3669 = vrot.lane.b32.xlu0 %v3587, 16
        %v3670 = vpop.permute.xlu0 %3669
        %v3671 = vsel %vm416, %v3670, 0
        %3673 = vmatprep.subr.mxu0 0.0
        %3674 = vmatpush1.msra.mxu0 %v3588
        %3675 = vmatprep.subr.mxu0 0.0
        %3676 = vmatpush1.msra.mxu0 %v3589
        %3677 = vmatprep.subr.mxu0 0.0
        %3678 = vmatpush1.msra.mxu0 0.0
        %3679 = vmatprep.subr.mxu0 0.0
        %3680 = vmatpush1.msra.mxu0 0.0
        %3681 = vmatprep.subr.mxu0 0.0
        %3682 = vmatpush1.msra.mxu0 0.0
        %3683 = vmatprep.subr.mxu0 0.0
        %3684 = vmatpush1.msra.mxu0 0.0
        %3685 = vmatprep.subr.mxu0 0.0
        %3686 = vmatpush1.msra.mxu0 0.0
        %3687 = vmatprep.subr.mxu0 0.0
        %3688 = vmatpush1.msra.mxu0 0.0
        %3689 = vmatprep.subr.mxu0 0.0
        %3690 = vmatpush1.msra.mxu0 0.0
        %3691 = vmatprep.subr.mxu0 0.0
        %3692 = vmatpush1.msra.mxu0 0.0
        %3693 = vmatprep.subr.mxu0 0.0
        %3694 = vmatpush1.msra.mxu0 0.0
        %3695 = vmatprep.subr.mxu0 0.0
        %3696 = vmatpush1.msra.mxu0 0.0
        %3697 = vmatprep.subr.mxu0 0.0
        %3698 = vmatpush1.msra.mxu0 0.0
        %3699 = vmatprep.subr.mxu0 0.0
        %3700 = vmatpush1.msra.mxu0 0.0
        %3701 = vmatprep.subr.mxu0 0.0
        %3702 = vmatpush1.msra.mxu0 0.0
        %3703 = vmatprep.subr.mxu0 0.0
        %3704 = vmatpush1.msra.mxu0 0.0
        %3705 = vmatprep.subr.mxu0 0.0
        %3706 = vmatpush1.msra.mxu0 0.0
        %3707 = vmatprep.subr.mxu0 0.0
        %3708 = vmatpush1.msra.mxu0 0.0
        %3709 = vmatprep.subr.mxu0 0.0
        %3710 = vmatpush1.msra.mxu0 0.0
        %3711 = vmatprep.subr.mxu0 0.0
        %3712 = vmatpush1.msra.mxu0 0.0
        %3713 = vmatprep.subr.mxu0 0.0
        %3714 = vmatpush1.msra.mxu0 0.0
        %3715 = vmatprep.subr.mxu0 0.0
        %3716 = vmatpush1.msra.mxu0 0.0
        %3717 = vmatprep.subr.mxu0 0.0
        %3718 = vmatpush1.msra.mxu0 0.0
        %3719 = vmatprep.subr.mxu0 0.0
        %3720 = vmatpush1.msra.mxu0 0.0
        %3721 = vmatprep.subr.mxu0 0.0
        %3722 = vmatpush1.msra.mxu0 0.0
        %3723 = vmatprep.subr.mxu0 0.0
        %3724 = vmatpush1.msra.mxu0 0.0
        %3725 = vmatprep.subr.mxu0 0.0
        %3726 = vmatpush1.msra.mxu0 0.0
        %3727 = vmatprep.subr.mxu0 0.0
        %3728 = vmatpush1.msra.mxu0 0.0
        %3729 = vmatprep.subr.mxu0 0.0
        %3730 = vmatpush1.msra.mxu0 0.0
        %3731 = vmatprep.subr.mxu0 0.0
        %3732 = vmatpush1.msra.mxu0 0.0
        %3733 = vmatprep.subr.mxu0 0.0
        %3734 = vmatpush1.msra.mxu0 0.0
        %3735 = vmatprep.subr.mxu0 0.0
        %3736 = vmatpush1.msra.mxu0 0.0
        %3737 = vmatprep.mubr.f32.mxu0 0.0
        %3738 = vmatmul.mubr.f32.gmra.mrb[0].mxu0 %v3671
        %v3739 = vpop.f32.mrb[0].mxu0
        %v3740 = vadd.f32 %v3665, %v3739
        %v3741 = vpop.f32.mrb[0].mxu0
        %3742 = vdwg.mxu0
        %v3745 = vunpack.c.l.s4 1966171168
        %v3746 = vunpack.c.0.s8 %v3745
        %v3747 = vlaneseq
        %v3748 = vshrl.u32 %v3747, 7
        %v3749 = vsub.s32 %v3746, %v3748
        %v3750 = vrot.slane %v3740, %v3749
        %v3751 = vcombine.high %v3750, %v3750
        %v3753 = vunpack.c.l.s4 1966171168
        %v3754 = vunpack.c.0.s8 %v3753
        %v3755 = vlaneseq
        %v3756 = vshrl.u32 %v3755, 7
        %v3757 = vsub.s32 %v3754, %v3756
        %v3758 = vrot.slane %v3750, %v3757
        %v3760 = vunpack.c.l.s4 1966171168
        %v3761 = vunpack.c.0.s8 %v3760
        %v3762 = vlaneseq
        %v3763 = vshrl.u32 %v3762, 7
        %v3764 = vsub.s32 %v3761, %v3763
        %v3765 = vrot.slane %v3751, %v3764
        %v3766 = vcombine.high %v3758, %v3758
        %v3767 = vcombine.high %v3765, %v3765
        %3772 = vst.msk [vmem:[%s408 + $0xe] sm:$0x1] %vm1129, %v3758
        %3773 = vst.msk [vmem:[%s408 + $0x1e] sm:$0x1] %vm1129, %v3765
        %3774 = vst.msk [vmem:[%s408 + $0x2e] sm:$0x1] %vm1129, %v3766
        %3775 = vst.msk [vmem:[%s408 + $0x3e] sm:$0x1] %vm1129, %v3767
        %v3776 = vld [vmem:[#allocation4 + $0x4] sm:$0xf]
        %v3777 = vld [vmem:[%s5] sm:$0xff]
        %v3778 = vld [vmem:[%s5 + $0x8] sm:$0xff]
        %v3779 = vld [vmem:[#allocation4 + $0xc] sm:$0xf]
        %v3780 = vld [vmem:[%s951] sm:$0xff]
        %v3781 = vld [vmem:[%s951 + $0x8] sm:$0xff]
        %3783 = vrot.lane.b32.xlu0 %v3779, 16
        %v3784 = vpop.permute.xlu0 %3783
        %v3785 = vsel %vm416, %v3784, 0
        %3787 = vmatprep.subr.mxu0 0.0
        %3788 = vmatpush1.msra.mxu0 %v3780
        %3789 = vmatprep.subr.mxu0 0.0
        %3790 = vmatpush1.msra.mxu0 %v3781
        %3791 = vmatprep.subr.mxu0 0.0
        %3792 = vmatpush1.msra.mxu0 0.0
        %3793 = vmatprep.subr.mxu0 0.0
        %3794 = vmatpush1.msra.mxu0 0.0
        %3795 = vmatprep.subr.mxu0 0.0
        %3796 = vmatpush1.msra.mxu0 0.0
        %3797 = vmatprep.subr.mxu0 0.0
        %3798 = vmatpush1.msra.mxu0 0.0
        %3799 = vmatprep.subr.mxu0 0.0
        %3800 = vmatpush1.msra.mxu0 0.0
        %3801 = vmatprep.subr.mxu0 0.0
        %3802 = vmatpush1.msra.mxu0 0.0
        %3803 = vmatprep.subr.mxu0 0.0
        %3804 = vmatpush1.msra.mxu0 0.0
        %3805 = vmatprep.subr.mxu0 0.0
        %3806 = vmatpush1.msra.mxu0 0.0
        %3807 = vmatprep.subr.mxu0 0.0
        %3808 = vmatpush1.msra.mxu0 0.0
        %3809 = vmatprep.subr.mxu0 0.0
        %3810 = vmatpush1.msra.mxu0 0.0
        %3811 = vmatprep.subr.mxu0 0.0
        %3812 = vmatpush1.msra.mxu0 0.0
        %3813 = vmatprep.subr.mxu0 0.0
        %3814 = vmatpush1.msra.mxu0 0.0
        %3815 = vmatprep.subr.mxu0 0.0
        %3816 = vmatpush1.msra.mxu0 0.0
        %3817 = vmatprep.subr.mxu0 0.0
        %3818 = vmatpush1.msra.mxu0 0.0
        %3819 = vmatprep.subr.mxu0 0.0
        %3820 = vmatpush1.msra.mxu0 0.0
        %3821 = vmatprep.subr.mxu0 0.0
        %3822 = vmatpush1.msra.mxu0 0.0
        %3823 = vmatprep.subr.mxu0 0.0
        %3824 = vmatpush1.msra.mxu0 0.0
        %3825 = vmatprep.subr.mxu0 0.0
        %3826 = vmatpush1.msra.mxu0 0.0
        %3827 = vmatprep.subr.mxu0 0.0
        %3828 = vmatpush1.msra.mxu0 0.0
        %3829 = vmatprep.subr.mxu0 0.0
        %3830 = vmatpush1.msra.mxu0 0.0
        %3831 = vmatprep.subr.mxu0 0.0
        %3832 = vmatpush1.msra.mxu0 0.0
        %3833 = vmatprep.subr.mxu0 0.0
        %3834 = vmatpush1.msra.mxu0 0.0
        %3835 = vmatprep.subr.mxu0 0.0
        %3836 = vmatpush1.msra.mxu0 0.0
        %3837 = vmatprep.subr.mxu0 0.0
        %3838 = vmatpush1.msra.mxu0 0.0
        %3839 = vmatprep.subr.mxu0 0.0
        %3840 = vmatpush1.msra.mxu0 0.0
        %3841 = vmatprep.subr.mxu0 0.0
        %3842 = vmatpush1.msra.mxu0 0.0
        %3843 = vmatprep.subr.mxu0 0.0
        %3844 = vmatpush1.msra.mxu0 0.0
        %3845 = vmatprep.subr.mxu0 0.0
        %3846 = vmatpush1.msra.mxu0 0.0
        %3847 = vmatprep.subr.mxu0 0.0
        %3848 = vmatpush1.msra.mxu0 0.0
        %3849 = vmatprep.subr.mxu0 0.0
        %3850 = vmatpush1.msra.mxu0 0.0
        %3851 = vmatprep.mubr.f32.mxu0 0.0
        %3852 = vmatmul.mubr.f32.gmra.mrb[0].mxu0 %v3785
        %v3853 = vpop.f32.mrb[0].mxu0
        %v3854 = vadd.f32 0.0, %v3853
        %v3855 = vpop.f32.mrb[0].mxu0
        %3856 = vdwg.mxu0
        %3858 = vrot.lane.b32.xlu0 %v3776, 16
        %v3859 = vpop.permute.xlu0 %3858
        %v3860 = vsel %vm416, %v3859, 0
        %3862 = vmatprep.subr.mxu0 0.0
        %3863 = vmatpush1.msra.mxu0 %v3777
        %3864 = vmatprep.subr.mxu0 0.0
        %3865 = vmatpush1.msra.mxu0 %v3778
        %3866 = vmatprep.subr.mxu0 0.0
        %3867 = vmatpush1.msra.mxu0 0.0
        %3868 = vmatprep.subr.mxu0 0.0
        %3869 = vmatpush1.msra.mxu0 0.0
        %3870 = vmatprep.subr.mxu0 0.0
        %3871 = vmatpush1.msra.mxu0 0.0
        %3872 = vmatprep.subr.mxu0 0.0
        %3873 = vmatpush1.msra.mxu0 0.0
        %3874 = vmatprep.subr.mxu0 0.0
        %3875 = vmatpush1.msra.mxu0 0.0
        %3876 = vmatprep.subr.mxu0 0.0
        %3877 = vmatpush1.msra.mxu0 0.0
        %3878 = vmatprep.subr.mxu0 0.0
        %3879 = vmatpush1.msra.mxu0 0.0
        %3880 = vmatprep.subr.mxu0 0.0
        %3881 = vmatpush1.msra.mxu0 0.0
        %3882 = vmatprep.subr.mxu0 0.0
        %3883 = vmatpush1.msra.mxu0 0.0
        %3884 = vmatprep.subr.mxu0 0.0
        %3885 = vmatpush1.msra.mxu0 0.0
        %3886 = vmatprep.subr.mxu0 0.0
        %3887 = vmatpush1.msra.mxu0 0.0
        %3888 = vmatprep.subr.mxu0 0.0
        %3889 = vmatpush1.msra.mxu0 0.0
        %3890 = vmatprep.subr.mxu0 0.0
        %3891 = vmatpush1.msra.mxu0 0.0
        %3892 = vmatprep.subr.mxu0 0.0
        %3893 = vmatpush1.msra.mxu0 0.0
        %3894 = vmatprep.subr.mxu0 0.0
        %3895 = vmatpush1.msra.mxu0 0.0
        %3896 = vmatprep.subr.mxu0 0.0
        %3897 = vmatpush1.msra.mxu0 0.0
        %3898 = vmatprep.subr.mxu0 0.0
        %3899 = vmatpush1.msra.mxu0 0.0
        %3900 = vmatprep.subr.mxu0 0.0
        %3901 = vmatpush1.msra.mxu0 0.0
        %3902 = vmatprep.subr.mxu0 0.0
        %3903 = vmatpush1.msra.mxu0 0.0
        %3904 = vmatprep.subr.mxu0 0.0
        %3905 = vmatpush1.msra.mxu0 0.0
        %3906 = vmatprep.subr.mxu0 0.0
        %3907 = vmatpush1.msra.mxu0 0.0
        %3908 = vmatprep.subr.mxu0 0.0
        %3909 = vmatpush1.msra.mxu0 0.0
        %3910 = vmatprep.subr.mxu0 0.0
        %3911 = vmatpush1.msra.mxu0 0.0
        %3912 = vmatprep.subr.mxu0 0.0
        %3913 = vmatpush1.msra.mxu0 0.0
        %3914 = vmatprep.subr.mxu0 0.0
        %3915 = vmatpush1.msra.mxu0 0.0
        %3916 = vmatprep.subr.mxu0 0.0
        %3917 = vmatpush1.msra.mxu0 0.0
        %3918 = vmatprep.subr.mxu0 0.0
        %3919 = vmatpush1.msra.mxu0 0.0
        %3920 = vmatprep.subr.mxu0 0.0
        %3921 = vmatpush1.msra.mxu0 0.0
        %3922 = vmatprep.subr.mxu0 0.0
        %3923 = vmatpush1.msra.mxu0 0.0
        %3924 = vmatprep.subr.mxu0 0.0
        %3925 = vmatpush1.msra.mxu0 0.0
        %3926 = vmatprep.mubr.f32.mxu0 0.0
        %3927 = vmatmul.mubr.f32.gmra.mrb[0].mxu0 %v3860
        %v3928 = vpop.f32.mrb[0].mxu0
        %v3929 = vadd.f32 %v3854, %v3928
        %v3930 = vpop.f32.mrb[0].mxu0
        %3931 = vdwg.mxu0
        %v3934 = vunpack.c.l.s4 1966171168
        %v3935 = vunpack.c.0.s8 %v3934
        %v3936 = vlaneseq
        %v3937 = vshrl.u32 %v3936, 7
        %v3938 = vsub.s32 %v3935, %v3937
        %v3939 = vrot.slane %v3929, %v3938
        %v3940 = vcombine.high %v3939, %v3939
        %v3942 = vunpack.c.l.s4 1966171168
        %v3943 = vunpack.c.0.s8 %v3942
        %v3944 = vlaneseq
        %v3945 = vshrl.u32 %v3944, 7
        %v3946 = vsub.s32 %v3943, %v3945
        %v3947 = vrot.slane %v3939, %v3946
        %v3949 = vunpack.c.l.s4 1966171168
        %v3950 = vunpack.c.0.s8 %v3949
        %v3951 = vlaneseq
        %v3952 = vshrl.u32 %v3951, 7
        %v3953 = vsub.s32 %v3950, %v3952
        %v3954 = vrot.slane %v3940, %v3953
        %v3955 = vcombine.high %v3947, %v3947
        %v3956 = vcombine.high %v3954, %v3954
        %3961 = vst.msk [vmem:[%s408 + $0xf] sm:$0x1] %vm1129, %v3947
        %3962 = vst.msk [vmem:[%s408 + $0x1f] sm:$0x1] %vm1129, %v3954
        %3963 = vst.msk [vmem:[%s408 + $0x2f] sm:$0x1] %vm1129, %v3955
        %3964 = vst.msk [vmem:[%s408 + $0x3f] sm:$0x1] %vm1129, %v3956
        %s3965 = sand.u32 %s219, 1
        %s3966 = scalar_lea.sflag [#allocation8], %s3965
        %s3967 = sand.u32 %s219, 1
        %s3968 = smul.addr %s3967, 64
        %s3969 = scalar_lea.vmem [#allocation14], %s3968
        // Predicated region
        $region65: #{tpu_custom_call.1} parent=47 // pred_check
          %p3970 = pneg %p229
        $region66: #{tpu_custom_call.1} parent=47 // pred_check_branch
          %3972 = sbr.rel (%p3970) target = $region68
        $region67: #{tpu_custom_call.1} parent=47 // pred_region
          #allocation16 [shape = 'u32[6]{0}', space=smem, size = 0x18, scoped, tag = 'DMA stride descriptor']
          %s3973 = smul.u32 2, %s34
          %s3975 = ssub.s32 1024, 1024
          %3976 = vsyncadd %s3966, %s3975
          %s3977 = smul.addr %s33, 16
          %s3978 = sadd.s32 %s3973, %s3977
          %s3979 = smul.addr %s3978, 128
          %s3980 = scalar_lea.hbm %s7, %s3979
          %s3982 = sshll.u32 1, 14
          %s3983 = sxor.u32 4294967295, %s3982
          %s3986 = sshll.u32 7, 18
          %s3987 = sxor.u32 4294967295, %s3986
          %s3988 = sand.u32 0, %s3987
          %s3990 = sor.u32 %s3988, 0
          %s3992 = sshll.u32 3, 24
          %s3993 = sxor.u32 4294967295, %s3992
          %s3994 = sand.u32 %s3990, %s3993
          %s3996 = sor.u32 %s3994, 0
          %s3997 = sshll.u32 %s3969, 4
          %s3998 = int_to_ptr.vmem [resolvable:$true] %s3997
          %4004 = sst [smem:[#allocation16]] 256
          %s4005 = scalar_lea.smem [#allocation16], 1
          %4006 = sst [smem:[%s4005]] 512
          %s4007 = scalar_lea.smem [#allocation16], 2
          %4008 = sst [smem:[%s4007]] 2
          %s4009 = scalar_lea.smem [#allocation16], 3
          %4010 = sst [smem:[%s4009]] 128
          %s4011 = scalar_lea.smem [#allocation16], 4
          %4012 = sst [smem:[%s4011]] 128
          %s4013 = scalar_lea.smem [#allocation16], 5
          %4014 = sst [smem:[%s4013]] 8
          %4016 = dma.general %s3998, 1024, %s3980, %s3966, [#allocation15], [#allocation16], %s3996, 0
        $region68: #{tpu_custom_call.1} parent=47 // pred_fallthru
          _
      $region48: #{tpu_custom_call.1} parent=5 // pred_fallthru
        _
      %p4017 = scmp.le.s32.totalorder 2, %s24
      // Predicated region
      $region69: #{tpu_custom_call.1} parent=5 // pred_check
        %p4018 = pneg %p4017
      $region70: #{tpu_custom_call.1} parent=5 // pred_check_branch
        %4020 = sbr.rel (%p4018) target = $region72
      $region71: #{tpu_custom_call.1} parent=5 // pred_region
        %s4021 = ssub.s32 %s24, 2
        // Predicated region
        $region73: #{tpu_custom_call.1} parent=71 // pred_check
          %p4022 = pneg %p235
        $region74: #{tpu_custom_call.1} parent=71 // pred_check_branch
          %4024 = sbr.rel (%p4022) target = $region76
        $region75: #{tpu_custom_call.1} parent=71 // pred_region
          %s4025 = sand.u32 %s220, 1
          %s4026 = scalar_lea.sflag [#allocation8], %s4025
          %s4027 = sand.u32 %s220, 1
          %s4028 = smul.addr %s4027, 64
          %s4029 = scalar_lea.vmem [#allocation14], %s4028
          %4030 = dma.done %s4026, 1024
        $region76: #{tpu_custom_call.1} parent=71 // pred_fallthru
          _
      $region72: #{tpu_custom_call.1} parent=5 // pred_fallthru
        _
    $region6: #{tpu_custom_call.1} parent=1 // loop_footer
      %s28 = sadd.s32 1, %s24
    $region7: #{tpu_custom_call.1} parent=1 // loop_footer_branch
      %23 = sbr.rel target = $region3
    $region8: #{tpu_custom_call.1} parent=1 // loop_exit
      _
    %4031 = vsyncpa [#allocation7], 1
    %s4032 = scalar_lea.sflag [#allocation7], 1
    %4033 = vsyncpa %s4032, 1
    %4034 = vsyncpa [#allocation10], 1
    %s4035 = scalar_lea.sflag [#allocation10], 1
    %4036 = vsyncpa %s4035, 1
    %4037 = vsyncpa [#allocation13], 1
    %4038 = vsyncpa [#allocation8], 1
    %s4039 = scalar_lea.sflag [#allocation8], 1
    %4040 = vsyncpa %s4039, 1

</llo_original>
